<compile_context>
chip_gen: v5e
topology: v5e:2x2
jax: 0.10.0
libtpu: 0.0.40
codegen_flags: <defaults>
</compile_context>

<pallas_src>
import functools

import jax
import jax.numpy as jnp
from jax.experimental import pallas as pl
from jax.experimental.pallas import tpu as pltpu

LANE = 128                       # channel dims are zero-padded to a multiple of this
_F32 = 4


def _silu(v):
    return v * jax.nn.sigmoid(v)


def _round_up(n, m):
    return ((n + m - 1) // m) * m


def _older_mxu():
    """True on chips whose MXU K-depth is 128 (v2-v5): keep split-K there."""
    try:
        kind = jax.devices()[0].device_kind.lower()
        return any(t in kind for t in ("v2", "v3", "v4", "v5"))
    except Exception:
        return False


def _pick_tile(hw, row_bytes, budget):
    """Largest spatial tile (multiple of 16 sublanes, no divisor requirement --
    the wrapper zero-pads HW up to a multiple of the tile) whose per-tile VMEM
    footprint, including in-kernel f32 intermediates, stays under `budget`."""
    hw_aligned = _round_up(hw, 16)
    for cand in (1024, 512, 256, 128, 64, 32, 16):
        t = min(cand, hw_aligned)
        if t * row_bytes <= budget:
            return t
    return 16


def _vmem_limit(est_bytes):
    """Always pass an explicit scoped-VMEM limit (v5e's default is only 16 MiB):
    at least 32 MiB, at most 48 MiB (v7x physical is 64 MiB per TensorCore)."""
    return int(min(max(est_bytes * 5 // 4 + (2 << 20), 32 << 20), 48 << 20))


def _const_spec(shape):
    """BlockSpec for a constant (grid-invariant) weight operand: single-buffered."""
    zeros = (0,) * len(shape)
    return pl.BlockSpec(shape, lambda b, s, t: zeros, pipeline_mode=pl.Buffered(1))


# -----------------------------------------------------------------------------
# Stage 1: per-pixel conditioning / modulation path (all matmuls fused by LHS).
#   hx = x @ [w_x_tr | w_x_tr_2],   hy = y @ [w_x_t_tr | w_x_tr_2]
#   [alpha|beta|alpha_copy|beta_copy] = [x_tr | y_tr] @ wab
#   x_new = (relu((alpha+1)*x_tr_2(y) + beta)) @ w_y_feat_fuse
#   y_new = (relu((alpha_c+1)*x_tr_2(x) + beta_c)) @ w_x_feat_fuse
# Also accumulates sum_spatial(x_new - y_new) per (batch[, core-split], channel)
# so the GAP for vx/vy is a single in-kernel reduction (vy = -vx, tanh is odd).
# Padded spatial rows are masked out of the reduction (biases would otherwise
# leak into the gate).
# -----------------------------------------------------------------------------
def stage1_kernel(x_ref, y_ref, w_in_ref, b_in_ref, wab_ref, bab_ref,
                  w_fuse_ref, b_fuse_ref, xnew_ref, ynew_ref, sdiff_ref,
                  *, compute_dtype, hw_valid, needs_mask, pack_k):
    t = pl.program_id(2)
    TILE = x_ref.shape[1]
    C = x_ref.shape[2]
    cdt = compute_dtype

    def mm(a, w):  # MXU matmul, f32 accumulation
        return jnp.dot(a.astype(cdt), w, preferred_element_type=jnp.float32)

    @pl.when(t == 0)
    def _():
        sdiff_ref[...] = jnp.zeros_like(sdiff_ref)

    if needs_mask:
        row0 = (pl.program_id(1) * pl.num_programs(2) + t) * TILE
        rows = row0 + jax.lax.broadcasted_iota(jnp.int32, (TILE, 1), 0)
        mask = (rows < hw_valid).astype(jnp.float32)
    else:
        mask = None

    x = x_ref[0]   # (TILE, C) at the input dtype; mm() casts on the fly
    y = y_ref[0]

    # Fused (TILE,C)@(C,2C): [x_tr_pre | x_tr_2(x)] from x, [x_t_tr_pre | x_tr_2(y)] from y.
    hx = mm(x, w_in_ref[0]) + b_in_ref[0:1, :]
    hy = mm(y, w_in_ref[1]) + b_in_ref[1:2, :]
    x_tr = jax.nn.relu(hx[:, :C])
    x_feat = hx[:, C:]                 # x_tr_2(x)  (no relu)
    y_tr = jax.nn.relu(hy[:, :C])
    y_feat = hy[:, C:]                 # x_tr_2(y)

    # Fused modulation heads: [alpha | beta | alpha_copy | beta_copy].
    if pack_k:
        # Fill the 256-deep MXU (v6e/v7x) with one K=2C pass.
        cond = jnp.concatenate([x_tr, y_tr], axis=1)
        mod = mm(cond, wab_ref[...]) + bab_ref[...]
    else:
        # Split-K form (v5e's MXU is 128-deep; no benefit to packing there).
        mod = mm(x_tr, wab_ref[:C, :]) + mm(y_tr, wab_ref[C:, :]) + bab_ref[...]
    alpha, beta = mod[:, :C], mod[:, C:2 * C]
    alpha_c, beta_c = mod[:, 2 * C:3 * C], mod[:, 3 * C:]

    # Phase A: y-branch -> new "x" (store + reduce immediately: ends the x_new
    # live range before the phase-B matmul chain).
    yf = jax.nn.relu((alpha + 1.0) * y_feat + beta)
    x_new = mm(yf, w_fuse_ref[0]) + b_fuse_ref[0:1, :]
    xnew_ref[0] = x_new.astype(xnew_ref.dtype)
    xs = x_new if mask is None else x_new * mask
    sdiff_ref[0] += jnp.sum(xs, axis=0, keepdims=True)

    # Phase B: x-branch -> new "y".
    xf = jax.nn.relu((alpha_c + 1.0) * x_feat + beta_c)
    y_new = mm(xf, w_fuse_ref[1]) + b_fuse_ref[1:2, :]
    ynew_ref[0] = y_new.astype(ynew_ref.dtype)
    ys = y_new if mask is None else y_new * mask
    sdiff_ref[0] -= jnp.sum(ys, axis=0, keepdims=True)


# -----------------------------------------------------------------------------
# Stage 2: GAP-gated residual mixing + four Conv(conv/BN/SiLU) blocks + cv3.
# vx = tanh(GAP(x_new - y_new)) is precomputed per batch outside the kernel.
# -----------------------------------------------------------------------------
def stage2_kernel(x_ref, y_ref, vx_ref, w3_ref, s3_ref, t3_ref,
                  wcv3_ref, scv3_ref, tcv3_ref, out_ref, *, compute_dtype, pack_k):
    C = x_ref.shape[2]
    cdt = compute_dtype

    def mm(a, w):
        return jnp.dot(a.astype(cdt), w, preferred_element_type=jnp.float32)

    def cbs(v, i):                     # Conv = 1x1 conv (no bias) + folded BN + SiLU
        h = mm(v, w3_ref[i])
        return _silu(h * s3_ref[i:i + 1, :] + t3_ref[i:i + 1, :])

    x_in = x_ref[0]                    # bf16 (or f32) straight into the MXU paths
    y_in = y_ref[0]
    vx = vx_ref[0]                     # (1, C) f32: tanh(GAP(x - y))
    # Residual arithmetic in f32 (v5e VPU has no bf16); only these need the upcast.
    x32 = x_in.astype(jnp.float32)
    y32 = y_in.astype(jnp.float32)
    x_res = x32 + vx * y32             # x + tanh(GAP(fdx)) * y
    y_res = y32 - vx * x32             # y + tanh(GAP(fdy)) * x   (vy = -vx, tanh odd)

    xo = cbs(x_in, 0) + cbs(x_res, 1)  # conv1(x) + conv2(x_res)
    yo = cbs(y_in, 2) + cbs(y_res, 3)  # conv1_t(y) + conv2_t(y_res)

    # cv3(cat(xo, yo)).
    if pack_k:
        cat = jnp.concatenate([xo, yo], axis=1)
        h = mm(cat, wcv3_ref[...])
    else:
        h = mm(xo, wcv3_ref[:C, :]) + mm(yo, wcv3_ref[C:, :])
    out_ref[0] = _silu(h * scv3_ref[...] + tcv3_ref[...]).astype(out_ref.dtype)


# -----------------------------------------------------------------------------
# Parameter preparation: lane-pad channels + fuse same-LHS weights.
# Padded channels stay exactly 0 through the whole block (zero weight rows/cols,
# zero biases/scales/shifts), so padding is numerically transparent.
# -----------------------------------------------------------------------------
def prepare_params(p, *, compute_dtype=jnp.bfloat16, pad_lanes=True):
    c1 = p["w1"].shape[1]
    c2 = p["wcv3"].shape[1]
    Cp = _round_up(c1, LANE) if pad_lanes else c1
    c2p = _round_up(c2, LANE) if pad_lanes else c2
    cdt = compute_dtype

    def pad2(w):           # (c1, c1) -> (Cp, Cp)
        return jnp.pad(w, ((0, Cp - w.shape[0]), (0, Cp - w.shape[1])))

    def pad2o(w):          # (c1, c2) -> (Cp, c2p)
        return jnp.pad(w, ((0, Cp - w.shape[0]), (0, c2p - w.shape[1])))

    def pad1(v, n=None):
        n = Cp if n is None else n
        return jnp.pad(v, (0, n - v.shape[0]))

    w1 = [pad2(p["w1"][i]) for i in range(5)]
    b1 = [pad1(p["b1"][i]) for i in range(5)]
    w2a = [pad2(p["w2"][i, :c1, :]) for i in range(4)]   # rows multiplying x_tr
    w2b = [pad2(p["w2"][i, c1:, :]) for i in range(4)]   # rows multiplying y_tr
    b2 = [pad1(p["b2"][i]) for i in range(4)]

    # w_in[0] @ x -> [x_tr_pre | x_tr_2(x)],  w_in[1] @ y -> [x_t_tr_pre | x_tr_2(y)]
    w_in = jnp.stack([jnp.concatenate([w1[0], w1[2]], axis=1),
                      jnp.concatenate([w1[1], w1[2]], axis=1)], axis=0).astype(cdt)
    b_in = jnp.stack([jnp.concatenate([b1[0], b1[2]]),
                      jnp.concatenate([b1[1], b1[2]])], axis=0)
    # [alpha | beta | alpha_copy | beta_copy] = [x_tr | y_tr] @ wab + bab
    wab = jnp.concatenate([jnp.concatenate(w2a, axis=1),
                           jnp.concatenate(w2b, axis=1)], axis=0).astype(cdt)
    bab = jnp.concatenate(b2)[None, :]
    # w_fuse[0]: y_feat_fuse (-> new x), w_fuse[1]: x_feat_fuse (-> new y)
    w_fuse = jnp.stack([w1[3], w1[4]], axis=0).astype(cdt)
    b_fuse = jnp.stack([b1[3], b1[4]], axis=0)

    w3 = jnp.stack([pad2(p["w3"][i]) for i in range(4)], axis=0).astype(cdt)
    s3 = jnp.stack([pad1(p["s3"][i]) for i in range(4)], axis=0)
    t3 = jnp.stack([pad1(p["t3"][i]) for i in range(4)], axis=0)
    wcv3 = jnp.concatenate([pad2o(p["wcv3"][:c1]), pad2o(p["wcv3"][c1:])],
                           axis=0).astype(cdt)
    scv3 = pad1(p["scv3"][0], c2p)[None, :]
    tcv3 = pad1(p["tcv3"][0], c2p)[None, :]

    return dict(w_in=w_in, b_in=b_in, wab=wab, bab=bab, w_fuse=w_fuse,
                b_fuse=b_fuse, w3=w3, s3=s3, t3=t3, wcv3=wcv3, scv3=scv3,
                tcv3=tcv3, c1=c1, c2=c2, Cp=Cp, c2p=c2p)


# -----------------------------------------------------------------------------
# Channels-last fast path: x, y are [B, HW, c1]; returns [B, HW, c2].
# -----------------------------------------------------------------------------
def c4_simple_forward_cl(x, y, params, *, compute_dtype=jnp.bfloat16,
                         interstage_dtype=jnp.bfloat16, out_dtype=None,
                         pad_lanes=True, pack_k=None):
    B, HW, c1 = x.shape
    prep = prepare_params(params, compute_dtype=compute_dtype, pad_lanes=pad_lanes)
    Cp, c2p, c2 = prep["Cp"], prep["c2p"], prep["c2"]
    out_dtype = jnp.dtype(interstage_dtype if out_dtype is None else out_dtype)

    if pack_k is None:
        # K = 2*Cp packing fills the 256-deep MXU (v6e/v7x) when Cp == 128.
        pack_k = (Cp == 128) and not _older_mxu()

    xb = x.dtype.itemsize               # inputs fed at their native dtype (no wrapper cast)
    ib = jnp.dtype(interstage_dtype).itemsize
    cb = jnp.dtype(compute_dtype).itemsize
    ob = out_dtype.itemsize

    def wbytes(names):
        return sum(int(prep[n].size) * prep[n].dtype.itemsize for n in names)

    wb1 = wbytes(("w_in", "b_in", "wab", "bab", "w_fuse", "b_fuse"))
    wb2 = wbytes(("w3", "s3", "t3", "wcv3", "scv3", "tcv3"))

    # Per-spatial-row VMEM bytes: double-buffered streamed blocks + in-kernel
    # f32 intermediates (hx/hy/mod/feats/x_new/y_new ~ 16*Cp f32) + K-pack concat.
    row1 = 4 * Cp * xb + 4 * Cp * ib + 64 * Cp + (2 * Cp * cb if pack_k else 0)
    row2 = (4 * Cp * ib + 2 * c2p * ob + 40 * Cp + 12 * c2p
            + (2 * Cp * cb if pack_k else 0))

    target = 28 * 1024 * 1024           # safe activation+weight target across gens
    budget = max(target - max(wb1, wb2), 4 * 1024 * 1024)
    tile = _pick_tile(HW, max(row1, row2), budget)

    nT0 = -(-HW // tile)
    # v7x: at B == 1, shard the spatial axis across the two TensorCores.
    S = 2 if (B == 1 and nT0 >= 2) else 1
    HW_pad = _round_up(HW, S * tile)
    nTper = HW_pad // (S * tile)
    needs_mask = HW_pad != HW

    # Channel/spatial zero-padding only; no dtype cast (kernel casts on the fly,
    # hidden under the MXU-bound stage-1 compute).
    if Cp != c1 or HW_pad != HW:
        x = jnp.pad(x, ((0, 0), (0, HW_pad - HW), (0, Cp - c1)))
        y = jnp.pad(y, ((0, 0), (0, HW_pad - HW), (0, Cp - c1)))

    cost1 = pl.CostEstimate(
        flops=int(28 * B * HW_pad * Cp * Cp),
        transcendentals=0,
        bytes_accessed=int(B * HW_pad * Cp * (2 * xb + 2 * ib) + wb1
                           + B * S * Cp * _F32))
    cost2 = pl.CostEstimate(
        flops=int(B * HW_pad * (8 * Cp * Cp + 4 * Cp * c2p)),
        transcendentals=int(B * HW_pad * (4 * Cp + c2p)),
        bytes_accessed=int(B * HW_pad * (2 * Cp * ib + c2p * ob) + wb2
                           + B * Cp * _F32))

    stage1 = pl.pallas_call(
        functools.partial(stage1_kernel, compute_dtype=compute_dtype,
                          hw_valid=HW, needs_mask=needs_mask, pack_k=pack_k),
        out_shape=(
            jax.ShapeDtypeStruct((B, HW_pad, Cp), interstage_dtype),
            jax.ShapeDtypeStruct((B, HW_pad, Cp), interstage_dtype),
            jax.ShapeDtypeStruct((B * S, 1, Cp), jnp.float32),
        ),
        grid=(B, S, nTper),
        in_specs=[
            pl.BlockSpec((1, tile, Cp), lambda b, s, t: (b, s * nTper + t, 0)),
            pl.BlockSpec((1, tile, Cp), lambda b, s, t: (b, s * nTper + t, 0)),
            _const_spec((2, Cp, 2 * Cp)),
            _const_spec((2, 2 * Cp)),
            _const_spec((2 * Cp, 4 * Cp)),
            _const_spec((1, 4 * Cp)),
            _const_spec((2, Cp, Cp)),
            _const_spec((2, Cp)),
        ],
        out_specs=(
            pl.BlockSpec((1, tile, Cp), lambda b, s, t: (b, s * nTper + t, 0)),
            pl.BlockSpec((1, tile, Cp), lambda b, s, t: (b, s * nTper + t, 0)),
            pl.BlockSpec((1, 1, Cp), lambda b, s, t: (b * S + s, 0, 0)),
        ),
        compiler_params=pltpu.CompilerParams(
            dimension_semantics=("parallel", "parallel", "arbitrary"),
            vmem_limit_bytes=_vmem_limit(tile * row1 + wb1)),
        cost_estimate=cost1,
    )
    x_new, y_new, sdiff = stage1(x, y, prep["w_in"], prep["b_in"], prep["wab"],
                                 prep["bab"], prep["w_fuse"], prep["b_fuse"])

    # GAP gate hoisted out of the per-tile path: sum the per-core partials and
    # apply one tiny tanh.  (sdiff is accumulated from f32 x_new/y_new while
    # stage 2 consumes their bf16 HBM copies -- intentional, closer to the ref.)
    sdiff = sdiff.reshape(B, S, Cp).sum(axis=1)
    vx = jnp.tanh(sdiff * (1.0 / HW)).reshape(B, 1, Cp)

    # TODO(synk): fuse stage1+stage2 into one pallas_call (x_new/y_new resident
    # in VMEM across two in-kernel passes over t) when 2*HW_pad*Cp*itemsize +
    # weights fit the per-core VMEM budget.
    stage2 = pl.pallas_call(
        functools.partial(stage2_kernel, compute_dtype=compute_dtype,
                          pack_k=pack_k),
        out_shape=jax.ShapeDtypeStruct((B, HW_pad, c2p), out_dtype),
        grid=(B, S, nTper),
        in_specs=[
            pl.BlockSpec((1, tile, Cp), lambda b, s, t: (b, s * nTper + t, 0)),
            pl.BlockSpec((1, tile, Cp), lambda b, s, t: (b, s * nTper + t, 0)),
            pl.BlockSpec((1, 1, Cp), lambda b, s, t: (b, 0, 0)),
            _const_spec((4, Cp, Cp)),
            _const_spec((4, Cp)),
            _const_spec((4, Cp)),
            _const_spec((2 * Cp, c2p)),
            _const_spec((1, c2p)),
            _const_spec((1, c2p)),
        ],
        out_specs=pl.BlockSpec((1, tile, c2p),
                               lambda b, s, t: (b, s * nTper + t, 0)),
        compiler_params=pltpu.CompilerParams(
            dimension_semantics=("parallel", "parallel", "parallel"),
            vmem_limit_bytes=_vmem_limit(tile * row2 + wb2)),
        cost_estimate=cost2,
    )
    out = stage2(x_new, y_new, vx, prep["w3"], prep["s3"], prep["t3"],
                 prep["wcv3"], prep["scv3"], prep["tcv3"])

    if HW_pad != HW or c2p != c2:
        out = out[:, :HW, :c2]
    return out


def c4_simple_forward(x_nchw, y_nchw, params, **kwargs):
    """NCHW adapter around the channels-last fast path.
    TODO(synk): keep the surrounding model channels-last end to end so these
    transposes (a full HBM round trip each) disappear."""
    B, c1, H, W = x_nchw.shape
    x = jnp.transpose(x_nchw, (0, 2, 3, 1)).reshape(B, H * W, c1)
    y = jnp.transpose(y_nchw, (0, 2, 3, 1)).reshape(B, H * W, c1)
    out = c4_simple_forward_cl(x, y, params, **kwargs)
    c2 = out.shape[-1]
    return jnp.transpose(out.reshape(B, H, W, c2), (0, 3, 1, 2))


# -----------------------------------------------------------------------------
# Deterministic parameter init (weights stored transposed: [Cin, Cout]).
# -----------------------------------------------------------------------------
def init_params(key, c1, c2):
    ks = jax.random.split(key, 10)

    def w(k, shape):
        return 0.1 * jax.random.normal(k, shape, jnp.float32)

    eps = 1e-5
    # w1 order: x_tr, x_t_tr, x_tr_2, y_feat_fuse, x_feat_fuse  (c1 -> c1, with bias)
    w1 = w(ks[0], (5, c1, c1))
    b1 = w(ks[1], (5, c1))
    # w2 order: tr_alpha, tr_beta, tr_alpha_copy, tr_beta_copy  (2*c1 -> c1, with bias)
    w2 = w(ks[2], (4, 2 * c1, c1))
    b2 = w(ks[3], (4, c1))
    # w3 order: conv1, conv2, conv1_t, conv2_t  (Conv: 1x1 no bias + BN + SiLU)
    w3 = w(ks[4], (4, c1, c1))
    wcv3 = w(ks[5], (2 * c1, c2))
    # BN folded at eval: scale = gamma / sqrt(running_var + eps); shift = beta - rm*scale
    gamma3 = 1.0 + 0.1 * jax.random.normal(ks[6], (4, c1), jnp.float32)
    beta3 = 0.1 * jax.random.normal(ks[7], (4, c1), jnp.float32)
    s3 = gamma3 / jnp.sqrt(1.0 + eps)
    t3 = beta3
    gcv3 = 1.0 + 0.1 * jax.random.normal(ks[8], (1, c2), jnp.float32)
    bcv3 = 0.1 * jax.random.normal(ks[9], (1, c2), jnp.float32)
    scv3 = gcv3 / jnp.sqrt(1.0 + eps)
    tcv3 = bcv3
    return dict(w1=w1, b1=b1, w2=w2, b2=b2, w3=w3, s3=s3, t3=t3,
                wcv3=wcv3, scv3=scv3, tcv3=tcv3)


# -----------------------------------------------------------------------------
# Plain-JAX reference (same math, channels-last, f32) for a sanity check.
# -----------------------------------------------------------------------------
def reference(x_nchw, y_nchw, p):
    x = jnp.transpose(x_nchw, (0, 2, 3, 1))  # B,H,W,C
    y = jnp.transpose(y_nchw, (0, 2, 3, 1))
    relu = jax.nn.relu

    def lin1(v, i):
        return v @ p["w1"][i] + p["b1"][i]

    def lin2(v, i):
        return v @ p["w2"][i] + p["b2"][i]

    x_tr = relu(lin1(x, 0))
    y_tr = relu(lin1(y, 1))
    cond = jnp.concatenate([x_tr, y_tr], axis=-1)
    alpha, beta = lin2(cond, 0), lin2(cond, 1)
    alpha_c, beta_c = lin2(cond, 2), lin2(cond, 3)
    x_new = lin1(relu((alpha + 1.0) * lin1(y, 2) + beta), 3)
    y_new = lin1(relu((alpha_c + 1.0) * lin1(x, 2) + beta_c), 4)
    x, y = x_new, y_new
    vx = jnp.tanh(jnp.mean(x - y, axis=(1, 2), keepdims=True))
    vy = jnp.tanh(jnp.mean(y - x, axis=(1, 2), keepdims=True))
    x_res = x + vx * y
    y_res = y + vy * x

    def cbs(v, i):
        return _silu((v @ p["w3"][i]) * p["s3"][i] + p["t3"][i])

    xo = cbs(x, 0) + cbs(x_res, 1)
    yo = cbs(y, 2) + cbs(y_res, 3)
    cat = jnp.concatenate([xo, yo], axis=-1)
    out = _silu((cat @ p["wcv3"]) * p["scv3"][0] + p["tcv3"][0])
    return jnp.transpose(out, (0, 3, 1, 2))


if __name__ == "__main__":
    key = jax.random.PRNGKey(0)
    kx, ky, kp = jax.random.split(key, 3)
    B, c1, c2, H, W = 2, 4, 8, 16, 16
    x = jax.random.normal(kx, (B, c1, H, W), jnp.float32)
    y = jax.random.normal(ky, (B, c1, H, W), jnp.float32)
    params = init_params(kp, c1, c2)

    # Fast path: bf16 MXU operands + bf16 inter-stage and output HBM traffic,
    # f32 accumulation / elementwise epilogue.
    out_fast = jax.block_until_ready(c4_simple_forward(x, y, params))
    # f32 path for a tight numerical check against the plain-JAX reference.
    out_f32 = jax.block_until_ready(c4_simple_forward(
        x, y, params, compute_dtype=jnp.float32, interstage_dtype=jnp.float32,
        out_dtype=jnp.float32))
    ref = jax.block_until_ready(reference(x, y, params))

    assert out_fast.shape == (B, c2, H, W), out_fast.shape
    err_f32 = float(jnp.max(jnp.abs(out_f32 - ref)))
    err_bf16 = float(jnp.max(jnp.abs(out_fast.astype(jnp.float32) - ref)))
    assert err_f32 < 2e-3, f"f32 path max abs err vs reference: {err_f32}"
    assert err_bf16 < 8e-2, f"bf16 path max abs err vs reference: {err_bf16}"

    # Exercise spatial padding, the masked GAP reduction, and the 2-way spatial
    # split used for B == 1 (HW=1600 -> tile 1024 -> HW_pad 2048, S=2).
    B2, H2, W2 = 1, 40, 40
    x2 = jax.random.normal(kx, (B2, c1, H2, W2), jnp.float32)
    y2 = jax.random.normal(ky, (B2, c1, H2, W2), jnp.float32)
    out2 = jax.block_until_ready(c4_simple_forward(
        x2, y2, params, compute_dtype=jnp.float32, interstage_dtype=jnp.float32,
        out_dtype=jnp.float32))
    ref2 = jax.block_until_ready(reference(x2, y2, params))
    err2 = float(jnp.max(jnp.abs(out2 - ref2)))
    assert out2.shape == (B2, c2, H2, W2), out2.shape
    assert err2 < 2e-3, f"padded/split path max abs err vs reference: {err2}"

    print("KERNEL_OK")
</pallas_src>

<mosaic_0001>
module attributes {stable_mosaic.version = 11 : i64} {
  func.func @stage1_kernel(%arg0: i32, %arg1: i32, %arg2: i32, %arg3: memref<1x256x128xf32, #tpu.memory_space<vmem>>, %arg4: memref<1x256x128xf32, #tpu.memory_space<vmem>>, %arg5: memref<2x128x256xbf16, #tpu.memory_space<vmem>>, %arg6: memref<2x256xf32, #tpu.memory_space<vmem>>, %arg7: memref<256x512xbf16, #tpu.memory_space<vmem>>, %arg8: memref<1x512xf32, #tpu.memory_space<vmem>>, %arg9: memref<2x128x128xbf16, #tpu.memory_space<vmem>>, %arg10: memref<2x128xf32, #tpu.memory_space<vmem>>, %arg11: memref<1x256x128xbf16, #tpu.memory_space<vmem>>, %arg12: memref<1x256x128xbf16, #tpu.memory_space<vmem>>, %arg13: memref<1x1x128xf32, #tpu.memory_space<vmem>>) attributes {dimension_semantics = [#tpu.dimension_semantics<parallel>, #tpu.dimension_semantics<parallel>, #tpu.dimension_semantics<arbitrary>], iteration_bounds = array<i64: 2, 1, 1>, scalar_prefetch = 0 : i64, scratch_operands = 0 : i64, tpu.core_type = #tpu.core_type<tc>, window_params = [{transform_indices = @transform_0, window_bounds = array<i64: 1, 256, 128>}, {transform_indices = @transform_1, window_bounds = array<i64: 1, 256, 128>}, {pipeline_mode = #tpu.pipeline_mode<synchronous>, transform_indices = @transform_2, window_bounds = array<i64: 2, 128, 256>}, {pipeline_mode = #tpu.pipeline_mode<synchronous>, transform_indices = @transform_3, window_bounds = array<i64: 2, 256>}, {pipeline_mode = #tpu.pipeline_mode<synchronous>, transform_indices = @transform_4, window_bounds = array<i64: 256, 512>}, {pipeline_mode = #tpu.pipeline_mode<synchronous>, transform_indices = @transform_5, window_bounds = array<i64: 1, 512>}, {pipeline_mode = #tpu.pipeline_mode<synchronous>, transform_indices = @transform_6, window_bounds = array<i64: 2, 128, 128>}, {pipeline_mode = #tpu.pipeline_mode<synchronous>, transform_indices = @transform_7, window_bounds = array<i64: 2, 128>}, {transform_indices = @transform_8, window_bounds = array<i64: 1, 256, 128>}, {transform_indices = @transform_9, window_bounds = array<i64: 1, 256, 128>}, {transform_indices = @transform_10, window_bounds = array<i64: 1, 1, 128>}]} {
    %c0_i32 = arith.constant 0 : i32
    %0 = arith.cmpi eq, %arg2, %c0_i32 : i32
    %1 = arith.extui %0 : i1 to i32
    %c0_i32_0 = arith.constant 0 : i32
    %2 = arith.cmpi ne, %1, %c0_i32_0 : i32
    scf.if %2 {
      %cst_59 = arith.constant 0.000000e+00 : f32
      %90 = vector.broadcast %cst_59 : f32 to vector<1x1x128xf32>
      %c0_60 = arith.constant 0 : index
      %c0_61 = arith.constant 0 : index
      %c0_62 = arith.constant 0 : index
      %91 = vector.load %arg13[%c0_60, %c0_61, %c0_62] : memref<1x1x128xf32, #tpu.memory_space<vmem>>, vector<1x1x128xf32>
      tpu.vector_store %arg13[%c0_60, %c0_61, %c0_62], %90 {strides = array<i32>} : memref<1x1x128xf32, #tpu.memory_space<vmem>>, vector<1x1x128xf32>,
    } else {
    }
    %c0 = arith.constant 0 : index
    %c0_1 = arith.constant 0 : index
    %c0_2 = arith.constant 0 : index
    %3 = vector.load %arg3[%c0, %c0_1, %c0_2] : memref<1x256x128xf32, #tpu.memory_space<vmem>>, vector<1x256x128xf32>
    %4 = vector.shape_cast %3 : vector<1x256x128xf32> to vector<256x128xf32>
    %c0_3 = arith.constant 0 : index
    %c0_4 = arith.constant 0 : index
    %c0_5 = arith.constant 0 : index
    %5 = vector.load %arg4[%c0_3, %c0_4, %c0_5] : memref<1x256x128xf32, #tpu.memory_space<vmem>>, vector<1x256x128xf32>
    %6 = vector.shape_cast %5 : vector<1x256x128xf32> to vector<256x128xf32>
    %c0_6 = arith.constant 0 : index
    %c0_7 = arith.constant 0 : index
    %c0_8 = arith.constant 0 : index
    %7 = vector.load %arg5[%c0_6, %c0_7, %c0_8] : memref<2x128x256xbf16, #tpu.memory_space<vmem>>, vector<1x128x256xbf16>
    %8 = vector.shape_cast %7 : vector<1x128x256xbf16> to vector<128x256xbf16>
    %9 = arith.truncf %4 : vector<256x128xf32> to vector<256x128xbf16>
    %cst = arith.constant dense<0.000000e+00> : vector<256x256xf32>
    %10 = tpu.matmul %9, %8, %cst {dimension_numbers = #tpu.dot_dimension_numbers<[1], [0], [0], [1], [0, 0, 1, 1], [], []>} : vector<256x128xbf16>, vector<128x256xbf16>, vector<256x256xf32> -> vector<256x256xf32>
    %c0_9 = arith.constant 0 : index
    %c0_10 = arith.constant 0 : index
    %11 = vector.load %arg6[%c0_9, %c0_10] : memref<2x256xf32, #tpu.memory_space<vmem>>, vector<1x256xf32>
    %12 = vector.broadcast %11 : vector<1x256xf32> to vector<256x256xf32>
    %13 = arith.addf %10, %12 : vector<256x256xf32>
    %c1 = arith.constant 1 : index
    %c0_11 = arith.constant 0 : index
    %c0_12 = arith.constant 0 : index
    %14 = vector.load %arg5[%c1, %c0_11, %c0_12] : memref<2x128x256xbf16, #tpu.memory_space<vmem>>, vector<1x128x256xbf16>
    %15 = vector.shape_cast %14 : vector<1x128x256xbf16> to vector<128x256xbf16>
    %16 = arith.truncf %6 : vector<256x128xf32> to vector<256x128xbf16>
    %cst_13 = arith.constant dense<0.000000e+00> : vector<256x256xf32>
    %17 = tpu.matmul %16, %15, %cst_13 {dimension_numbers = #tpu.dot_dimension_numbers<[1], [0], [0], [1], [0, 0, 1, 1], [], []>} : vector<256x128xbf16>, vector<128x256xbf16>, vector<256x256xf32> -> vector<256x256xf32>
    %c1_14 = arith.constant 1 : index
    %c0_15 = arith.constant 0 : index
    %18 = vector.load %arg6[%c1_14, %c0_15] : memref<2x256xf32, #tpu.memory_space<vmem>>, vector<1x256xf32>
    %19 = vector.broadcast %18 : vector<1x256xf32> to vector<256x256xf32>
    %20 = arith.addf %17, %19 : vector<256x256xf32>
    %21 = vector.extract_strided_slice %13 {offsets = [0, 0], sizes = [256, 128], strides = [1, 1]} : vector<256x256xf32> to vector<256x128xf32>
    %cst_16 = arith.constant 0.000000e+00 : f32
    %22 = vector.broadcast %cst_16 : f32 to vector<256x128xf32>
    %23 = arith.maximumf %21, %22 : vector<256x128xf32>
    %24 = vector.extract_strided_slice %13 {offsets = [0, 128], sizes = [256, 128], strides = [1, 1]} : vector<256x256xf32> to vector<256x128xf32>
    %25 = vector.extract_strided_slice %20 {offsets = [0, 0], sizes = [256, 128], strides = [1, 1]} : vector<256x256xf32> to vector<256x128xf32>
    %cst_17 = arith.constant 0.000000e+00 : f32
    %26 = vector.broadcast %cst_17 : f32 to vector<256x128xf32>
    %27 = arith.maximumf %25, %26 : vector<256x128xf32>
    %28 = vector.extract_strided_slice %20 {offsets = [0, 128], sizes = [256, 128], strides = [1, 1]} : vector<256x256xf32> to vector<256x128xf32>
    %29 = tpu.concatenate %23, %27 in 1 : vector<256x128xf32>, vector<256x128xf32> -> vector<256x256xf32>
    %c0_18 = arith.constant 0 : index
    %c0_19 = arith.constant 0 : index
    %30 = vector.load %arg7[%c0_18, %c0_19] : memref<256x512xbf16, #tpu.memory_space<vmem>>, vector<256x512xbf16>
    %31 = arith.truncf %29 : vector<256x256xf32> to vector<256x256xbf16>
    %cst_20 = arith.constant dense<0.000000e+00> : vector<256x512xf32>
    %32 = tpu.matmul %31, %30, %cst_20 {dimension_numbers = #tpu.dot_dimension_numbers<[1], [0], [0], [1], [0, 0, 1, 1], [], []>} : vector<256x256xbf16>, vector<256x512xbf16>, vector<256x512xf32> -> vector<256x512xf32>
    %c0_21 = arith.constant 0 : index
    %c0_22 = arith.constant 0 : index
    %33 = vector.load %arg8[%c0_21, %c0_22] : memref<1x512xf32, #tpu.memory_space<vmem>>, vector<1x512xf32>
    %34 = vector.broadcast %33 : vector<1x512xf32> to vector<256x512xf32>
    %35 = arith.addf %32, %34 : vector<256x512xf32>
    %36 = vector.extract_strided_slice %35 {offsets = [0, 0], sizes = [256, 128], strides = [1, 1]} : vector<256x512xf32> to vector<256x128xf32>
    %37 = vector.extract_strided_slice %35 {offsets = [0, 128], sizes = [256, 128], strides = [1, 1]} : vector<256x512xf32> to vector<256x128xf32>
    %38 = vector.extract_strided_slice %35 {offsets = [0, 256], sizes = [256, 128], strides = [1, 1]} : vector<256x512xf32> to vector<256x128xf32>
    %39 = vector.extract_strided_slice %35 {offsets = [0, 384], sizes = [256, 128], strides = [1, 1]} : vector<256x512xf32> to vector<256x128xf32>
    %cst_23 = arith.constant 1.000000e+00 : f32
    %40 = vector.broadcast %cst_23 : f32 to vector<256x128xf32>
    %41 = arith.addf %36, %40 : vector<256x128xf32>
    %42 = arith.mulf %41, %28 : vector<256x128xf32>
    %43 = arith.addf %42, %37 : vector<256x128xf32>
    %cst_24 = arith.constant 0.000000e+00 : f32
    %44 = vector.broadcast %cst_24 : f32 to vector<256x128xf32>
    %45 = arith.maximumf %43, %44 : vector<256x128xf32>
    %c0_25 = arith.constant 0 : index
    %c0_26 = arith.constant 0 : index
    %c0_27 = arith.constant 0 : index
    %46 = vector.load %arg9[%c0_25, %c0_26, %c0_27] : memref<2x128x128xbf16, #tpu.memory_space<vmem>>, vector<1x128x128xbf16>
    %47 = vector.shape_cast %46 : vector<1x128x128xbf16> to vector<128x128xbf16>
    %48 = arith.truncf %45 : vector<256x128xf32> to vector<256x128xbf16>
    %cst_28 = arith.constant dense<0.000000e+00> : vector<256x128xf32>
    %49 = tpu.matmul %48, %47, %cst_28 {dimension_numbers = #tpu.dot_dimension_numbers<[1], [0], [0], [1], [0, 0, 1, 1], [], []>} : vector<256x128xbf16>, vector<128x128xbf16>, vector<256x128xf32> -> vector<256x128xf32>
    %c0_29 = arith.constant 0 : index
    %c0_30 = arith.constant 0 : index
    %50 = vector.load %arg10[%c0_29, %c0_30] : memref<2x128xf32, #tpu.memory_space<vmem>>, vector<1x128xf32>
    %51 = vector.broadcast %50 : vector<1x128xf32> to vector<256x128xf32>
    %52 = arith.addf %49, %51 : vector<256x128xf32>
    %53 = arith.truncf %52 : vector<256x128xf32> to vector<256x128xbf16>
    %c0_31 = arith.constant 0 : index
    %c0_32 = arith.constant 0 : index
    %c0_33 = arith.constant 0 : index
    %54 = vector.load %arg11[%c0_31, %c0_32, %c0_33] : memref<1x256x128xbf16, #tpu.memory_space<vmem>>, vector<1x256x128xbf16>
    %55 = vector.shape_cast %54 : vector<1x256x128xbf16> to vector<256x128xbf16>
    %56 = vector.shape_cast %53 : vector<256x128xbf16> to vector<1x256x128xbf16>
    tpu.vector_store %arg11[%c0_31, %c0_32, %c0_33], %56 {strides = array<i32>} : memref<1x256x128xbf16, #tpu.memory_space<vmem>>, vector<1x256x128xbf16>,
    %c0_34 = arith.constant 0 : index
    %c0_35 = arith.constant 0 : index
    %c0_36 = arith.constant 0 : index
    %57 = vector.load %arg13[%c0_34, %c0_35, %c0_36] : memref<1x1x128xf32, #tpu.memory_space<vmem>>, vector<1x1x128xf32>
    %58 = vector.shape_cast %57 : vector<1x1x128xf32> to vector<1x128xf32>
    %cst_37 = arith.constant dense<0.000000e+00> : vector<128xf32>
    %59 = vector.multi_reduction <add>, %52, %cst_37 [0] : vector<256x128xf32> to vector<128xf32>
    %60 = vector.shape_cast %59 : vector<128xf32> to vector<1x128xf32>
    %61 = arith.addf %58, %60 : vector<1x128xf32>
    %c0_38 = arith.constant 0 : index
    %c0_39 = arith.constant 0 : index
    %c0_40 = arith.constant 0 : index
    %62 = vector.load %arg13[%c0_38, %c0_39, %c0_40] : memref<1x1x128xf32, #tpu.memory_space<vmem>>, vector<1x1x128xf32>
    %63 = vector.shape_cast %62 : vector<1x1x128xf32> to vector<1x128xf32>
    %64 = vector.shape_cast %61 : vector<1x128xf32> to vector<1x1x128xf32>
    tpu.vector_store %arg13[%c0_38, %c0_39, %c0_40], %64 {strides = array<i32>} : memref<1x1x128xf32, #tpu.memory_space<vmem>>, vector<1x1x128xf32>,
    %cst_41 = arith.constant 1.000000e+00 : f32
    %65 = vector.broadcast %cst_41 : f32 to vector<256x128xf32>
    %66 = arith.addf %38, %65 : vector<256x128xf32>
    %67 = arith.mulf %66, %24 : vector<256x128xf32>
    %68 = arith.addf %67, %39 : vector<256x128xf32>
    %cst_42 = arith.constant 0.000000e+00 : f32
    %69 = vector.broadcast %cst_42 : f32 to vector<256x128xf32>
    %70 = arith.maximumf %68, %69 : vector<256x128xf32>
    %c1_43 = arith.constant 1 : index
    %c0_44 = arith.constant 0 : index
    %c0_45 = arith.constant 0 : index
    %71 = vector.load %arg9[%c1_43, %c0_44, %c0_45] : memref<2x128x128xbf16, #tpu.memory_space<vmem>>, vector<1x128x128xbf16>
    %72 = vector.shape_cast %71 : vector<1x128x128xbf16> to vector<128x128xbf16>
    %73 = arith.truncf %70 : vector<256x128xf32> to vector<256x128xbf16>
    %cst_46 = arith.constant dense<0.000000e+00> : vector<256x128xf32>
    %74 = tpu.matmul %73, %72, %cst_46 {dimension_numbers = #tpu.dot_dimension_numbers<[1], [0], [0], [1], [0, 0, 1, 1], [], []>} : vector<256x128xbf16>, vector<128x128xbf16>, vector<256x128xf32> -> vector<256x128xf32>
    %c1_47 = arith.constant 1 : index
    %c0_48 = arith.constant 0 : index
    %75 = vector.load %arg10[%c1_47, %c0_48] : memref<2x128xf32, #tpu.memory_space<vmem>>, vector<1x128xf32>
    %76 = vector.broadcast %75 : vector<1x128xf32> to vector<256x128xf32>
    %77 = arith.addf %74, %76 : vector<256x128xf32>
    %78 = arith.truncf %77 : vector<256x128xf32> to vector<256x128xbf16>
    %c0_49 = arith.constant 0 : index
    %c0_50 = arith.constant 0 : index
    %c0_51 = arith.constant 0 : index
    %79 = vector.load %arg12[%c0_49, %c0_50, %c0_51] : memref<1x256x128xbf16, #tpu.memory_space<vmem>>, vector<1x256x128xbf16>
    %80 = vector.shape_cast %79 : vector<1x256x128xbf16> to vector<256x128xbf16>
    %81 = vector.shape_cast %78 : vector<256x128xbf16> to vector<1x256x128xbf16>
    tpu.vector_store %arg12[%c0_49, %c0_50, %c0_51], %81 {strides = array<i32>} : memref<1x256x128xbf16, #tpu.memory_space<vmem>>, vector<1x256x128xbf16>,
    %c0_52 = arith.constant 0 : index
    %c0_53 = arith.constant 0 : index
    %c0_54 = arith.constant 0 : index
    %82 = vector.load %arg13[%c0_52, %c0_53, %c0_54] : memref<1x1x128xf32, #tpu.memory_space<vmem>>, vector<1x1x128xf32>
    %83 = vector.shape_cast %82 : vector<1x1x128xf32> to vector<1x128xf32>
    %cst_55 = arith.constant dense<0.000000e+00> : vector<128xf32>
    %84 = vector.multi_reduction <add>, %77, %cst_55 [0] : vector<256x128xf32> to vector<128xf32>
    %85 = vector.shape_cast %84 : vector<128xf32> to vector<1x128xf32>
    %86 = arith.subf %83, %85 : vector<1x128xf32>
    %c0_56 = arith.constant 0 : index
    %c0_57 = arith.constant 0 : index
    %c0_58 = arith.constant 0 : index
    %87 = vector.load %arg13[%c0_56, %c0_57, %c0_58] : memref<1x1x128xf32, #tpu.memory_space<vmem>>, vector<1x1x128xf32>
    %88 = vector.shape_cast %87 : vector<1x1x128xf32> to vector<1x128xf32>
    %89 = vector.shape_cast %86 : vector<1x128xf32> to vector<1x1x128xf32>
    tpu.vector_store %arg13[%c0_56, %c0_57, %c0_58], %89 {strides = array<i32>} : memref<1x1x128xf32, #tpu.memory_space<vmem>>, vector<1x1x128xf32>,
    return
  }
  func.func @transform_0(%arg0: i32, %arg1: i32, %arg2: i32) -> (i32, i32, i32) {
    %c1_i32 = arith.constant 1 : i32
    %0 = arith.muli %arg1, %c1_i32 : i32
    %1 = arith.addi %0, %arg2 : i32
    %c0_i32 = arith.constant 0 : i32
    %c0_i32_0 = arith.constant 0 : i32
    return %arg0, %1, %c0_i32 : i32, i32, i32
  }
  func.func @transform_1(%arg0: i32, %arg1: i32, %arg2: i32) -> (i32, i32, i32) {
    %c1_i32 = arith.constant 1 : i32
    %0 = arith.muli %arg1, %c1_i32 : i32
    %1 = arith.addi %0, %arg2 : i32
    %c0_i32 = arith.constant 0 : i32
    %c0_i32_0 = arith.constant 0 : i32
    return %arg0, %1, %c0_i32 : i32, i32, i32
  }
  func.func @transform_2(%arg0: i32, %arg1: i32, %arg2: i32) -> (i32, i32, i32) {
    %c0_i32 = arith.constant 0 : i32
    %c0_i32_0 = arith.constant 0 : i32
    %c0_i32_1 = arith.constant 0 : i32
    %c0_i32_2 = arith.constant 0 : i32
    return %c0_i32, %c0_i32_0, %c0_i32_1 : i32, i32, i32
  }
  func.func @transform_3(%arg0: i32, %arg1: i32, %arg2: i32) -> (i32, i32) {
    %c0_i32 = arith.constant 0 : i32
    %c0_i32_0 = arith.constant 0 : i32
    %c0_i32_1 = arith.constant 0 : i32
    return %c0_i32, %c0_i32_0 : i32, i32
  }
  func.func @transform_4(%arg0: i32, %arg1: i32, %arg2: i32) -> (i32, i32) {
    %c0_i32 = arith.constant 0 : i32
    %c0_i32_0 = arith.constant 0 : i32
    %c0_i32_1 = arith.constant 0 : i32
    return %c0_i32, %c0_i32_0 : i32, i32
  }
  func.func @transform_5(%arg0: i32, %arg1: i32, %arg2: i32) -> (i32, i32) {
    %c0_i32 = arith.constant 0 : i32
    %c0_i32_0 = arith.constant 0 : i32
    %c0_i32_1 = arith.constant 0 : i32
    return %c0_i32, %c0_i32_0 : i32, i32
  }
  func.func @transform_6(%arg0: i32, %arg1: i32, %arg2: i32) -> (i32, i32, i32) {
    %c0_i32 = arith.constant 0 : i32
    %c0_i32_0 = arith.constant 0 : i32
    %c0_i32_1 = arith.constant 0 : i32
    %c0_i32_2 = arith.constant 0 : i32
    return %c0_i32, %c0_i32_0, %c0_i32_1 : i32, i32, i32
  }
  func.func @transform_7(%arg0: i32, %arg1: i32, %arg2: i32) -> (i32, i32) {
    %c0_i32 = arith.constant 0 : i32
    %c0_i32_0 = arith.constant 0 : i32
    %c0_i32_1 = arith.constant 0 : i32
    return %c0_i32, %c0_i32_0 : i32, i32
  }
  func.func @transform_8(%arg0: i32, %arg1: i32, %arg2: i32) -> (i32, i32, i32) {
    %c1_i32 = arith.constant 1 : i32
    %0 = arith.muli %arg1, %c1_i32 : i32
    %1 = arith.addi %0, %arg2 : i32
    %c0_i32 = arith.constant 0 : i32
    %c0_i32_0 = arith.constant 0 : i32
    return %arg0, %1, %c0_i32 : i32, i32, i32
  }
  func.func @transform_9(%arg0: i32, %arg1: i32, %arg2: i32) -> (i32, i32, i32) {
    %c1_i32 = arith.constant 1 : i32
    %0 = arith.muli %arg1, %c1_i32 : i32
    %1 = arith.addi %0, %arg2 : i32
    %c0_i32 = arith.constant 0 : i32
    %c0_i32_0 = arith.constant 0 : i32
    return %arg0, %1, %c0_i32 : i32, i32, i32
  }
  func.func @transform_10(%arg0: i32, %arg1: i32, %arg2: i32) -> (i32, i32, i32) {
    %c1_i32 = arith.constant 1 : i32
    %0 = arith.muli %arg0, %c1_i32 : i32
    %1 = arith.addi %0, %arg1 : i32
    %c0_i32 = arith.constant 0 : i32
    %c0_i32_0 = arith.constant 0 : i32
    %c0_i32_1 = arith.constant 0 : i32
    return %1, %c0_i32, %c0_i32_0 : i32, i32, i32
  }
}

</mosaic_0001>

<llo_original>
// kernel: tpu_custom_call.1
$region0: #{tpu_custom_call.1}
  #allocation0 [shape = 'u32[]', space=smem, size = 0x4, offset = 0x4, fixed_abs, tag = 'smem constant byte address 0x4 - core index']
  #allocation1 [shape = 'u32[72,128]{1,0:T(1,128)}', space=vmem, size = 0x9000, scoped, tag = 'internal scratch']
  %s0 = inlined_call_operand.hbm [shape: f32[2,256,128], index: 0, kind: input, shape index: {}]
  %s1 = inlined_call_operand.hbm [shape: f32[2,256,128], index: 1, kind: input, shape index: {}]
  %s2 = inlined_call_operand.hbm [shape: bf16[2,128,256], index: 2, kind: input, shape index: {}]
  %s3 = inlined_call_operand.hbm [shape: f32[2,256], index: 3, kind: input, shape index: {}]
  %s4 = inlined_call_operand.hbm [shape: bf16[256,512], index: 4, kind: input, shape index: {}]
  %s5 = inlined_call_operand.vmem [shape: f32[1,512], index: 5, kind: input, shape index: {}]
  %s6 = inlined_call_operand.hbm [shape: bf16[2,128,128], index: 6, kind: input, shape index: {}]
  %s7 = inlined_call_operand.vmem [shape: f32[2,128], index: 7, kind: input, shape index: {}]
  %s8 = inlined_call_operand.hbm [shape: bf16[2,256,128], index: 8, kind: output, shape index: {0}]
  %s9 = inlined_call_operand.hbm [shape: bf16[2,256,128], index: 9, kind: output, shape index: {1}]
  %s10 = inlined_call_operand.hbm [shape: f32[2,1,128], index: 10, kind: output, shape index: {2}]
  %11 = xla_tuple %s8, %s9, %s10
  %s12 = sld [smem:[#allocation0]]
  $region109: #{tpu_custom_call.1} parent=0
    _
  %s14 = ssub.s32 1, %s12
  %s15 = scalar_select 0, %s14, %s12
  $region1: #{tpu_custom_call.1} parent=0
    #allocation2 [shape = 'u8[262144]{0}', space=vmem, size = 0x40000, scoped, tag = 'input window, operand 0']
    #allocation3 [shape = 's32[2]{0}', space=sflag, size = 0x8, scoped, tag = 'scoped memory for tpu_custom_call.1']
    #allocation4 [shape = 's32[2]{0}', space=sflag, size = 0x8, scoped, tag = 'scoped memory for tpu_custom_call.1']
    #allocation5 [shape = 'u8[262144]{0}', space=vmem, size = 0x40000, scoped, tag = 'input window, operand 1']
    #allocation6 [shape = 's32[2]{0}', space=sflag, size = 0x8, scoped, tag = 'scoped memory for tpu_custom_call.1']
    #allocation7 [shape = 'u8[131072]{0}', space=vmem, size = 0x20000, scoped, tag = 'input window, operand 2, single buffered']
    #allocation8 [shape = 'u8[2048]{0}', space=vmem, size = 0x800, scoped, tag = 'input window, operand 3, single buffered']
    #allocation9 [shape = 's32[1]{0}', space=sflag, size = 0x4, scoped, tag = 'scoped memory for tpu_custom_call.1']
    #allocation10 [shape = 'u8[262144]{0}', space=vmem, size = 0x40000, scoped, tag = 'input window, operand 4, single buffered']
    #allocation11 [shape = 'u8[65536]{0}', space=vmem, size = 0x10000, scoped, tag = 'input window, operand 6, single buffered']
    #allocation12 [shape = 's32[1]{0}', space=sflag, size = 0x4, scoped, tag = 'scoped memory for tpu_custom_call.1']
    #allocation13 [shape = 'u8[131072]{0}', space=vmem, size = 0x20000, scoped, tag = 'output window, operand 0']
    #allocation14 [shape = 'u8[131072]{0}', space=vmem, size = 0x20000, scoped, tag = 'output window, operand 1']
    #allocation15 [shape = 's32[2]{0}', space=sflag, size = 0x8, scoped, tag = 'scoped memory for tpu_custom_call.1']
    #allocation16 [shape = 'u8[1024]{0}', space=vmem, size = 0x400, scoped, tag = 'output window, operand 2']
    %16 = vsyncpa [#allocation3], 0
    %s17 = scalar_lea.sflag [#allocation3], 1
    %18 = vsyncpa %s17, 0
    %19 = vsyncpa [#allocation6], 0
    %s20 = scalar_lea.sflag [#allocation6], 1
    %21 = vsyncpa %s20, 0
    %22 = vsyncpa [#allocation9], 0
    %23 = vsyncpa [#allocation12], 0
    %24 = vsyncpa [#allocation4], 0
    %s25 = scalar_lea.sflag [#allocation4], 1
    %26 = vsyncpa %s25, 0
    %27 = vsyncpa [#allocation15], 0
    %s28 = scalar_lea.sflag [#allocation15], 1
    %29 = vsyncpa %s28, 0
    loop: start=0, step=1, limit=4
    $region2: #{tpu_custom_call.1} parent=1 // loop_pre_header
      _
    $region3: #{tpu_custom_call.1} parent=1 // loop_header
      %s31 = sphi 0, %s35
      %p32 = scmp.ge.s32.totalorder %s31, 4
      %s38 = sphi 0, %s57
      %s39 = sphi 0, %s53
      %s40 = sphi 0, %s49
      %s41 = sphi 0, %s38
      %s42 = sphi 0, %s39
      %s43 = sphi 0, %s40
      %s44 = sphi 0, %s41
      %s45 = sphi 0, %s42
      %s46 = sphi 0, %s43
      %s64 = sphi 0, %s66
      %s67 = sphi 0, %s64
      %s68 = sphi 0, %s67
      %s84 = sphi 0, %s68
      %s94 = sphi 0, %s96
      %s97 = sphi 0, %s94
      %s98 = sphi 0, %s97
      %s114 = sphi 0, %s98
      %s118 = sphi 0, %s118
      %s120 = sphi 0, %s118
      %s121 = sphi 0, %s120
      %s135 = sphi 0, %s121
      %s139 = sphi 0, %s139
      %s141 = sphi 0, %s139
      %s142 = sphi 0, %s141
      %s156 = sphi 0, %s142
      %s160 = sphi 0, %s160
      %s162 = sphi 0, %s160
      %s163 = sphi 0, %s162
      %s177 = sphi 0, %s163
      %s181 = sphi 0, %s181
      %s183 = sphi 0, %s181
      %s184 = sphi 0, %s183
      %s198 = sphi 0, %s184
      %s202 = sphi 0, %s202
      %s204 = sphi 0, %s202
      %s205 = sphi 0, %s204
      %s219 = sphi 0, %s205
      %s223 = sphi 0, %s223
      %s225 = sphi 0, %s223
      %s226 = sphi 0, %s225
      %s240 = sphi 0, %s226
      %s250 = sphi 0, %s252
      %s253 = sphi 0, %s250
      %s254 = sphi 0, %s253
      %s270 = sphi 0, %s254
      %s280 = sphi 0, %s282
      %s283 = sphi 0, %s280
      %s284 = sphi 0, %s283
      %s300 = sphi 0, %s284
      %s308 = sphi 0, %s310
      %s311 = sphi 0, %s308
      %s312 = sphi 0, %s311
      %s328 = sphi 0, %s312
    $region4: #{tpu_custom_call.1} parent=1 // loop_header_branch
      %34 = sbr.rel (%p32) target = $region8
    $region5: #{tpu_custom_call.1} parent=1 // loop_body
      %s36 = ssub.s32 %s31, 1
      %s37 = ssub.s32 %s31, 2
      %s47 = sadd.s32 1, %s40
      %p48 = scmp.ge.s32.totalorder %s47, 1
      %s49 = scalar_select %p48, 0, %s47
      %s50 = sadd.s32 1, %s39
      %s51 = scalar_select %p48, %s50, %s39
      %p52 = scmp.ge.s32.totalorder %s51, 1
      %s53 = scalar_select %p52, 0, %s51
      %s54 = sadd.s32 1, %s38
      %s55 = scalar_select %p52, %s54, %s38
      %p56 = scmp.ge.s32.totalorder %s55, 2
      %s57 = scalar_select %p56, 0, %s55
      %s58 = sadd.s32 %s39, %s40
      %s59 = sadd.s32 %s53, %s49
      %s60 = ssub.s32 %s38, %s57
      %s61 = ssub.s32 %s58, %s59
      %s62 = sor.u32 %s60, %s61
      %p63 = scmp.eq.s32.totalorder %s62, 0
      %s65 = sadd.s32 %s64, 1
      %s66 = scalar_select %p63, %s64, %s65
      %p69 = pneg %p63
      %p70 = scmp.eq.s32.totalorder %s31, 1
      %p71 = por %p69, %p70
      %p72 = scmp.ne.s32.totalorder %s64, %s67
      %p73 = scmp.eq.s32.totalorder %s31, 0
      %p74 = por %p72, %p73
      %p75 = scmp.ne.s32.totalorder %s64, %s67
      %p76 = scmp.eq.s32.totalorder %s36, 1
      %p77 = por %p75, %p76
      %p78 = scmp.ne.s32.totalorder %s67, %s68
      %p79 = scmp.eq.s32.totalorder %s36, 0
      %p80 = por %p78, %p79
      %p81 = scmp.ne.s32.totalorder %s67, %s68
      %p82 = scmp.eq.s32.totalorder %s37, 1
      %p83 = por %p81, %p82
      %p85 = scmp.ne.s32.totalorder %s68, %s84
      %p86 = scmp.eq.s32.totalorder %s37, 0
      %p87 = por %p85, %p86
      %s88 = sadd.s32 %s39, %s40
      %s89 = sadd.s32 %s53, %s49
      %s90 = ssub.s32 %s38, %s57
      %s91 = ssub.s32 %s88, %s89
      %s92 = sor.u32 %s90, %s91
      %p93 = scmp.eq.s32.totalorder %s92, 0
      %s95 = sadd.s32 %s94, 1
      %s96 = scalar_select %p93, %s94, %s95
      %p99 = pneg %p93
      %p100 = scmp.eq.s32.totalorder %s31, 1
      %p101 = por %p99, %p100
      %p102 = scmp.ne.s32.totalorder %s94, %s97
      %p103 = scmp.eq.s32.totalorder %s31, 0
      %p104 = por %p102, %p103
      %p105 = scmp.ne.s32.totalorder %s94, %s97
      %p106 = scmp.eq.s32.totalorder %s36, 1
      %p107 = por %p105, %p106
      %p108 = scmp.ne.s32.totalorder %s97, %s98
      %p109 = scmp.eq.s32.totalorder %s36, 0
      %p110 = por %p108, %p109
      %p111 = scmp.ne.s32.totalorder %s97, %s98
      %p112 = scmp.eq.s32.totalorder %s37, 1
      %p113 = por %p111, %p112
      %p115 = scmp.ne.s32.totalorder %s98, %s114
      %p116 = scmp.eq.s32.totalorder %s37, 0
      %p117 = por %p115, %p116
      %s119 = sadd.s32 %s118, 1
      %p122 = scmp.eq.s32.totalorder %s31, 1
      %p123 = scmp.ne.s32.totalorder %s118, %s120
      %p124 = scmp.eq.s32.totalorder %s31, 0
      %p125 = por %p123, %p124
      %p126 = scmp.ne.s32.totalorder %s118, %s120
      %p127 = scmp.eq.s32.totalorder %s36, 1
      %p128 = por %p126, %p127
      %p129 = scmp.ne.s32.totalorder %s120, %s121
      %p130 = scmp.eq.s32.totalorder %s36, 0
      %p131 = por %p129, %p130
      %p132 = scmp.ne.s32.totalorder %s120, %s121
      %p133 = scmp.eq.s32.totalorder %s37, 1
      %p134 = por %p132, %p133
      %p136 = scmp.ne.s32.totalorder %s121, %s135
      %p137 = scmp.eq.s32.totalorder %s37, 0
      %p138 = por %p136, %p137
      %s140 = sadd.s32 %s139, 1
      %p143 = scmp.eq.s32.totalorder %s31, 1
      %p144 = scmp.ne.s32.totalorder %s139, %s141
      %p145 = scmp.eq.s32.totalorder %s31, 0
      %p146 = por %p144, %p145
      %p147 = scmp.ne.s32.totalorder %s139, %s141
      %p148 = scmp.eq.s32.totalorder %s36, 1
      %p149 = por %p147, %p148
      %p150 = scmp.ne.s32.totalorder %s141, %s142
      %p151 = scmp.eq.s32.totalorder %s36, 0
      %p152 = por %p150, %p151
      %p153 = scmp.ne.s32.totalorder %s141, %s142
      %p154 = scmp.eq.s32.totalorder %s37, 1
      %p155 = por %p153, %p154
      %p157 = scmp.ne.s32.totalorder %s142, %s156
      %p158 = scmp.eq.s32.totalorder %s37, 0
      %p159 = por %p157, %p158
      %s161 = sadd.s32 %s160, 1
      %p164 = scmp.eq.s32.totalorder %s31, 1
      %p165 = scmp.ne.s32.totalorder %s160, %s162
      %p166 = scmp.eq.s32.totalorder %s31, 0
      %p167 = por %p165, %p166
      %p168 = scmp.ne.s32.totalorder %s160, %s162
      %p169 = scmp.eq.s32.totalorder %s36, 1
      %p170 = por %p168, %p169
      %p171 = scmp.ne.s32.totalorder %s162, %s163
      %p172 = scmp.eq.s32.totalorder %s36, 0
      %p173 = por %p171, %p172
      %p174 = scmp.ne.s32.totalorder %s162, %s163
      %p175 = scmp.eq.s32.totalorder %s37, 1
      %p176 = por %p174, %p175
      %p178 = scmp.ne.s32.totalorder %s163, %s177
      %p179 = scmp.eq.s32.totalorder %s37, 0
      %p180 = por %p178, %p179
      %s182 = sadd.s32 %s181, 1
      %p185 = scmp.eq.s32.totalorder %s31, 1
      %p186 = scmp.ne.s32.totalorder %s181, %s183
      %p187 = scmp.eq.s32.totalorder %s31, 0
      %p188 = por %p186, %p187
      %p189 = scmp.ne.s32.totalorder %s181, %s183
      %p190 = scmp.eq.s32.totalorder %s36, 1
      %p191 = por %p189, %p190
      %p192 = scmp.ne.s32.totalorder %s183, %s184
      %p193 = scmp.eq.s32.totalorder %s36, 0
      %p194 = por %p192, %p193
      %p195 = scmp.ne.s32.totalorder %s183, %s184
      %p196 = scmp.eq.s32.totalorder %s37, 1
      %p197 = por %p195, %p196
      %p199 = scmp.ne.s32.totalorder %s184, %s198
      %p200 = scmp.eq.s32.totalorder %s37, 0
      %p201 = por %p199, %p200
      %s203 = sadd.s32 %s202, 1
      %p206 = scmp.eq.s32.totalorder %s31, 1
      %p207 = scmp.ne.s32.totalorder %s202, %s204
      %p208 = scmp.eq.s32.totalorder %s31, 0
      %p209 = por %p207, %p208
      %p210 = scmp.ne.s32.totalorder %s202, %s204
      %p211 = scmp.eq.s32.totalorder %s36, 1
      %p212 = por %p210, %p211
      %p213 = scmp.ne.s32.totalorder %s204, %s205
      %p214 = scmp.eq.s32.totalorder %s36, 0
      %p215 = por %p213, %p214
      %p216 = scmp.ne.s32.totalorder %s204, %s205
      %p217 = scmp.eq.s32.totalorder %s37, 1
      %p218 = por %p216, %p217
      %p220 = scmp.ne.s32.totalorder %s205, %s219
      %p221 = scmp.eq.s32.totalorder %s37, 0
      %p222 = por %p220, %p221
      %s224 = sadd.s32 %s223, 1
      %p227 = scmp.eq.s32.totalorder %s31, 1
      %p228 = scmp.ne.s32.totalorder %s223, %s225
      %p229 = scmp.eq.s32.totalorder %s31, 0
      %p230 = por %p228, %p229
      %p231 = scmp.ne.s32.totalorder %s223, %s225
      %p232 = scmp.eq.s32.totalorder %s36, 1
      %p233 = por %p231, %p232
      %p234 = scmp.ne.s32.totalorder %s225, %s226
      %p235 = scmp.eq.s32.totalorder %s36, 0
      %p236 = por %p234, %p235
      %p237 = scmp.ne.s32.totalorder %s225, %s226
      %p238 = scmp.eq.s32.totalorder %s37, 1
      %p239 = por %p237, %p238
      %p241 = scmp.ne.s32.totalorder %s226, %s240
      %p242 = scmp.eq.s32.totalorder %s37, 0
      %p243 = por %p241, %p242
      %s244 = sadd.s32 %s39, %s40
      %s245 = sadd.s32 %s53, %s49
      %s246 = ssub.s32 %s38, %s57
      %s247 = ssub.s32 %s244, %s245
      %s248 = sor.u32 %s246, %s247
      %p249 = scmp.eq.s32.totalorder %s248, 0
      %s251 = sadd.s32 %s250, 1
      %s252 = scalar_select %p249, %s250, %s251
      %p255 = pneg %p249
      %p256 = scmp.eq.s32.totalorder %s31, 1
      %p257 = por %p255, %p256
      %p258 = scmp.ne.s32.totalorder %s250, %s253
      %p259 = scmp.eq.s32.totalorder %s31, 0
      %p260 = por %p258, %p259
      %p261 = scmp.ne.s32.totalorder %s250, %s253
      %p262 = scmp.eq.s32.totalorder %s36, 1
      %p263 = por %p261, %p262
      %p264 = scmp.ne.s32.totalorder %s253, %s254
      %p265 = scmp.eq.s32.totalorder %s36, 0
      %p266 = por %p264, %p265
      %p267 = scmp.ne.s32.totalorder %s253, %s254
      %p268 = scmp.eq.s32.totalorder %s37, 1
      %p269 = por %p267, %p268
      %p271 = scmp.ne.s32.totalorder %s254, %s270
      %p272 = scmp.eq.s32.totalorder %s37, 0
      %p273 = por %p271, %p272
      %s274 = sadd.s32 %s39, %s40
      %s275 = sadd.s32 %s53, %s49
      %s276 = ssub.s32 %s38, %s57
      %s277 = ssub.s32 %s274, %s275
      %s278 = sor.u32 %s276, %s277
      %p279 = scmp.eq.s32.totalorder %s278, 0
      %s281 = sadd.s32 %s280, 1
      %s282 = scalar_select %p279, %s280, %s281
      %p285 = pneg %p279
      %p286 = scmp.eq.s32.totalorder %s31, 1
      %p287 = por %p285, %p286
      %p288 = scmp.ne.s32.totalorder %s280, %s283
      %p289 = scmp.eq.s32.totalorder %s31, 0
      %p290 = por %p288, %p289
      %p291 = scmp.ne.s32.totalorder %s280, %s283
      %p292 = scmp.eq.s32.totalorder %s36, 1
      %p293 = por %p291, %p292
      %p294 = scmp.ne.s32.totalorder %s283, %s284
      %p295 = scmp.eq.s32.totalorder %s36, 0
      %p296 = por %p294, %p295
      %p297 = scmp.ne.s32.totalorder %s283, %s284
      %p298 = scmp.eq.s32.totalorder %s37, 1
      %p299 = por %p297, %p298
      %p301 = scmp.ne.s32.totalorder %s284, %s300
      %p302 = scmp.eq.s32.totalorder %s37, 0
      %p303 = por %p301, %p302
      %s304 = sadd.s32 %s38, %s39
      %s305 = sadd.s32 %s57, %s53
      %s306 = ssub.s32 %s304, %s305
      %p307 = scmp.eq.s32.totalorder %s306, 0
      %s309 = sadd.s32 %s308, 1
      %s310 = scalar_select %p307, %s308, %s309
      %p313 = pneg %p307
      %p314 = scmp.eq.s32.totalorder %s31, 1
      %p315 = por %p313, %p314
      %p316 = scmp.ne.s32.totalorder %s308, %s311
      %p317 = scmp.eq.s32.totalorder %s31, 0
      %p318 = por %p316, %p317
      %p319 = scmp.ne.s32.totalorder %s308, %s311
      %p320 = scmp.eq.s32.totalorder %s36, 1
      %p321 = por %p319, %p320
      %p322 = scmp.ne.s32.totalorder %s311, %s312
      %p323 = scmp.eq.s32.totalorder %s36, 0
      %p324 = por %p322, %p323
      %p325 = scmp.ne.s32.totalorder %s311, %s312
      %p326 = scmp.eq.s32.totalorder %s37, 1
      %p327 = por %p325, %p326
      %p329 = scmp.ne.s32.totalorder %s312, %s328
      %p330 = scmp.eq.s32.totalorder %s37, 0
      %p331 = por %p329, %p330
      %p332 = scmp.le.s32.totalorder 1, %s31
      %p333 = scmp.lt.s32.totalorder %s31, 3
      %p334 = pnand %p332, %p333
      %p335 = pneg %p334
      // Predicated region
      $region9: #{tpu_custom_call.1} parent=5 // pred_check
        _
      $region10: #{tpu_custom_call.1} parent=5 // pred_check_branch
        %337 = sbr.rel (%p334) target = $region12
      $region11: #{tpu_custom_call.1} parent=5 // pred_region
        %s338 = ssub.s32 %s31, 1
        // Predicated region
        $region13: #{tpu_custom_call.1} parent=11 // pred_check
          %p339 = pneg %p131
        $region14: #{tpu_custom_call.1} parent=11 // pred_check_branch
          %341 = sbr.rel (%p339) target = $region16
        $region15: #{tpu_custom_call.1} parent=11 // pred_region
          %343 = vsyncadd [#allocation6], 0
          %s344 = sshll.u32 %s2, 4
          %s345 = int_to_ptr.hbm [resolvable:$true] %s344
          %s346 = sshll.u32 [#allocation7], 4
          %s347 = int_to_ptr.vmem [resolvable:$true] %s346
          %352 = dma.hbm_to_vmem [thread:$0]  %s345, 4096, %s347, [#allocation6], 128, 128, 8
        $region16: #{tpu_custom_call.1} parent=11 // pred_fallthru
          _
        // Predicated region
        $region17: #{tpu_custom_call.1} parent=11 // pred_check
          %p353 = pneg %p152
        $region18: #{tpu_custom_call.1} parent=11 // pred_check_branch
          %355 = sbr.rel (%p353) target = $region20
        $region19: #{tpu_custom_call.1} parent=11 // pred_region
          %357 = vsyncadd [#allocation9], 0
          %s359 = sshll.u32 %s3, 4
          %s360 = int_to_ptr.hbm [resolvable:$true] %s359
          %s361 = sshll.u32 [#allocation8], 4
          %s362 = int_to_ptr.vmem [resolvable:$true] %s361
          %364 = dma.hbm_to_vmem [thread:$0]  %s360, 64, %s362, [#allocation9]
        $region20: #{tpu_custom_call.1} parent=11 // pred_fallthru
          _
        // Predicated region
        $region21: #{tpu_custom_call.1} parent=11 // pred_check
          %p365 = pneg %p173
        $region22: #{tpu_custom_call.1} parent=11 // pred_check_branch
          %367 = sbr.rel (%p365) target = $region24
        $region23: #{tpu_custom_call.1} parent=11 // pred_region
          %369 = vsyncadd [#allocation9], 0
          %s370 = sshll.u32 %s4, 4
          %s371 = int_to_ptr.hbm [resolvable:$true] %s370
          %s372 = sshll.u32 [#allocation10], 4
          %s373 = int_to_ptr.vmem [resolvable:$true] %s372
          %378 = dma.hbm_to_vmem [thread:$0]  %s371, 8192, %s373, [#allocation9], 256, 256, 16
        $region24: #{tpu_custom_call.1} parent=11 // pred_fallthru
          _
        // Predicated region
        $region25: #{tpu_custom_call.1} parent=11 // pred_check
          %p379 = pneg %p194
        $region26: #{tpu_custom_call.1} parent=11 // pred_check_branch
          %381 = sbr.rel (%p379) target = $region28
        $region27: #{tpu_custom_call.1} parent=11 // pred_region
          _
        $region28: #{tpu_custom_call.1} parent=11 // pred_fallthru
          _
        // Predicated region
        $region29: #{tpu_custom_call.1} parent=11 // pred_check
          %p382 = pneg %p215
        $region30: #{tpu_custom_call.1} parent=11 // pred_check_branch
          %384 = sbr.rel (%p382) target = $region32
        $region31: #{tpu_custom_call.1} parent=11 // pred_region
          %386 = vsyncadd [#allocation12], 0
          %s387 = sshll.u32 %s6, 4
          %s388 = int_to_ptr.hbm [resolvable:$true] %s387
          %s389 = sshll.u32 [#allocation11], 4
          %s390 = int_to_ptr.vmem [resolvable:$true] %s389
          %395 = dma.hbm_to_vmem [thread:$0]  %s388, 2048, %s390, [#allocation12], 64, 64, 4
        $region32: #{tpu_custom_call.1} parent=11 // pred_fallthru
          _
        // Predicated region
        $region33: #{tpu_custom_call.1} parent=11 // pred_check
          %p396 = pneg %p236
        $region34: #{tpu_custom_call.1} parent=11 // pred_check_branch
          %398 = sbr.rel (%p396) target = $region36
        $region35: #{tpu_custom_call.1} parent=11 // pred_region
          _
        $region36: #{tpu_custom_call.1} parent=11 // pred_fallthru
          _
      $region12: #{tpu_custom_call.1} parent=5 // pred_fallthru
        _
      %p399 = scmp.lt.s32.totalorder %s31, 2
      // Predicated region
      $region37: #{tpu_custom_call.1} parent=5 // pred_check
        %p400 = pneg %p399
      $region38: #{tpu_custom_call.1} parent=5 // pred_check_branch
        %402 = sbr.rel (%p400) target = $region40
      $region39: #{tpu_custom_call.1} parent=5 // pred_region
        // Predicated region
        $region41: #{tpu_custom_call.1} parent=39 // pred_check
          %p403 = pneg %p74
        $region42: #{tpu_custom_call.1} parent=39 // pred_check_branch
          %405 = sbr.rel (%p403) target = $region44
        $region43: #{tpu_custom_call.1} parent=39 // pred_region
          %s406 = sand.u32 %s64, 1
          %s407 = scalar_lea.sflag [#allocation3], %s406
          %s408 = sand.u32 %s64, 1
          %s409 = smul.addr %s408, 256
          %s410 = scalar_lea.vmem [#allocation2], %s409
          %s411 = sadd.s32 %s39, %s40
          %s412 = smul.u32 32, %s411
          %414 = vsyncadd %s407, 0
          %s415 = smul.addr %s38, 32
          %s416 = sadd.s32 %s412, %s415
          %s417 = smul.addr %s416, 8
          %s418 = scalar_lea.hbm %s0, %s417
          %s419 = sshll.u32 %s418, 4
          %s420 = int_to_ptr.hbm [resolvable:$true] %s419
          %s421 = sshll.u32 %s410, 4
          %s422 = int_to_ptr.vmem [resolvable:$true] %s421
          %427 = dma.hbm_to_vmem [thread:$0]  %s420, 4096, %s422, %s407, 128, 128, 8
        $region44: #{tpu_custom_call.1} parent=39 // pred_fallthru
          _
        // Predicated region
        $region45: #{tpu_custom_call.1} parent=39 // pred_check
          %p428 = pneg %p104
        $region46: #{tpu_custom_call.1} parent=39 // pred_check_branch
          %430 = sbr.rel (%p428) target = $region48
        $region47: #{tpu_custom_call.1} parent=39 // pred_region
          %s431 = sand.u32 %s31, 1
          %s432 = scalar_lea.sflag [#allocation6], %s431
          %s433 = sand.u32 %s94, 1
          %s434 = smul.addr %s433, 256
          %s435 = scalar_lea.vmem [#allocation5], %s434
          %s436 = sadd.s32 %s39, %s40
          %s437 = smul.u32 32, %s436
          %439 = vsyncadd %s432, 0
          %s440 = smul.addr %s38, 32
          %s441 = sadd.s32 %s437, %s440
          %s442 = smul.addr %s441, 8
          %s443 = scalar_lea.hbm %s1, %s442
          %s444 = sshll.u32 %s443, 4
          %s445 = int_to_ptr.hbm [resolvable:$true] %s444
          %s446 = sshll.u32 %s435, 4
          %s447 = int_to_ptr.vmem [resolvable:$true] %s446
          %452 = dma.hbm_to_vmem [thread:$0]  %s445, 4096, %s447, %s432, 128, 128, 8
        $region48: #{tpu_custom_call.1} parent=39 // pred_fallthru
          _
      $region40: #{tpu_custom_call.1} parent=5 // pred_fallthru
        _
      %p453 = scmp.le.s32.totalorder 1, %s31
      %p454 = scmp.lt.s32.totalorder %s31, 3
      %p455 = pnand %p453, %p454
      %p456 = pneg %p455
      // Predicated region
      $region49: #{tpu_custom_call.1} parent=5 // pred_check
        _
      $region50: #{tpu_custom_call.1} parent=5 // pred_check_branch
        %458 = sbr.rel (%p455) target = $region52
      $region51: #{tpu_custom_call.1} parent=5 // pred_region
        %s459 = ssub.s32 %s31, 1
        %s460 = sand.u32 %s67, 1
        %s461 = scalar_lea.sflag [#allocation3], %s460
        %s462 = sand.u32 %s67, 1
        %s463 = smul.addr %s462, 256
        %s464 = scalar_lea.vmem [#allocation2], %s463
        // Predicated region
        $region53: #{tpu_custom_call.1} parent=51 // pred_check
          %p465 = pneg %p80
        $region54: #{tpu_custom_call.1} parent=51 // pred_check_branch
          %467 = sbr.rel (%p465) target = $region56
        $region55: #{tpu_custom_call.1} parent=51 // pred_region
          %469 = dma.done %s461, 4096
        $region56: #{tpu_custom_call.1} parent=51 // pred_fallthru
          _
        %s470 = sand.u32 %s36, 1
        %s471 = scalar_lea.sflag [#allocation6], %s470
        %s472 = sand.u32 %s97, 1
        %s473 = smul.addr %s472, 256
        %s474 = scalar_lea.vmem [#allocation5], %s473
        // Predicated region
        $region57: #{tpu_custom_call.1} parent=51 // pred_check
          %p475 = pneg %p110
        $region58: #{tpu_custom_call.1} parent=51 // pred_check_branch
          %477 = sbr.rel (%p475) target = $region60
        $region59: #{tpu_custom_call.1} parent=51 // pred_region
          %479 = dma.done %s471, 4096
        $region60: #{tpu_custom_call.1} parent=51 // pred_fallthru
          _
        // Predicated region
        $region61: #{tpu_custom_call.1} parent=51 // pred_check
          %p480 = pneg %p131
        $region62: #{tpu_custom_call.1} parent=51 // pred_check_branch
          %482 = sbr.rel (%p480) target = $region64
        $region63: #{tpu_custom_call.1} parent=51 // pred_region
          %484 = dma.done [#allocation6], 4096
        $region64: #{tpu_custom_call.1} parent=51 // pred_fallthru
          _
        // Predicated region
        $region65: #{tpu_custom_call.1} parent=51 // pred_check
          %p485 = pneg %p152
        $region66: #{tpu_custom_call.1} parent=51 // pred_check_branch
          %487 = sbr.rel (%p485) target = $region68
        $region67: #{tpu_custom_call.1} parent=51 // pred_region
          %489 = dma.done [#allocation9], 64
        $region68: #{tpu_custom_call.1} parent=51 // pred_fallthru
          _
        // Predicated region
        $region69: #{tpu_custom_call.1} parent=51 // pred_check
          %p490 = pneg %p173
        $region70: #{tpu_custom_call.1} parent=51 // pred_check_branch
          %492 = sbr.rel (%p490) target = $region72
        $region71: #{tpu_custom_call.1} parent=51 // pred_region
          %494 = dma.done [#allocation9], 8192
        $region72: #{tpu_custom_call.1} parent=51 // pred_fallthru
          _
        // Predicated region
        $region73: #{tpu_custom_call.1} parent=51 // pred_check
          %p495 = pneg %p215
        $region74: #{tpu_custom_call.1} parent=51 // pred_check_branch
          %497 = sbr.rel (%p495) target = $region76
        $region75: #{tpu_custom_call.1} parent=51 // pred_region
          %499 = dma.done [#allocation12], 2048
        $region76: #{tpu_custom_call.1} parent=51 // pred_fallthru
          _
        %s500 = sand.u32 %s67, 1
        %s501 = scalar_lea.sflag [#allocation3], %s500
        %s502 = sand.u32 %s67, 1
        %s503 = smul.addr %s502, 256
        %s504 = scalar_lea.vmem [#allocation2], %s503
        %p505 = pneg %p80
        %p506 = pneg %p77
        %s507 = sand.u32 %s36, 1
        %s508 = scalar_lea.sflag [#allocation6], %s507
        %s509 = sand.u32 %s97, 1
        %s510 = smul.addr %s509, 256
        %s511 = scalar_lea.vmem [#allocation5], %s510
        %p512 = pneg %p110
        %p513 = pneg %p107
        %p514 = pneg %p131
        %p515 = pneg %p128
        %p516 = pneg %p152
        %p517 = pneg %p149
        %p518 = pneg %p173
        %p519 = pneg %p170
        %p520 = pneg %p194
        %p521 = pneg %p191
        %p522 = pneg %p215
        %p523 = pneg %p212
        %p524 = pneg %p236
        %p525 = pneg %p233
        %p526 = pneg %p266
        %p527 = pneg %p263
        %s528 = sand.u32 %s253, 1
        %s529 = scalar_lea.sflag [#allocation4], %s528
        %s530 = sand.u32 %s253, 1
        %s531 = smul.addr %s530, 128
        %s532 = scalar_lea.vmem [#allocation13], %s531
        %p533 = pneg %p296
        %p534 = pneg %p293
        %s535 = sand.u32 %s36, 1
        %s536 = scalar_lea.sflag [#allocation15], %s535
        %s537 = sand.u32 %s283, 1
        %s538 = smul.addr %s537, 128
        %s539 = scalar_lea.vmem [#allocation14], %s538
        %p540 = pneg %p324
        %p541 = pneg %p321
        %s542 = sand.u32 %s36, 1
        %s543 = scalar_lea.sflag [#allocation15], %s542
        %s544 = sand.u32 %s311, 1
        %s545 = scalar_lea.vmem [#allocation16], %s544
        %s546 = sadd.s32 %s42, %s43
        %s547 = smul.u32 32, %s546
        %s548 = sadd.s32 %s42, %s43
        %s549 = smul.u32 32, %s548
        %s550 = sadd.s32 %s42, %s43
        %s551 = smul.u32 32, %s550
        %s552 = sadd.s32 %s42, %s43
        %s553 = smul.u32 32, %s552
        %s554 = sadd.s32 %s41, %s42
        %p555 = scmp.eq.s32.totalorder %s43, 0
        // Predicated region
        $region77: #{tpu_custom_call.1} parent=51 // pred_check
          %p556 = pneg %p555
        $region78: #{tpu_custom_call.1} parent=51 // pred_check_branch
          %558 = sbr.rel (%p556) target = $region80
        $region79: #{tpu_custom_call.1} parent=51 // pred_region
          %559 = vst [vmem:[%s545] sm:$0x1] 0.0
        $region80: #{tpu_custom_call.1} parent=51 // pred_fallthru
          _
        %v560 = vld [vmem:[%s464] sm:$0xff]
        %v561 = vld [vmem:[%s464 + $0x8] sm:$0xff]
        %v562 = vld [vmem:[%s464 + $0x10] sm:$0xff]
        %v563 = vld [vmem:[%s464 + $0x18] sm:$0xff]
        %v564 = vld [vmem:[%s464 + $0x20] sm:$0xff]
        %v565 = vld [vmem:[%s464 + $0x28] sm:$0xff]
        %v566 = vld [vmem:[%s464 + $0x30] sm:$0xff]
        %v567 = vld [vmem:[%s464 + $0x38] sm:$0xff]
        %v568 = vld [vmem:[%s464 + $0x40] sm:$0xff]
        %v569 = vld [vmem:[%s464 + $0x48] sm:$0xff]
        %v570 = vld [vmem:[%s464 + $0x50] sm:$0xff]
        %v571 = vld [vmem:[%s464 + $0x58] sm:$0xff]
        %v572 = vld [vmem:[%s464 + $0x60] sm:$0xff]
        %v573 = vld [vmem:[%s464 + $0x68] sm:$0xff]
        %v574 = vld [vmem:[%s464 + $0x70] sm:$0xff]
        %v575 = vld [vmem:[%s464 + $0x78] sm:$0xff]
        %v576 = vld [vmem:[%s464 + $0x80] sm:$0xff]
        %v577 = vld [vmem:[%s464 + $0x88] sm:$0xff]
        %v578 = vld [vmem:[%s464 + $0x90] sm:$0xff]
        %v579 = vld [vmem:[%s464 + $0x98] sm:$0xff]
        %v580 = vld [vmem:[%s464 + $0xa0] sm:$0xff]
        %v581 = vld [vmem:[%s464 + $0xa8] sm:$0xff]
        %v582 = vld [vmem:[%s464 + $0xb0] sm:$0xff]
        %v583 = vld [vmem:[%s464 + $0xb8] sm:$0xff]
        %v584 = vld [vmem:[%s464 + $0xc0] sm:$0xff]
        %v585 = vld [vmem:[%s464 + $0xc8] sm:$0xff]
        %v586 = vld [vmem:[%s464 + $0xd0] sm:$0xff]
        %v587 = vld [vmem:[%s464 + $0xd8] sm:$0xff]
        %v588 = vld [vmem:[%s464 + $0xe0] sm:$0xff]
        %v589 = vld [vmem:[%s464 + $0xe8] sm:$0xff]
        %v590 = vld [vmem:[%s464 + $0xf0] sm:$0xff]
        %v591 = vld [vmem:[%s464 + $0xf8] sm:$0xff]
        %v592 = vld [vmem:[%s474] sm:$0xff]
        %v593 = vld [vmem:[%s474 + $0x8] sm:$0xff]
        %v594 = vld [vmem:[%s474 + $0x10] sm:$0xff]
        %v595 = vld [vmem:[%s474 + $0x18] sm:$0xff]
        %v596 = vld [vmem:[%s474 + $0x20] sm:$0xff]
        %v597 = vld [vmem:[%s474 + $0x28] sm:$0xff]
        %v598 = vld [vmem:[%s474 + $0x30] sm:$0xff]
        %v599 = vld [vmem:[%s474 + $0x38] sm:$0xff]
        %v600 = vld [vmem:[%s474 + $0x40] sm:$0xff]
        %v601 = vld [vmem:[%s474 + $0x48] sm:$0xff]
        %v602 = vld [vmem:[%s474 + $0x50] sm:$0xff]
        %v603 = vld [vmem:[%s474 + $0x58] sm:$0xff]
        %v604 = vld [vmem:[%s474 + $0x60] sm:$0xff]
        %v605 = vld [vmem:[%s474 + $0x68] sm:$0xff]
        %v606 = vld [vmem:[%s474 + $0x70] sm:$0xff]
        %v607 = vld [vmem:[%s474 + $0x78] sm:$0xff]
        %v608 = vld [vmem:[%s474 + $0x80] sm:$0xff]
        %v609 = vld [vmem:[%s474 + $0x88] sm:$0xff]
        %v610 = vld [vmem:[%s474 + $0x90] sm:$0xff]
        %v611 = vld [vmem:[%s474 + $0x98] sm:$0xff]
        %v612 = vld [vmem:[%s474 + $0xa0] sm:$0xff]
        %v613 = vld [vmem:[%s474 + $0xa8] sm:$0xff]
        %v614 = vld [vmem:[%s474 + $0xb0] sm:$0xff]
        %v615 = vld [vmem:[%s474 + $0xb8] sm:$0xff]
        %v616 = vld [vmem:[%s474 + $0xc0] sm:$0xff]
        %v617 = vld [vmem:[%s474 + $0xc8] sm:$0xff]
        %v618 = vld [vmem:[%s474 + $0xd0] sm:$0xff]
        %v619 = vld [vmem:[%s474 + $0xd8] sm:$0xff]
        %v620 = vld [vmem:[%s474 + $0xe0] sm:$0xff]
        %v621 = vld [vmem:[%s474 + $0xe8] sm:$0xff]
        %v622 = vld [vmem:[%s474 + $0xf0] sm:$0xff]
        %v623 = vld [vmem:[%s474 + $0xf8] sm:$0xff]
        %v624 = vld [vmem:[#allocation7] sm:$0xff]
        %v625 = vld [vmem:[#allocation7 + $0x8] sm:$0xff]
        %v626 = vld [vmem:[#allocation7 + $0x10] sm:$0xff]
        %v627 = vld [vmem:[#allocation7 + $0x18] sm:$0xff]
        %v628 = vld [vmem:[#allocation7 + $0x20] sm:$0xff]
        %v629 = vld [vmem:[#allocation7 + $0x28] sm:$0xff]
        %v630 = vld [vmem:[#allocation7 + $0x30] sm:$0xff]
        %v631 = vld [vmem:[#allocation7 + $0x38] sm:$0xff]
        %v632 = vld [vmem:[#allocation7 + $0x40] sm:$0xff]
        %v633 = vld [vmem:[#allocation7 + $0x48] sm:$0xff]
        %v634 = vld [vmem:[#allocation7 + $0x50] sm:$0xff]
        %v635 = vld [vmem:[#allocation7 + $0x58] sm:$0xff]
        %v636 = vld [vmem:[#allocation7 + $0x60] sm:$0xff]
        %v637 = vld [vmem:[#allocation7 + $0x68] sm:$0xff]
        %v638 = vld [vmem:[#allocation7 + $0x70] sm:$0xff]
        %v639 = vld [vmem:[#allocation7 + $0x78] sm:$0xff]
        %v640 = vpack.c.bf16 %v561, %v560
        %v641 = vpack.c.bf16 %v563, %v562
        %v642 = vpack.c.bf16 %v565, %v564
        %v643 = vpack.c.bf16 %v567, %v566
        %v644 = vpack.c.bf16 %v569, %v568
        %v645 = vpack.c.bf16 %v571, %v570
        %v646 = vpack.c.bf16 %v573, %v572
        %v647 = vpack.c.bf16 %v575, %v574
        %v648 = vpack.c.bf16 %v577, %v576
        %v649 = vpack.c.bf16 %v579, %v578
        %v650 = vpack.c.bf16 %v581, %v580
        %v651 = vpack.c.bf16 %v583, %v582
        %v652 = vpack.c.bf16 %v585, %v584
        %v653 = vpack.c.bf16 %v587, %v586
        %v654 = vpack.c.bf16 %v589, %v588
        %v655 = vpack.c.bf16 %v591, %v590
        %v656 = vld [vmem:[#allocation8] ss:$2 sm:$0x3]
        %v658 = vperm.slane %v656, 0
        %v659 = vperm.slane %v656, 1
        %v678 = vunpack.c.l.b16 %v624
        %v679 = vunpack.c.h.b16 %v624
        %v680 = vunpack.c.l.b16 %v625
        %v681 = vunpack.c.h.b16 %v625
        %v682 = vunpack.c.l.b16 %v626
        %v683 = vunpack.c.h.b16 %v626
        %v684 = vunpack.c.l.b16 %v627
        %v685 = vunpack.c.h.b16 %v627
        %v686 = vunpack.c.l.b16 %v628
        %v687 = vunpack.c.h.b16 %v628
        %v688 = vunpack.c.l.b16 %v629
        %v689 = vunpack.c.h.b16 %v629
        %v690 = vunpack.c.l.b16 %v630
        %v691 = vunpack.c.h.b16 %v630
        %v692 = vunpack.c.l.b16 %v631
        %v693 = vunpack.c.h.b16 %v631
        %v694 = vunpack.c.l.b16 %v632
        %v695 = vunpack.c.h.b16 %v632
        %v696 = vunpack.c.l.b16 %v633
        %v697 = vunpack.c.h.b16 %v633
        %v698 = vunpack.c.l.b16 %v634
        %v699 = vunpack.c.h.b16 %v634
        %v700 = vunpack.c.l.b16 %v635
        %v701 = vunpack.c.h.b16 %v635
        %v702 = vunpack.c.l.b16 %v636
        %v703 = vunpack.c.h.b16 %v636
        %v704 = vunpack.c.l.b16 %v637
        %v705 = vunpack.c.h.b16 %v637
        %v706 = vunpack.c.l.b16 %v638
        %v707 = vunpack.c.h.b16 %v638
        %v708 = vunpack.c.l.b16 %v639
        %v709 = vunpack.c.h.b16 %v639
        %v710 = vpack.c.b16 %v680, %v678
        %v711 = vpack.c.b16 %v681, %v679
        %v712 = vpack.c.b16 %v684, %v682
        %v713 = vpack.c.b16 %v685, %v683
        %v714 = vpack.c.b16 %v688, %v686
        %v715 = vpack.c.b16 %v689, %v687
        %v716 = vpack.c.b16 %v692, %v690
        %v717 = vpack.c.b16 %v693, %v691
        %v718 = vpack.c.b16 %v696, %v694
        %v719 = vpack.c.b16 %v697, %v695
        %v720 = vpack.c.b16 %v700, %v698
        %v721 = vpack.c.b16 %v701, %v699
        %v722 = vpack.c.b16 %v704, %v702
        %v723 = vpack.c.b16 %v705, %v703
        %v724 = vpack.c.b16 %v708, %v706
        %v725 = vpack.c.b16 %v709, %v707
        %742 = vmatpush.bf16.msra.mxu0 %v724
        %743 = vmatpush.bf16.msra.mxu0 %v722
        %744 = vmatpush.bf16.msra.mxu0 %v720
        %745 = vmatpush.bf16.msra.mxu0 %v718
        %746 = vmatpush.bf16.msra.mxu0 %v716
        %747 = vmatpush.bf16.msra.mxu0 %v714
        %748 = vmatpush.bf16.msra.mxu0 %v712
        %749 = vmatpush.bf16.msra.mxu0 %v710
        %750 = vmatmul.bf16.gmra.mxu0 %v640
        %v751 = vpop.f32.mrf.mxu0
        %v752 = vadd.f32 %v658, %v751
        %v753 = vpop.f32.mrf.mxu0
        %v754 = vadd.f32 %v658, %v753
        %755 = vmatmul.bf16.gmra.mxu0 %v641
        %v756 = vpop.f32.mrf.mxu0
        %v757 = vadd.f32 %v658, %v756
        %v758 = vpop.f32.mrf.mxu0
        %v759 = vadd.f32 %v658, %v758
        %760 = vmatmul.bf16.gmra.mxu0 %v642
        %v761 = vpop.f32.mrf.mxu0
        %v762 = vadd.f32 %v658, %v761
        %v763 = vpop.f32.mrf.mxu0
        %v764 = vadd.f32 %v658, %v763
        %765 = vmatmul.bf16.gmra.mxu0 %v643
        %v766 = vpop.f32.mrf.mxu0
        %v767 = vadd.f32 %v658, %v766
        %v768 = vpop.f32.mrf.mxu0
        %v769 = vadd.f32 %v658, %v768
        %770 = vmatmul.bf16.gmra.mxu0 %v644
        %v771 = vpop.f32.mrf.mxu0
        %v772 = vadd.f32 %v658, %v771
        %v773 = vpop.f32.mrf.mxu0
        %v774 = vadd.f32 %v658, %v773
        %775 = vmatmul.bf16.gmra.mxu0 %v645
        %v776 = vpop.f32.mrf.mxu0
        %v777 = vadd.f32 %v658, %v776
        %v778 = vpop.f32.mrf.mxu0
        %v779 = vadd.f32 %v658, %v778
        %780 = vmatmul.bf16.gmra.mxu0 %v646
        %v781 = vpop.f32.mrf.mxu0
        %v782 = vadd.f32 %v658, %v781
        %v783 = vpop.f32.mrf.mxu0
        %v784 = vadd.f32 %v658, %v783
        %785 = vmatmul.bf16.gmra.mxu0 %v647
        %v786 = vpop.f32.mrf.mxu0
        %v787 = vadd.f32 %v658, %v786
        %v788 = vpop.f32.mrf.mxu0
        %v789 = vadd.f32 %v658, %v788
        %790 = vmatmul.bf16.gmra.mxu0 %v648
        %v791 = vpop.f32.mrf.mxu0
        %v792 = vadd.f32 %v658, %v791
        %v793 = vpop.f32.mrf.mxu0
        %v794 = vadd.f32 %v658, %v793
        %795 = vmatmul.bf16.gmra.mxu0 %v649
        %v796 = vpop.f32.mrf.mxu0
        %v797 = vadd.f32 %v658, %v796
        %v798 = vpop.f32.mrf.mxu0
        %v799 = vadd.f32 %v658, %v798
        %800 = vmatmul.bf16.gmra.mxu0 %v650
        %v801 = vpop.f32.mrf.mxu0
        %v802 = vadd.f32 %v658, %v801
        %v803 = vpop.f32.mrf.mxu0
        %v804 = vadd.f32 %v658, %v803
        %805 = vmatmul.bf16.gmra.mxu0 %v651
        %v806 = vpop.f32.mrf.mxu0
        %v807 = vadd.f32 %v658, %v806
        %v808 = vpop.f32.mrf.mxu0
        %v809 = vadd.f32 %v658, %v808
        %810 = vmatmul.bf16.gmra.mxu0 %v652
        %v811 = vpop.f32.mrf.mxu0
        %v812 = vadd.f32 %v658, %v811
        %v813 = vpop.f32.mrf.mxu0
        %v814 = vadd.f32 %v658, %v813
        %815 = vmatmul.bf16.gmra.mxu0 %v653
        %v816 = vpop.f32.mrf.mxu0
        %v817 = vadd.f32 %v658, %v816
        %v818 = vpop.f32.mrf.mxu0
        %v819 = vadd.f32 %v658, %v818
        %820 = vmatmul.bf16.gmra.mxu0 %v654
        %v821 = vpop.f32.mrf.mxu0
        %v822 = vadd.f32 %v658, %v821
        %v823 = vpop.f32.mrf.mxu0
        %v824 = vadd.f32 %v658, %v823
        %825 = vmatmul.bf16.gmra.mxu0 %v655
        %v826 = vpop.f32.mrf.mxu0
        %v827 = vadd.f32 %v658, %v826
        %v828 = vpop.f32.mrf.mxu0
        %v829 = vadd.f32 %v658, %v828
        %830 = vdwg.mxu0
        %831 = vmatpush.bf16.msra.mxu0 %v725
        %832 = vmatpush.bf16.msra.mxu0 %v723
        %833 = vmatpush.bf16.msra.mxu0 %v721
        %834 = vmatpush.bf16.msra.mxu0 %v719
        %835 = vmatpush.bf16.msra.mxu0 %v717
        %836 = vmatpush.bf16.msra.mxu0 %v715
        %837 = vmatpush.bf16.msra.mxu0 %v713
        %838 = vmatpush.bf16.msra.mxu0 %v711
        %839 = vmatmul.bf16.gmra.mxu0 %v640
        %v840 = vpop.f32.mrf.mxu0
        %v841 = vadd.f32 %v659, %v840
        %v842 = vpop.f32.mrf.mxu0
        %v843 = vadd.f32 %v659, %v842
        %844 = vmatmul.bf16.gmra.mxu0 %v641
        %v845 = vpop.f32.mrf.mxu0
        %v846 = vadd.f32 %v659, %v845
        %v847 = vpop.f32.mrf.mxu0
        %v848 = vadd.f32 %v659, %v847
        %849 = vmatmul.bf16.gmra.mxu0 %v642
        %v850 = vpop.f32.mrf.mxu0
        %v851 = vadd.f32 %v659, %v850
        %v852 = vpop.f32.mrf.mxu0
        %v853 = vadd.f32 %v659, %v852
        %854 = vmatmul.bf16.gmra.mxu0 %v643
        %v855 = vpop.f32.mrf.mxu0
        %v856 = vadd.f32 %v659, %v855
        %v857 = vpop.f32.mrf.mxu0
        %v858 = vadd.f32 %v659, %v857
        %859 = vmatmul.bf16.gmra.mxu0 %v644
        %v860 = vpop.f32.mrf.mxu0
        %v861 = vadd.f32 %v659, %v860
        %v862 = vpop.f32.mrf.mxu0
        %v863 = vadd.f32 %v659, %v862
        %864 = vmatmul.bf16.gmra.mxu0 %v645
        %v865 = vpop.f32.mrf.mxu0
        %v866 = vadd.f32 %v659, %v865
        %v867 = vpop.f32.mrf.mxu0
        %v868 = vadd.f32 %v659, %v867
        %869 = vmatmul.bf16.gmra.mxu0 %v646
        %v870 = vpop.f32.mrf.mxu0
        %v871 = vadd.f32 %v659, %v870
        %v872 = vpop.f32.mrf.mxu0
        %v873 = vadd.f32 %v659, %v872
        %874 = vmatmul.bf16.gmra.mxu0 %v647
        %v875 = vpop.f32.mrf.mxu0
        %v876 = vadd.f32 %v659, %v875
        %v877 = vpop.f32.mrf.mxu0
        %v878 = vadd.f32 %v659, %v877
        %879 = vmatmul.bf16.gmra.mxu0 %v648
        %v880 = vpop.f32.mrf.mxu0
        %v881 = vadd.f32 %v659, %v880
        %v882 = vpop.f32.mrf.mxu0
        %v883 = vadd.f32 %v659, %v882
        %884 = vmatmul.bf16.gmra.mxu0 %v649
        %v885 = vpop.f32.mrf.mxu0
        %v886 = vadd.f32 %v659, %v885
        %v887 = vpop.f32.mrf.mxu0
        %v888 = vadd.f32 %v659, %v887
        %889 = vmatmul.bf16.gmra.mxu0 %v650
        %v890 = vpop.f32.mrf.mxu0
        %v891 = vadd.f32 %v659, %v890
        %v892 = vpop.f32.mrf.mxu0
        %v893 = vadd.f32 %v659, %v892
        %894 = vmatmul.bf16.gmra.mxu0 %v651
        %v895 = vpop.f32.mrf.mxu0
        %v896 = vadd.f32 %v659, %v895
        %v897 = vpop.f32.mrf.mxu0
        %v898 = vadd.f32 %v659, %v897
        %899 = vmatmul.bf16.gmra.mxu0 %v652
        %v900 = vpop.f32.mrf.mxu0
        %v901 = vadd.f32 %v659, %v900
        %v902 = vpop.f32.mrf.mxu0
        %v903 = vadd.f32 %v659, %v902
        %904 = vmatmul.bf16.gmra.mxu0 %v653
        %v905 = vpop.f32.mrf.mxu0
        %v906 = vadd.f32 %v659, %v905
        %v907 = vpop.f32.mrf.mxu0
        %v908 = vadd.f32 %v659, %v907
        %909 = vmatmul.bf16.gmra.mxu0 %v654
        %v910 = vpop.f32.mrf.mxu0
        %v911 = vadd.f32 %v659, %v910
        %v912 = vpop.f32.mrf.mxu0
        %v913 = vadd.f32 %v659, %v912
        %914 = vmatmul.bf16.gmra.mxu0 %v655
        %v915 = vpop.f32.mrf.mxu0
        %v916 = vadd.f32 %v659, %v915
        %v917 = vpop.f32.mrf.mxu0
        %v918 = vadd.f32 %v659, %v917
        %919 = vdwg.mxu0
        %s920 = scalar_lea.vmem [#allocation7], 128
        %v921 = vld [vmem:[%s920] sm:$0xff]
        %v922 = vld [vmem:[%s920 + $0x8] sm:$0xff]
        %v923 = vld [vmem:[%s920 + $0x10] sm:$0xff]
        %v924 = vld [vmem:[%s920 + $0x18] sm:$0xff]
        %v925 = vld [vmem:[%s920 + $0x20] sm:$0xff]
        %v926 = vld [vmem:[%s920 + $0x28] sm:$0xff]
        %v927 = vld [vmem:[%s920 + $0x30] sm:$0xff]
        %v928 = vld [vmem:[%s920 + $0x38] sm:$0xff]
        %v929 = vld [vmem:[%s920 + $0x40] sm:$0xff]
        %v930 = vld [vmem:[%s920 + $0x48] sm:$0xff]
        %v931 = vld [vmem:[%s920 + $0x50] sm:$0xff]
        %v932 = vld [vmem:[%s920 + $0x58] sm:$0xff]
        %v933 = vld [vmem:[%s920 + $0x60] sm:$0xff]
        %v934 = vld [vmem:[%s920 + $0x68] sm:$0xff]
        %v935 = vld [vmem:[%s920 + $0x70] sm:$0xff]
        %v936 = vld [vmem:[%s920 + $0x78] sm:$0xff]
        %v937 = vpack.c.bf16 %v593, %v592
        %v938 = vpack.c.bf16 %v595, %v594
        %v939 = vpack.c.bf16 %v597, %v596
        %v940 = vpack.c.bf16 %v599, %v598
        %v941 = vpack.c.bf16 %v601, %v600
        %v942 = vpack.c.bf16 %v603, %v602
        %v943 = vpack.c.bf16 %v605, %v604
        %v944 = vpack.c.bf16 %v607, %v606
        %v945 = vpack.c.bf16 %v609, %v608
        %v946 = vpack.c.bf16 %v611, %v610
        %v947 = vpack.c.bf16 %v613, %v612
        %v948 = vpack.c.bf16 %v615, %v614
        %v949 = vpack.c.bf16 %v617, %v616
        %v950 = vpack.c.bf16 %v619, %v618
        %v951 = vpack.c.bf16 %v621, %v620
        %v952 = vpack.c.bf16 %v623, %v622
        %s953 = scalar_lea.vmem [#allocation8], 1
        %v954 = vld [vmem:[%s953] ss:$2 sm:$0x3]
        %v956 = vperm.slane %v954, 0
        %v957 = vperm.slane %v954, 1
        %v976 = vunpack.c.l.b16 %v921
        %v977 = vunpack.c.h.b16 %v921
        %v978 = vunpack.c.l.b16 %v922
        %v979 = vunpack.c.h.b16 %v922
        %v980 = vunpack.c.l.b16 %v923
        %v981 = vunpack.c.h.b16 %v923
        %v982 = vunpack.c.l.b16 %v924
        %v983 = vunpack.c.h.b16 %v924
        %v984 = vunpack.c.l.b16 %v925
        %v985 = vunpack.c.h.b16 %v925
        %v986 = vunpack.c.l.b16 %v926
        %v987 = vunpack.c.h.b16 %v926
        %v988 = vunpack.c.l.b16 %v927
        %v989 = vunpack.c.h.b16 %v927
        %v990 = vunpack.c.l.b16 %v928
        %v991 = vunpack.c.h.b16 %v928
        %v992 = vunpack.c.l.b16 %v929
        %v993 = vunpack.c.h.b16 %v929
        %v994 = vunpack.c.l.b16 %v930
        %v995 = vunpack.c.h.b16 %v930
        %v996 = vunpack.c.l.b16 %v931
        %v997 = vunpack.c.h.b16 %v931
        %v998 = vunpack.c.l.b16 %v932
        %v999 = vunpack.c.h.b16 %v932
        %v1000 = vunpack.c.l.b16 %v933
        %v1001 = vunpack.c.h.b16 %v933
        %v1002 = vunpack.c.l.b16 %v934
        %v1003 = vunpack.c.h.b16 %v934
        %v1004 = vunpack.c.l.b16 %v935
        %v1005 = vunpack.c.h.b16 %v935
        %v1006 = vunpack.c.l.b16 %v936
        %v1007 = vunpack.c.h.b16 %v936
        %v1008 = vpack.c.b16 %v978, %v976
        %v1009 = vpack.c.b16 %v979, %v977
        %v1010 = vpack.c.b16 %v982, %v980
        %v1011 = vpack.c.b16 %v983, %v981
        %v1012 = vpack.c.b16 %v986, %v984
        %v1013 = vpack.c.b16 %v987, %v985
        %v1014 = vpack.c.b16 %v990, %v988
        %v1015 = vpack.c.b16 %v991, %v989
        %v1016 = vpack.c.b16 %v994, %v992
        %v1017 = vpack.c.b16 %v995, %v993
        %v1018 = vpack.c.b16 %v998, %v996
        %v1019 = vpack.c.b16 %v999, %v997
        %v1020 = vpack.c.b16 %v1002, %v1000
        %v1021 = vpack.c.b16 %v1003, %v1001
        %v1022 = vpack.c.b16 %v1006, %v1004
        %v1023 = vpack.c.b16 %v1007, %v1005
        %1040 = vmatpush.bf16.msra.mxu0 %v1022
        %1041 = vmatpush.bf16.msra.mxu0 %v1020
        %1042 = vmatpush.bf16.msra.mxu0 %v1018
        %1043 = vmatpush.bf16.msra.mxu0 %v1016
        %1044 = vmatpush.bf16.msra.mxu0 %v1014
        %1045 = vmatpush.bf16.msra.mxu0 %v1012
        %1046 = vmatpush.bf16.msra.mxu0 %v1010
        %1047 = vmatpush.bf16.msra.mxu0 %v1008
        %1048 = vmatmul.bf16.gmra.mxu0 %v937
        %v1049 = vpop.f32.mrf.mxu0
        %v1050 = vadd.f32 %v956, %v1049
        %v1051 = vpop.f32.mrf.mxu0
        %v1052 = vadd.f32 %v956, %v1051
        %1053 = vmatmul.bf16.gmra.mxu0 %v938
        %v1054 = vpop.f32.mrf.mxu0
        %v1055 = vadd.f32 %v956, %v1054
        %v1056 = vpop.f32.mrf.mxu0
        %v1057 = vadd.f32 %v956, %v1056
        %1058 = vmatmul.bf16.gmra.mxu0 %v939
        %v1059 = vpop.f32.mrf.mxu0
        %v1060 = vadd.f32 %v956, %v1059
        %v1061 = vpop.f32.mrf.mxu0
        %v1062 = vadd.f32 %v956, %v1061
        %1063 = vmatmul.bf16.gmra.mxu0 %v940
        %v1064 = vpop.f32.mrf.mxu0
        %v1065 = vadd.f32 %v956, %v1064
        %v1066 = vpop.f32.mrf.mxu0
        %v1067 = vadd.f32 %v956, %v1066
        %1068 = vmatmul.bf16.gmra.mxu0 %v941
        %v1069 = vpop.f32.mrf.mxu0
        %v1070 = vadd.f32 %v956, %v1069
        %v1071 = vpop.f32.mrf.mxu0
        %v1072 = vadd.f32 %v956, %v1071
        %1073 = vmatmul.bf16.gmra.mxu0 %v942
        %v1074 = vpop.f32.mrf.mxu0
        %v1075 = vadd.f32 %v956, %v1074
        %v1076 = vpop.f32.mrf.mxu0
        %v1077 = vadd.f32 %v956, %v1076
        %1078 = vmatmul.bf16.gmra.mxu0 %v943
        %v1079 = vpop.f32.mrf.mxu0
        %v1080 = vadd.f32 %v956, %v1079
        %v1081 = vpop.f32.mrf.mxu0
        %v1082 = vadd.f32 %v956, %v1081
        %1083 = vmatmul.bf16.gmra.mxu0 %v944
        %v1084 = vpop.f32.mrf.mxu0
        %v1085 = vadd.f32 %v956, %v1084
        %v1086 = vpop.f32.mrf.mxu0
        %v1087 = vadd.f32 %v956, %v1086
        %1088 = vmatmul.bf16.gmra.mxu0 %v945
        %v1089 = vpop.f32.mrf.mxu0
        %v1090 = vadd.f32 %v956, %v1089
        %v1091 = vpop.f32.mrf.mxu0
        %v1092 = vadd.f32 %v956, %v1091
        %1093 = vmatmul.bf16.gmra.mxu0 %v946
        %v1094 = vpop.f32.mrf.mxu0
        %v1095 = vadd.f32 %v956, %v1094
        %v1096 = vpop.f32.mrf.mxu0
        %v1097 = vadd.f32 %v956, %v1096
        %1098 = vmatmul.bf16.gmra.mxu0 %v947
        %v1099 = vpop.f32.mrf.mxu0
        %v1100 = vadd.f32 %v956, %v1099
        %v1101 = vpop.f32.mrf.mxu0
        %v1102 = vadd.f32 %v956, %v1101
        %1103 = vmatmul.bf16.gmra.mxu0 %v948
        %v1104 = vpop.f32.mrf.mxu0
        %v1105 = vadd.f32 %v956, %v1104
        %v1106 = vpop.f32.mrf.mxu0
        %v1107 = vadd.f32 %v956, %v1106
        %1108 = vmatmul.bf16.gmra.mxu0 %v949
        %v1109 = vpop.f32.mrf.mxu0
        %v1110 = vadd.f32 %v956, %v1109
        %v1111 = vpop.f32.mrf.mxu0
        %v1112 = vadd.f32 %v956, %v1111
        %1113 = vmatmul.bf16.gmra.mxu0 %v950
        %v1114 = vpop.f32.mrf.mxu0
        %v1115 = vadd.f32 %v956, %v1114
        %v1116 = vpop.f32.mrf.mxu0
        %v1117 = vadd.f32 %v956, %v1116
        %1118 = vmatmul.bf16.gmra.mxu0 %v951
        %v1119 = vpop.f32.mrf.mxu0
        %v1120 = vadd.f32 %v956, %v1119
        %v1121 = vpop.f32.mrf.mxu0
        %v1122 = vadd.f32 %v956, %v1121
        %1123 = vmatmul.bf16.gmra.mxu0 %v952
        %v1124 = vpop.f32.mrf.mxu0
        %v1125 = vadd.f32 %v956, %v1124
        %v1126 = vpop.f32.mrf.mxu0
        %v1127 = vadd.f32 %v956, %v1126
        %1128 = vdwg.mxu0
        %1129 = vmatpush.bf16.msra.mxu0 %v1023
        %1130 = vmatpush.bf16.msra.mxu0 %v1021
        %1131 = vmatpush.bf16.msra.mxu0 %v1019
        %1132 = vmatpush.bf16.msra.mxu0 %v1017
        %1133 = vmatpush.bf16.msra.mxu0 %v1015
        %1134 = vmatpush.bf16.msra.mxu0 %v1013
        %1135 = vmatpush.bf16.msra.mxu0 %v1011
        %1136 = vmatpush.bf16.msra.mxu0 %v1009
        %1137 = vmatmul.bf16.gmra.mxu0 %v937
        %v1138 = vpop.f32.mrf.mxu0
        %v1139 = vadd.f32 %v957, %v1138
        %v1140 = vpop.f32.mrf.mxu0
        %v1141 = vadd.f32 %v957, %v1140
        %1142 = vmatmul.bf16.gmra.mxu0 %v938
        %v1143 = vpop.f32.mrf.mxu0
        %v1144 = vadd.f32 %v957, %v1143
        %v1145 = vpop.f32.mrf.mxu0
        %v1146 = vadd.f32 %v957, %v1145
        %1147 = vmatmul.bf16.gmra.mxu0 %v939
        %v1148 = vpop.f32.mrf.mxu0
        %v1149 = vadd.f32 %v957, %v1148
        %v1150 = vpop.f32.mrf.mxu0
        %v1151 = vadd.f32 %v957, %v1150
        %1152 = vmatmul.bf16.gmra.mxu0 %v940
        %v1153 = vpop.f32.mrf.mxu0
        %v1154 = vadd.f32 %v957, %v1153
        %v1155 = vpop.f32.mrf.mxu0
        %v1156 = vadd.f32 %v957, %v1155
        %1157 = vmatmul.bf16.gmra.mxu0 %v941
        %v1158 = vpop.f32.mrf.mxu0
        %v1159 = vadd.f32 %v957, %v1158
        %v1160 = vpop.f32.mrf.mxu0
        %v1161 = vadd.f32 %v957, %v1160
        %1162 = vmatmul.bf16.gmra.mxu0 %v942
        %v1163 = vpop.f32.mrf.mxu0
        %v1164 = vadd.f32 %v957, %v1163
        %v1165 = vpop.f32.mrf.mxu0
        %v1166 = vadd.f32 %v957, %v1165
        %1167 = vmatmul.bf16.gmra.mxu0 %v943
        %v1168 = vpop.f32.mrf.mxu0
        %v1169 = vadd.f32 %v957, %v1168
        %v1170 = vpop.f32.mrf.mxu0
        %v1171 = vadd.f32 %v957, %v1170
        %1172 = vmatmul.bf16.gmra.mxu0 %v944
        %v1173 = vpop.f32.mrf.mxu0
        %v1174 = vadd.f32 %v957, %v1173
        %v1175 = vpop.f32.mrf.mxu0
        %v1176 = vadd.f32 %v957, %v1175
        %1177 = vmatmul.bf16.gmra.mxu0 %v945
        %v1178 = vpop.f32.mrf.mxu0
        %v1179 = vadd.f32 %v957, %v1178
        %v1180 = vpop.f32.mrf.mxu0
        %v1181 = vadd.f32 %v957, %v1180
        %1182 = vmatmul.bf16.gmra.mxu0 %v946
        %v1183 = vpop.f32.mrf.mxu0
        %v1184 = vadd.f32 %v957, %v1183
        %v1185 = vpop.f32.mrf.mxu0
        %v1186 = vadd.f32 %v957, %v1185
        %1187 = vmatmul.bf16.gmra.mxu0 %v947
        %v1188 = vpop.f32.mrf.mxu0
        %v1189 = vadd.f32 %v957, %v1188
        %v1190 = vpop.f32.mrf.mxu0
        %v1191 = vadd.f32 %v957, %v1190
        %1192 = vmatmul.bf16.gmra.mxu0 %v948
        %v1193 = vpop.f32.mrf.mxu0
        %v1194 = vadd.f32 %v957, %v1193
        %v1195 = vpop.f32.mrf.mxu0
        %v1196 = vadd.f32 %v957, %v1195
        %1197 = vmatmul.bf16.gmra.mxu0 %v949
        %v1198 = vpop.f32.mrf.mxu0
        %v1199 = vadd.f32 %v957, %v1198
        %v1200 = vpop.f32.mrf.mxu0
        %v1201 = vadd.f32 %v957, %v1200
        %1202 = vmatmul.bf16.gmra.mxu0 %v950
        %v1203 = vpop.f32.mrf.mxu0
        %v1204 = vadd.f32 %v957, %v1203
        %v1205 = vpop.f32.mrf.mxu0
        %v1206 = vadd.f32 %v957, %v1205
        %1207 = vmatmul.bf16.gmra.mxu0 %v951
        %v1208 = vpop.f32.mrf.mxu0
        %v1209 = vadd.f32 %v957, %v1208
        %v1210 = vpop.f32.mrf.mxu0
        %v1211 = vadd.f32 %v957, %v1210
        %1212 = vmatmul.bf16.gmra.mxu0 %v952
        %v1213 = vpop.f32.mrf.mxu0
        %v1214 = vadd.f32 %v957, %v1213
        %v1215 = vpop.f32.mrf.mxu0
        %v1216 = vadd.f32 %v957, %v1215
        %1217 = vdwg.mxu0
        %v1218 = vmax.f32 %v752, 0.0
        %v1219 = vmax.f32 %v754, 0.0
        %v1220 = vmax.f32 %v757, 0.0
        %v1221 = vmax.f32 %v759, 0.0
        %v1222 = vmax.f32 %v762, 0.0
        %v1223 = vmax.f32 %v764, 0.0
        %v1224 = vmax.f32 %v767, 0.0
        %v1225 = vmax.f32 %v769, 0.0
        %v1226 = vmax.f32 %v772, 0.0
        %v1227 = vmax.f32 %v774, 0.0
        %v1228 = vmax.f32 %v777, 0.0
        %v1229 = vmax.f32 %v779, 0.0
        %v1230 = vmax.f32 %v782, 0.0
        %v1231 = vmax.f32 %v784, 0.0
        %v1232 = vmax.f32 %v787, 0.0
        %v1233 = vmax.f32 %v789, 0.0
        %v1234 = vmax.f32 %v792, 0.0
        %v1235 = vmax.f32 %v794, 0.0
        %v1236 = vmax.f32 %v797, 0.0
        %v1237 = vmax.f32 %v799, 0.0
        %v1238 = vmax.f32 %v802, 0.0
        %v1239 = vmax.f32 %v804, 0.0
        %v1240 = vmax.f32 %v807, 0.0
        %v1241 = vmax.f32 %v809, 0.0
        %v1242 = vmax.f32 %v812, 0.0
        %v1243 = vmax.f32 %v814, 0.0
        %v1244 = vmax.f32 %v817, 0.0
        %v1245 = vmax.f32 %v819, 0.0
        %v1246 = vmax.f32 %v822, 0.0
        %v1247 = vmax.f32 %v824, 0.0
        %v1248 = vmax.f32 %v827, 0.0
        %v1249 = vmax.f32 %v829, 0.0
        %v1250 = vmax.f32 %v1050, 0.0
        %v1251 = vmax.f32 %v1052, 0.0
        %v1252 = vmax.f32 %v1055, 0.0
        %v1253 = vmax.f32 %v1057, 0.0
        %v1254 = vmax.f32 %v1060, 0.0
        %v1255 = vmax.f32 %v1062, 0.0
        %v1256 = vmax.f32 %v1065, 0.0
        %v1257 = vmax.f32 %v1067, 0.0
        %v1258 = vmax.f32 %v1070, 0.0
        %v1259 = vmax.f32 %v1072, 0.0
        %v1260 = vmax.f32 %v1075, 0.0
        %v1261 = vmax.f32 %v1077, 0.0
        %v1262 = vmax.f32 %v1080, 0.0
        %v1263 = vmax.f32 %v1082, 0.0
        %v1264 = vmax.f32 %v1085, 0.0
        %v1265 = vmax.f32 %v1087, 0.0
        %v1266 = vmax.f32 %v1090, 0.0
        %v1267 = vmax.f32 %v1092, 0.0
        %v1268 = vmax.f32 %v1095, 0.0
        %v1269 = vmax.f32 %v1097, 0.0
        %v1270 = vmax.f32 %v1100, 0.0
        %v1271 = vmax.f32 %v1102, 0.0
        %v1272 = vmax.f32 %v1105, 0.0
        %v1273 = vmax.f32 %v1107, 0.0
        %v1274 = vmax.f32 %v1110, 0.0
        %v1275 = vmax.f32 %v1112, 0.0
        %v1276 = vmax.f32 %v1115, 0.0
        %v1277 = vmax.f32 %v1117, 0.0
        %v1278 = vmax.f32 %v1120, 0.0
        %v1279 = vmax.f32 %v1122, 0.0
        %v1280 = vmax.f32 %v1125, 0.0
        %v1281 = vmax.f32 %v1127, 0.0
        %v1282 = vld [vmem:[#allocation10] sm:$0xff]
        %v1283 = vld [vmem:[#allocation10 + $0x8] sm:$0xff]
        %v1284 = vld [vmem:[#allocation10 + $0x10] sm:$0xff]
        %v1285 = vld [vmem:[#allocation10 + $0x18] sm:$0xff]
        %v1286 = vld [vmem:[#allocation10 + $0x20] sm:$0xff]
        %v1287 = vld [vmem:[#allocation10 + $0x28] sm:$0xff]
        %v1288 = vld [vmem:[#allocation10 + $0x30] sm:$0xff]
        %v1289 = vld [vmem:[#allocation10 + $0x38] sm:$0xff]
        %v1290 = vld [vmem:[#allocation10 + $0x40] sm:$0xff]
        %v1291 = vld [vmem:[#allocation10 + $0x48] sm:$0xff]
        %v1292 = vld [vmem:[#allocation10 + $0x50] sm:$0xff]
        %v1293 = vld [vmem:[#allocation10 + $0x58] sm:$0xff]
        %v1294 = vld [vmem:[#allocation10 + $0x60] sm:$0xff]
        %v1295 = vld [vmem:[#allocation10 + $0x68] sm:$0xff]
        %v1296 = vld [vmem:[#allocation10 + $0x70] sm:$0xff]
        %v1297 = vld [vmem:[#allocation10 + $0x78] sm:$0xff]
        %v1298 = vld [vmem:[#allocation10 + $0x80] sm:$0xff]
        %v1299 = vld [vmem:[#allocation10 + $0x88] sm:$0xff]
        %v1300 = vld [vmem:[#allocation10 + $0x90] sm:$0xff]
        %v1301 = vld [vmem:[#allocation10 + $0x98] sm:$0xff]
        %v1302 = vld [vmem:[#allocation10 + $0xa0] sm:$0xff]
        %v1303 = vld [vmem:[#allocation10 + $0xa8] sm:$0xff]
        %v1304 = vld [vmem:[#allocation10 + $0xb0] sm:$0xff]
        %v1305 = vld [vmem:[#allocation10 + $0xb8] sm:$0xff]
        %v1306 = vld [vmem:[#allocation10 + $0xc0] sm:$0xff]
        %v1307 = vld [vmem:[#allocation10 + $0xc8] sm:$0xff]
        %v1308 = vld [vmem:[#allocation10 + $0xd0] sm:$0xff]
        %v1309 = vld [vmem:[#allocation10 + $0xd8] sm:$0xff]
        %v1310 = vld [vmem:[#allocation10 + $0xe0] sm:$0xff]
        %v1311 = vld [vmem:[#allocation10 + $0xe8] sm:$0xff]
        %v1312 = vld [vmem:[#allocation10 + $0xf0] sm:$0xff]
        %v1313 = vld [vmem:[#allocation10 + $0xf8] sm:$0xff]
        %v1314 = vld [vmem:[#allocation10 + $0x100] sm:$0xff]
        %v1315 = vld [vmem:[#allocation10 + $0x108] sm:$0xff]
        %v1316 = vld [vmem:[#allocation10 + $0x110] sm:$0xff]
        %v1317 = vld [vmem:[#allocation10 + $0x118] sm:$0xff]
        %v1318 = vld [vmem:[#allocation10 + $0x120] sm:$0xff]
        %v1319 = vld [vmem:[#allocation10 + $0x128] sm:$0xff]
        %v1320 = vld [vmem:[#allocation10 + $0x130] sm:$0xff]
        %v1321 = vld [vmem:[#allocation10 + $0x138] sm:$0xff]
        %v1322 = vld [vmem:[#allocation10 + $0x140] sm:$0xff]
        %v1323 = vld [vmem:[#allocation10 + $0x148] sm:$0xff]
        %v1324 = vld [vmem:[#allocation10 + $0x150] sm:$0xff]
        %v1325 = vld [vmem:[#allocation10 + $0x158] sm:$0xff]
        %v1326 = vld [vmem:[#allocation10 + $0x160] sm:$0xff]
        %v1327 = vld [vmem:[#allocation10 + $0x168] sm:$0xff]
        %v1328 = vld [vmem:[#allocation10 + $0x170] sm:$0xff]
        %v1329 = vld [vmem:[#allocation10 + $0x178] sm:$0xff]
        %v1330 = vld [vmem:[#allocation10 + $0x180] sm:$0xff]
        %v1331 = vld [vmem:[#allocation10 + $0x188] sm:$0xff]
        %v1332 = vld [vmem:[#allocation10 + $0x190] sm:$0xff]
        %v1333 = vld [vmem:[#allocation10 + $0x198] sm:$0xff]
        %v1334 = vld [vmem:[#allocation10 + $0x1a0] sm:$0xff]
        %v1335 = vld [vmem:[#allocation10 + $0x1a8] sm:$0xff]
        %v1336 = vld [vmem:[#allocation10 + $0x1b0] sm:$0xff]
        %v1337 = vld [vmem:[#allocation10 + $0x1b8] sm:$0xff]
        %v1338 = vld [vmem:[#allocation10 + $0x1c0] sm:$0xff]
        %v1339 = vld [vmem:[#allocation10 + $0x1c8] sm:$0xff]
        %v1340 = vld [vmem:[#allocation10 + $0x1d0] sm:$0xff]
        %v1341 = vld [vmem:[#allocation10 + $0x1d8] sm:$0xff]
        %v1342 = vld [vmem:[#allocation10 + $0x1e0] sm:$0xff]
        %v1343 = vld [vmem:[#allocation10 + $0x1e8] sm:$0xff]
        %v1344 = vld [vmem:[#allocation10 + $0x1f0] sm:$0xff]
        %v1345 = vld [vmem:[#allocation10 + $0x1f8] sm:$0xff]
        %v1346 = vpack.c.bf16 %v1219, %v1218
        %v1347 = vpack.c.bf16 %v1251, %v1250
        %v1348 = vpack.c.bf16 %v1221, %v1220
        %v1349 = vpack.c.bf16 %v1253, %v1252
        %v1350 = vpack.c.bf16 %v1223, %v1222
        %v1351 = vpack.c.bf16 %v1255, %v1254
        %v1352 = vpack.c.bf16 %v1225, %v1224
        %v1353 = vpack.c.bf16 %v1257, %v1256
        %v1354 = vpack.c.bf16 %v1227, %v1226
        %v1355 = vpack.c.bf16 %v1259, %v1258
        %v1356 = vpack.c.bf16 %v1229, %v1228
        %v1357 = vpack.c.bf16 %v1261, %v1260
        %v1358 = vpack.c.bf16 %v1231, %v1230
        %v1359 = vpack.c.bf16 %v1263, %v1262
        %v1360 = vpack.c.bf16 %v1233, %v1232
        %v1361 = vpack.c.bf16 %v1265, %v1264
        %v1362 = vpack.c.bf16 %v1235, %v1234
        %v1363 = vpack.c.bf16 %v1267, %v1266
        %v1364 = vpack.c.bf16 %v1237, %v1236
        %v1365 = vpack.c.bf16 %v1269, %v1268
        %v1366 = vpack.c.bf16 %v1239, %v1238
        %v1367 = vpack.c.bf16 %v1271, %v1270
        %v1368 = vpack.c.bf16 %v1241, %v1240
        %v1369 = vpack.c.bf16 %v1273, %v1272
        %v1370 = vpack.c.bf16 %v1243, %v1242
        %v1371 = vpack.c.bf16 %v1275, %v1274
        %v1372 = vpack.c.bf16 %v1245, %v1244
        %v1373 = vpack.c.bf16 %v1277, %v1276
        %v1374 = vpack.c.bf16 %v1247, %v1246
        %v1375 = vpack.c.bf16 %v1279, %v1278
        %v1376 = vpack.c.bf16 %v1249, %v1248
        %v1377 = vpack.c.bf16 %v1281, %v1280
        %v1378 = vld [vmem:[%s5] sm:$0xf]
        %v1380 = vperm.slane %v1378, 0
        %v1381 = vperm.slane %v1378, 1
        %v1382 = vperm.slane %v1378, 2
        %v1383 = vperm.slane %v1378, 3
        %v1452 = vunpack.c.l.b16 %v1282
        %v1453 = vunpack.c.h.b16 %v1282
        %v1454 = vunpack.c.l.b16 %v1283
        %v1455 = vunpack.c.h.b16 %v1283
        %v1456 = vunpack.c.l.b16 %v1284
        %v1457 = vunpack.c.h.b16 %v1284
        %v1458 = vunpack.c.l.b16 %v1285
        %v1459 = vunpack.c.h.b16 %v1285
        %v1460 = vunpack.c.l.b16 %v1286
        %v1461 = vunpack.c.h.b16 %v1286
        %v1462 = vunpack.c.l.b16 %v1287
        %v1463 = vunpack.c.h.b16 %v1287
        %v1464 = vunpack.c.l.b16 %v1288
        %v1465 = vunpack.c.h.b16 %v1288
        %v1466 = vunpack.c.l.b16 %v1289
        %v1467 = vunpack.c.h.b16 %v1289
        %v1468 = vunpack.c.l.b16 %v1290
        %v1469 = vunpack.c.h.b16 %v1290
        %v1470 = vunpack.c.l.b16 %v1291
        %v1471 = vunpack.c.h.b16 %v1291
        %v1472 = vunpack.c.l.b16 %v1292
        %v1473 = vunpack.c.h.b16 %v1292
        %v1474 = vunpack.c.l.b16 %v1293
        %v1475 = vunpack.c.h.b16 %v1293
        %v1476 = vunpack.c.l.b16 %v1294
        %v1477 = vunpack.c.h.b16 %v1294
        %v1478 = vunpack.c.l.b16 %v1295
        %v1479 = vunpack.c.h.b16 %v1295
        %v1480 = vunpack.c.l.b16 %v1296
        %v1481 = vunpack.c.h.b16 %v1296
        %v1482 = vunpack.c.l.b16 %v1297
        %v1483 = vunpack.c.h.b16 %v1297
        %v1484 = vunpack.c.l.b16 %v1298
        %v1485 = vunpack.c.h.b16 %v1298
        %v1486 = vunpack.c.l.b16 %v1299
        %v1487 = vunpack.c.h.b16 %v1299
        %v1488 = vunpack.c.l.b16 %v1300
        %v1489 = vunpack.c.h.b16 %v1300
        %v1490 = vunpack.c.l.b16 %v1301
        %v1491 = vunpack.c.h.b16 %v1301
        %v1492 = vunpack.c.l.b16 %v1302
        %v1493 = vunpack.c.h.b16 %v1302
        %v1494 = vunpack.c.l.b16 %v1303
        %v1495 = vunpack.c.h.b16 %v1303
        %v1496 = vunpack.c.l.b16 %v1304
        %v1497 = vunpack.c.h.b16 %v1304
        %v1498 = vunpack.c.l.b16 %v1305
        %v1499 = vunpack.c.h.b16 %v1305
        %v1500 = vunpack.c.l.b16 %v1306
        %v1501 = vunpack.c.h.b16 %v1306
        %v1502 = vunpack.c.l.b16 %v1307
        %v1503 = vunpack.c.h.b16 %v1307
        %v1504 = vunpack.c.l.b16 %v1308
        %v1505 = vunpack.c.h.b16 %v1308
        %v1506 = vunpack.c.l.b16 %v1309
        %v1507 = vunpack.c.h.b16 %v1309
        %v1508 = vunpack.c.l.b16 %v1310
        %v1509 = vunpack.c.h.b16 %v1310
        %v1510 = vunpack.c.l.b16 %v1311
        %v1511 = vunpack.c.h.b16 %v1311
        %v1512 = vunpack.c.l.b16 %v1312
        %v1513 = vunpack.c.h.b16 %v1312
        %v1514 = vunpack.c.l.b16 %v1313
        %v1515 = vunpack.c.h.b16 %v1313
        %v1516 = vunpack.c.l.b16 %v1314
        %v1517 = vunpack.c.h.b16 %v1314
        %v1518 = vunpack.c.l.b16 %v1315
        %v1519 = vunpack.c.h.b16 %v1315
        %v1520 = vunpack.c.l.b16 %v1316
        %v1521 = vunpack.c.h.b16 %v1316
        %v1522 = vunpack.c.l.b16 %v1317
        %v1523 = vunpack.c.h.b16 %v1317
        %v1524 = vunpack.c.l.b16 %v1318
        %v1525 = vunpack.c.h.b16 %v1318
        %v1526 = vunpack.c.l.b16 %v1319
        %v1527 = vunpack.c.h.b16 %v1319
        %v1528 = vunpack.c.l.b16 %v1320
        %v1529 = vunpack.c.h.b16 %v1320
        %v1530 = vunpack.c.l.b16 %v1321
        %v1531 = vunpack.c.h.b16 %v1321
        %v1532 = vunpack.c.l.b16 %v1322
        %v1533 = vunpack.c.h.b16 %v1322
        %v1534 = vunpack.c.l.b16 %v1323
        %v1535 = vunpack.c.h.b16 %v1323
        %v1536 = vunpack.c.l.b16 %v1324
        %v1537 = vunpack.c.h.b16 %v1324
        %v1538 = vunpack.c.l.b16 %v1325
        %v1539 = vunpack.c.h.b16 %v1325
        %v1540 = vunpack.c.l.b16 %v1326
        %v1541 = vunpack.c.h.b16 %v1326
        %v1542 = vunpack.c.l.b16 %v1327
        %v1543 = vunpack.c.h.b16 %v1327
        %v1544 = vunpack.c.l.b16 %v1328
        %v1545 = vunpack.c.h.b16 %v1328
        %v1546 = vunpack.c.l.b16 %v1329
        %v1547 = vunpack.c.h.b16 %v1329
        %v1548 = vunpack.c.l.b16 %v1330
        %v1549 = vunpack.c.h.b16 %v1330
        %v1550 = vunpack.c.l.b16 %v1331
        %v1551 = vunpack.c.h.b16 %v1331
        %v1552 = vunpack.c.l.b16 %v1332
        %v1553 = vunpack.c.h.b16 %v1332
        %v1554 = vunpack.c.l.b16 %v1333
        %v1555 = vunpack.c.h.b16 %v1333
        %v1556 = vunpack.c.l.b16 %v1334
        %v1557 = vunpack.c.h.b16 %v1334
        %v1558 = vunpack.c.l.b16 %v1335
        %v1559 = vunpack.c.h.b16 %v1335
        %v1560 = vunpack.c.l.b16 %v1336
        %v1561 = vunpack.c.h.b16 %v1336
        %v1562 = vunpack.c.l.b16 %v1337
        %v1563 = vunpack.c.h.b16 %v1337
        %v1564 = vunpack.c.l.b16 %v1338
        %v1565 = vunpack.c.h.b16 %v1338
        %v1566 = vunpack.c.l.b16 %v1339
        %v1567 = vunpack.c.h.b16 %v1339
        %v1568 = vunpack.c.l.b16 %v1340
        %v1569 = vunpack.c.h.b16 %v1340
        %v1570 = vunpack.c.l.b16 %v1341
        %v1571 = vunpack.c.h.b16 %v1341
        %v1572 = vunpack.c.l.b16 %v1342
        %v1573 = vunpack.c.h.b16 %v1342
        %v1574 = vunpack.c.l.b16 %v1343
        %v1575 = vunpack.c.h.b16 %v1343
        %v1576 = vunpack.c.l.b16 %v1344
        %v1577 = vunpack.c.h.b16 %v1344
        %v1578 = vunpack.c.l.b16 %v1345
        %v1579 = vunpack.c.h.b16 %v1345
        %v1580 = vpack.c.b16 %v1456, %v1452
        %v1581 = vpack.c.b16 %v1457, %v1453
        %v1582 = vpack.c.b16 %v1458, %v1454
        %v1583 = vpack.c.b16 %v1459, %v1455
        %v1584 = vpack.c.b16 %v1464, %v1460
        %v1585 = vpack.c.b16 %v1465, %v1461
        %v1586 = vpack.c.b16 %v1466, %v1462
        %v1587 = vpack.c.b16 %v1467, %v1463
        %v1588 = vpack.c.b16 %v1472, %v1468
        %v1589 = vpack.c.b16 %v1473, %v1469
        %v1590 = vpack.c.b16 %v1474, %v1470
        %v1591 = vpack.c.b16 %v1475, %v1471
        %v1592 = vpack.c.b16 %v1480, %v1476
        %v1593 = vpack.c.b16 %v1481, %v1477
        %v1594 = vpack.c.b16 %v1482, %v1478
        %v1595 = vpack.c.b16 %v1483, %v1479
        %v1596 = vpack.c.b16 %v1488, %v1484
        %v1597 = vpack.c.b16 %v1489, %v1485
        %v1598 = vpack.c.b16 %v1490, %v1486
        %v1599 = vpack.c.b16 %v1491, %v1487
        %v1600 = vpack.c.b16 %v1496, %v1492
        %v1601 = vpack.c.b16 %v1497, %v1493
        %v1602 = vpack.c.b16 %v1498, %v1494
        %v1603 = vpack.c.b16 %v1499, %v1495
        %v1604 = vpack.c.b16 %v1504, %v1500
        %v1605 = vpack.c.b16 %v1505, %v1501
        %v1606 = vpack.c.b16 %v1506, %v1502
        %v1607 = vpack.c.b16 %v1507, %v1503
        %v1608 = vpack.c.b16 %v1512, %v1508
        %v1609 = vpack.c.b16 %v1513, %v1509
        %v1610 = vpack.c.b16 %v1514, %v1510
        %v1611 = vpack.c.b16 %v1515, %v1511
        %v1612 = vpack.c.b16 %v1520, %v1516
        %v1613 = vpack.c.b16 %v1521, %v1517
        %v1614 = vpack.c.b16 %v1522, %v1518
        %v1615 = vpack.c.b16 %v1523, %v1519
        %v1616 = vpack.c.b16 %v1528, %v1524
        %v1617 = vpack.c.b16 %v1529, %v1525
        %v1618 = vpack.c.b16 %v1530, %v1526
        %v1619 = vpack.c.b16 %v1531, %v1527
        %v1620 = vpack.c.b16 %v1536, %v1532
        %v1621 = vpack.c.b16 %v1537, %v1533
        %v1622 = vpack.c.b16 %v1538, %v1534
        %v1623 = vpack.c.b16 %v1539, %v1535
        %v1624 = vpack.c.b16 %v1544, %v1540
        %v1625 = vpack.c.b16 %v1545, %v1541
        %v1626 = vpack.c.b16 %v1546, %v1542
        %v1627 = vpack.c.b16 %v1547, %v1543
        %v1628 = vpack.c.b16 %v1552, %v1548
        %v1629 = vpack.c.b16 %v1553, %v1549
        %v1630 = vpack.c.b16 %v1554, %v1550
        %v1631 = vpack.c.b16 %v1555, %v1551
        %v1632 = vpack.c.b16 %v1560, %v1556
        %v1633 = vpack.c.b16 %v1561, %v1557
        %v1634 = vpack.c.b16 %v1562, %v1558
        %v1635 = vpack.c.b16 %v1563, %v1559
        %v1636 = vpack.c.b16 %v1568, %v1564
        %v1637 = vpack.c.b16 %v1569, %v1565
        %v1638 = vpack.c.b16 %v1570, %v1566
        %v1639 = vpack.c.b16 %v1571, %v1567
        %v1640 = vpack.c.b16 %v1576, %v1572
        %v1641 = vpack.c.b16 %v1577, %v1573
        %v1642 = vpack.c.b16 %v1578, %v1574
        %v1643 = vpack.c.b16 %v1579, %v1575
        %1708 = vmatpush.bf16.msra.mxu0 %v1608
        %1709 = vmatpush.bf16.msra.mxu0 %v1604
        %1710 = vmatpush.bf16.msra.mxu0 %v1600
        %1711 = vmatpush.bf16.msra.mxu0 %v1596
        %1712 = vmatpush.bf16.msra.mxu0 %v1592
        %1713 = vmatpush.bf16.msra.mxu0 %v1588
        %1714 = vmatpush.bf16.msra.mxu0 %v1584
        %1715 = vmatpush.bf16.msra.mxu0 %v1580
        %1716 = vmatmul.bf16.gmra.mxu0 %v1346
        %v1717 = vpop.f32.mrf.mxu0
        %v1718 = vadd.f32 %v1380, %v1717
        %v1719 = vpop.f32.mrf.mxu0
        %v1720 = vadd.f32 %v1380, %v1719
        %1721 = vmatmul.bf16.gmra.mxu0 %v1348
        %v1722 = vpop.f32.mrf.mxu0
        %v1723 = vadd.f32 %v1380, %v1722
        %v1724 = vpop.f32.mrf.mxu0
        %v1725 = vadd.f32 %v1380, %v1724
        %1726 = vmatmul.bf16.gmra.mxu0 %v1350
        %v1727 = vpop.f32.mrf.mxu0
        %v1728 = vadd.f32 %v1380, %v1727
        %v1729 = vpop.f32.mrf.mxu0
        %v1730 = vadd.f32 %v1380, %v1729
        %1731 = vmatmul.bf16.gmra.mxu0 %v1352
        %v1732 = vpop.f32.mrf.mxu0
        %v1733 = vadd.f32 %v1380, %v1732
        %v1734 = vpop.f32.mrf.mxu0
        %v1735 = vadd.f32 %v1380, %v1734
        %1736 = vmatmul.bf16.gmra.mxu0 %v1354
        %v1737 = vpop.f32.mrf.mxu0
        %v1738 = vadd.f32 %v1380, %v1737
        %v1739 = vpop.f32.mrf.mxu0
        %v1740 = vadd.f32 %v1380, %v1739
        %1741 = vmatmul.bf16.gmra.mxu0 %v1356
        %v1742 = vpop.f32.mrf.mxu0
        %v1743 = vadd.f32 %v1380, %v1742
        %v1744 = vpop.f32.mrf.mxu0
        %v1745 = vadd.f32 %v1380, %v1744
        %1746 = vmatmul.bf16.gmra.mxu0 %v1358
        %v1747 = vpop.f32.mrf.mxu0
        %v1748 = vadd.f32 %v1380, %v1747
        %v1749 = vpop.f32.mrf.mxu0
        %v1750 = vadd.f32 %v1380, %v1749
        %1751 = vmatmul.bf16.gmra.mxu0 %v1360
        %v1752 = vpop.f32.mrf.mxu0
        %v1753 = vadd.f32 %v1380, %v1752
        %v1754 = vpop.f32.mrf.mxu0
        %v1755 = vadd.f32 %v1380, %v1754
        %1756 = vmatmul.bf16.gmra.mxu0 %v1362
        %v1757 = vpop.f32.mrf.mxu0
        %v1758 = vadd.f32 %v1380, %v1757
        %v1759 = vpop.f32.mrf.mxu0
        %v1760 = vadd.f32 %v1380, %v1759
        %1761 = vmatmul.bf16.gmra.mxu0 %v1364
        %v1762 = vpop.f32.mrf.mxu0
        %v1763 = vadd.f32 %v1380, %v1762
        %v1764 = vpop.f32.mrf.mxu0
        %v1765 = vadd.f32 %v1380, %v1764
        %1766 = vmatmul.bf16.gmra.mxu0 %v1366
        %v1767 = vpop.f32.mrf.mxu0
        %v1768 = vadd.f32 %v1380, %v1767
        %v1769 = vpop.f32.mrf.mxu0
        %v1770 = vadd.f32 %v1380, %v1769
        %1771 = vmatmul.bf16.gmra.mxu0 %v1368
        %v1772 = vpop.f32.mrf.mxu0
        %v1773 = vadd.f32 %v1380, %v1772
        %v1774 = vpop.f32.mrf.mxu0
        %v1775 = vadd.f32 %v1380, %v1774
        %1776 = vmatmul.bf16.gmra.mxu0 %v1370
        %v1777 = vpop.f32.mrf.mxu0
        %v1778 = vadd.f32 %v1380, %v1777
        %v1779 = vpop.f32.mrf.mxu0
        %v1780 = vadd.f32 %v1380, %v1779
        %1781 = vmatmul.bf16.gmra.mxu0 %v1372
        %v1782 = vpop.f32.mrf.mxu0
        %v1783 = vadd.f32 %v1380, %v1782
        %v1784 = vpop.f32.mrf.mxu0
        %v1785 = vadd.f32 %v1380, %v1784
        %1786 = vmatmul.bf16.gmra.mxu0 %v1374
        %v1787 = vpop.f32.mrf.mxu0
        %v1788 = vadd.f32 %v1380, %v1787
        %v1789 = vpop.f32.mrf.mxu0
        %v1790 = vadd.f32 %v1380, %v1789
        %1791 = vmatmul.bf16.gmra.mxu0 %v1376
        %v1792 = vpop.f32.mrf.mxu0
        %v1793 = vadd.f32 %v1380, %v1792
        %v1794 = vpop.f32.mrf.mxu0
        %v1795 = vadd.f32 %v1380, %v1794
        %1796 = vdwg.mxu0
        %1797 = vmatpush.bf16.msra.mxu0 %v1640
        %1798 = vmatpush.bf16.msra.mxu0 %v1636
        %1799 = vmatpush.bf16.msra.mxu0 %v1632
        %1800 = vmatpush.bf16.msra.mxu0 %v1628
        %1801 = vmatpush.bf16.msra.mxu0 %v1624
        %1802 = vmatpush.bf16.msra.mxu0 %v1620
        %1803 = vmatpush.bf16.msra.mxu0 %v1616
        %1804 = vmatpush.bf16.msra.mxu0 %v1612
        %1805 = vmatmul.bf16.gmra.mxu0 %v1347
        %v1806 = vpop.f32.mrf.mxu0
        %v1807 = vadd.f32 %v1718, %v1806
        %v1808 = vpop.f32.mrf.mxu0
        %v1809 = vadd.f32 %v1720, %v1808
        %1810 = vmatmul.bf16.gmra.mxu0 %v1349
        %v1811 = vpop.f32.mrf.mxu0
        %v1812 = vadd.f32 %v1723, %v1811
        %v1813 = vpop.f32.mrf.mxu0
        %v1814 = vadd.f32 %v1725, %v1813
        %1815 = vmatmul.bf16.gmra.mxu0 %v1351
        %v1816 = vpop.f32.mrf.mxu0
        %v1817 = vadd.f32 %v1728, %v1816
        %v1818 = vpop.f32.mrf.mxu0
        %v1819 = vadd.f32 %v1730, %v1818
        %1820 = vmatmul.bf16.gmra.mxu0 %v1353
        %v1821 = vpop.f32.mrf.mxu0
        %v1822 = vadd.f32 %v1733, %v1821
        %v1823 = vpop.f32.mrf.mxu0
        %v1824 = vadd.f32 %v1735, %v1823
        %1825 = vmatmul.bf16.gmra.mxu0 %v1355
        %v1826 = vpop.f32.mrf.mxu0
        %v1827 = vadd.f32 %v1738, %v1826
        %v1828 = vpop.f32.mrf.mxu0
        %v1829 = vadd.f32 %v1740, %v1828
        %1830 = vmatmul.bf16.gmra.mxu0 %v1357
        %v1831 = vpop.f32.mrf.mxu0
        %v1832 = vadd.f32 %v1743, %v1831
        %v1833 = vpop.f32.mrf.mxu0
        %v1834 = vadd.f32 %v1745, %v1833
        %1835 = vmatmul.bf16.gmra.mxu0 %v1359
        %v1836 = vpop.f32.mrf.mxu0
        %v1837 = vadd.f32 %v1748, %v1836
        %v1838 = vpop.f32.mrf.mxu0
        %v1839 = vadd.f32 %v1750, %v1838
        %1840 = vmatmul.bf16.gmra.mxu0 %v1361
        %v1841 = vpop.f32.mrf.mxu0
        %v1842 = vadd.f32 %v1753, %v1841
        %v1843 = vpop.f32.mrf.mxu0
        %v1844 = vadd.f32 %v1755, %v1843
        %1845 = vmatmul.bf16.gmra.mxu0 %v1363
        %v1846 = vpop.f32.mrf.mxu0
        %v1847 = vadd.f32 %v1758, %v1846
        %v1848 = vpop.f32.mrf.mxu0
        %v1849 = vadd.f32 %v1760, %v1848
        %1850 = vmatmul.bf16.gmra.mxu0 %v1365
        %v1851 = vpop.f32.mrf.mxu0
        %v1852 = vadd.f32 %v1763, %v1851
        %v1853 = vpop.f32.mrf.mxu0
        %v1854 = vadd.f32 %v1765, %v1853
        %1855 = vmatmul.bf16.gmra.mxu0 %v1367
        %v1856 = vpop.f32.mrf.mxu0
        %v1857 = vadd.f32 %v1768, %v1856
        %v1858 = vpop.f32.mrf.mxu0
        %v1859 = vadd.f32 %v1770, %v1858
        %1860 = vmatmul.bf16.gmra.mxu0 %v1369
        %v1861 = vpop.f32.mrf.mxu0
        %v1862 = vadd.f32 %v1773, %v1861
        %v1863 = vpop.f32.mrf.mxu0
        %v1864 = vadd.f32 %v1775, %v1863
        %1865 = vmatmul.bf16.gmra.mxu0 %v1371
        %v1866 = vpop.f32.mrf.mxu0
        %v1867 = vadd.f32 %v1778, %v1866
        %v1868 = vpop.f32.mrf.mxu0
        %v1869 = vadd.f32 %v1780, %v1868
        %1870 = vmatmul.bf16.gmra.mxu0 %v1373
        %v1871 = vpop.f32.mrf.mxu0
        %v1872 = vadd.f32 %v1783, %v1871
        %v1873 = vpop.f32.mrf.mxu0
        %v1874 = vadd.f32 %v1785, %v1873
        %1875 = vmatmul.bf16.gmra.mxu0 %v1375
        %v1876 = vpop.f32.mrf.mxu0
        %v1877 = vadd.f32 %v1788, %v1876
        %v1878 = vpop.f32.mrf.mxu0
        %v1879 = vadd.f32 %v1790, %v1878
        %1880 = vmatmul.bf16.gmra.mxu0 %v1377
        %v1881 = vpop.f32.mrf.mxu0
        %v1882 = vadd.f32 %v1793, %v1881
        %v1883 = vpop.f32.mrf.mxu0
        %v1884 = vadd.f32 %v1795, %v1883
        %1885 = vdwg.mxu0
        %1886 = vmatpush.bf16.msra.mxu0 %v1609
        %1887 = vmatpush.bf16.msra.mxu0 %v1605
        %1888 = vmatpush.bf16.msra.mxu0 %v1601
        %1889 = vmatpush.bf16.msra.mxu0 %v1597
        %1890 = vmatpush.bf16.msra.mxu0 %v1593
        %1891 = vmatpush.bf16.msra.mxu0 %v1589
        %1892 = vmatpush.bf16.msra.mxu0 %v1585
        %1893 = vmatpush.bf16.msra.mxu0 %v1581
        %1894 = vmatmul.bf16.gmra.mxu0 %v1346
        %v1895 = vpop.f32.mrf.mxu0
        %v1896 = vadd.f32 %v1381, %v1895
        %v1897 = vpop.f32.mrf.mxu0
        %v1898 = vadd.f32 %v1381, %v1897
        %1899 = vmatmul.bf16.gmra.mxu0 %v1348
        %v1900 = vpop.f32.mrf.mxu0
        %v1901 = vadd.f32 %v1381, %v1900
        %v1902 = vpop.f32.mrf.mxu0
        %v1903 = vadd.f32 %v1381, %v1902
        %1904 = vmatmul.bf16.gmra.mxu0 %v1350
        %v1905 = vpop.f32.mrf.mxu0
        %v1906 = vadd.f32 %v1381, %v1905
        %v1907 = vpop.f32.mrf.mxu0
        %v1908 = vadd.f32 %v1381, %v1907
        %1909 = vmatmul.bf16.gmra.mxu0 %v1352
        %v1910 = vpop.f32.mrf.mxu0
        %v1911 = vadd.f32 %v1381, %v1910
        %v1912 = vpop.f32.mrf.mxu0
        %v1913 = vadd.f32 %v1381, %v1912
        %1914 = vmatmul.bf16.gmra.mxu0 %v1354
        %v1915 = vpop.f32.mrf.mxu0
        %v1916 = vadd.f32 %v1381, %v1915
        %v1917 = vpop.f32.mrf.mxu0
        %v1918 = vadd.f32 %v1381, %v1917
        %1919 = vmatmul.bf16.gmra.mxu0 %v1356
        %v1920 = vpop.f32.mrf.mxu0
        %v1921 = vadd.f32 %v1381, %v1920
        %v1922 = vpop.f32.mrf.mxu0
        %v1923 = vadd.f32 %v1381, %v1922
        %1924 = vmatmul.bf16.gmra.mxu0 %v1358
        %v1925 = vpop.f32.mrf.mxu0
        %v1926 = vadd.f32 %v1381, %v1925
        %v1927 = vpop.f32.mrf.mxu0
        %v1928 = vadd.f32 %v1381, %v1927
        %1929 = vmatmul.bf16.gmra.mxu0 %v1360
        %v1930 = vpop.f32.mrf.mxu0
        %v1931 = vadd.f32 %v1381, %v1930
        %v1932 = vpop.f32.mrf.mxu0
        %v1933 = vadd.f32 %v1381, %v1932
        %1934 = vmatmul.bf16.gmra.mxu0 %v1362
        %v1935 = vpop.f32.mrf.mxu0
        %v1936 = vadd.f32 %v1381, %v1935
        %v1937 = vpop.f32.mrf.mxu0
        %v1938 = vadd.f32 %v1381, %v1937
        %1939 = vmatmul.bf16.gmra.mxu0 %v1364
        %v1940 = vpop.f32.mrf.mxu0
        %v1941 = vadd.f32 %v1381, %v1940
        %v1942 = vpop.f32.mrf.mxu0
        %v1943 = vadd.f32 %v1381, %v1942
        %1944 = vmatmul.bf16.gmra.mxu0 %v1366
        %v1945 = vpop.f32.mrf.mxu0
        %v1946 = vadd.f32 %v1381, %v1945
        %v1947 = vpop.f32.mrf.mxu0
        %v1948 = vadd.f32 %v1381, %v1947
        %1949 = vmatmul.bf16.gmra.mxu0 %v1368
        %v1950 = vpop.f32.mrf.mxu0
        %v1951 = vadd.f32 %v1381, %v1950
        %v1952 = vpop.f32.mrf.mxu0
        %v1953 = vadd.f32 %v1381, %v1952
        %1954 = vmatmul.bf16.gmra.mxu0 %v1370
        %v1955 = vpop.f32.mrf.mxu0
        %v1956 = vadd.f32 %v1381, %v1955
        %v1957 = vpop.f32.mrf.mxu0
        %v1958 = vadd.f32 %v1381, %v1957
        %1959 = vmatmul.bf16.gmra.mxu0 %v1372
        %v1960 = vpop.f32.mrf.mxu0
        %v1961 = vadd.f32 %v1381, %v1960
        %v1962 = vpop.f32.mrf.mxu0
        %v1963 = vadd.f32 %v1381, %v1962
        %1964 = vmatmul.bf16.gmra.mxu0 %v1374
        %v1965 = vpop.f32.mrf.mxu0
        %v1966 = vadd.f32 %v1381, %v1965
        %v1967 = vpop.f32.mrf.mxu0
        %v1968 = vadd.f32 %v1381, %v1967
        %1969 = vmatmul.bf16.gmra.mxu0 %v1376
        %v1970 = vpop.f32.mrf.mxu0
        %v1971 = vadd.f32 %v1381, %v1970
        %v1972 = vpop.f32.mrf.mxu0
        %v1973 = vadd.f32 %v1381, %v1972
        %1974 = vdwg.mxu0
        %1975 = vmatpush.bf16.msra.mxu0 %v1641
        %1976 = vmatpush.bf16.msra.mxu0 %v1637
        %1977 = vmatpush.bf16.msra.mxu0 %v1633
        %1978 = vmatpush.bf16.msra.mxu0 %v1629
        %1979 = vmatpush.bf16.msra.mxu0 %v1625
        %1980 = vmatpush.bf16.msra.mxu0 %v1621
        %1981 = vmatpush.bf16.msra.mxu0 %v1617
        %1982 = vmatpush.bf16.msra.mxu0 %v1613
        %1983 = vmatmul.bf16.gmra.mxu0 %v1347
        %v1984 = vpop.f32.mrf.mxu0
        %v1985 = vadd.f32 %v1896, %v1984
        %v1986 = vpop.f32.mrf.mxu0
        %v1987 = vadd.f32 %v1898, %v1986
        %1988 = vmatmul.bf16.gmra.mxu0 %v1349
        %v1989 = vpop.f32.mrf.mxu0
        %v1990 = vadd.f32 %v1901, %v1989
        %v1991 = vpop.f32.mrf.mxu0
        %v1992 = vadd.f32 %v1903, %v1991
        %1993 = vmatmul.bf16.gmra.mxu0 %v1351
        %v1994 = vpop.f32.mrf.mxu0
        %v1995 = vadd.f32 %v1906, %v1994
        %v1996 = vpop.f32.mrf.mxu0
        %v1997 = vadd.f32 %v1908, %v1996
        %1998 = vmatmul.bf16.gmra.mxu0 %v1353
        %v1999 = vpop.f32.mrf.mxu0
        %v2000 = vadd.f32 %v1911, %v1999
        %v2001 = vpop.f32.mrf.mxu0
        %v2002 = vadd.f32 %v1913, %v2001
        %2003 = vmatmul.bf16.gmra.mxu0 %v1355
        %v2004 = vpop.f32.mrf.mxu0
        %v2005 = vadd.f32 %v1916, %v2004
        %v2006 = vpop.f32.mrf.mxu0
        %v2007 = vadd.f32 %v1918, %v2006
        %2008 = vmatmul.bf16.gmra.mxu0 %v1357
        %v2009 = vpop.f32.mrf.mxu0
        %v2010 = vadd.f32 %v1921, %v2009
        %v2011 = vpop.f32.mrf.mxu0
        %v2012 = vadd.f32 %v1923, %v2011
        %2013 = vmatmul.bf16.gmra.mxu0 %v1359
        %v2014 = vpop.f32.mrf.mxu0
        %v2015 = vadd.f32 %v1926, %v2014
        %v2016 = vpop.f32.mrf.mxu0
        %v2017 = vadd.f32 %v1928, %v2016
        %2018 = vmatmul.bf16.gmra.mxu0 %v1361
        %v2019 = vpop.f32.mrf.mxu0
        %v2020 = vadd.f32 %v1931, %v2019
        %v2021 = vpop.f32.mrf.mxu0
        %v2022 = vadd.f32 %v1933, %v2021
        %2023 = vmatmul.bf16.gmra.mxu0 %v1363
        %v2024 = vpop.f32.mrf.mxu0
        %v2025 = vadd.f32 %v1936, %v2024
        %v2026 = vpop.f32.mrf.mxu0
        %v2027 = vadd.f32 %v1938, %v2026
        %2028 = vmatmul.bf16.gmra.mxu0 %v1365
        %v2029 = vpop.f32.mrf.mxu0
        %v2030 = vadd.f32 %v1941, %v2029
        %v2031 = vpop.f32.mrf.mxu0
        %v2032 = vadd.f32 %v1943, %v2031
        %2033 = vmatmul.bf16.gmra.mxu0 %v1367
        %v2034 = vpop.f32.mrf.mxu0
        %v2035 = vadd.f32 %v1946, %v2034
        %v2036 = vpop.f32.mrf.mxu0
        %v2037 = vadd.f32 %v1948, %v2036
        %2038 = vmatmul.bf16.gmra.mxu0 %v1369
        %v2039 = vpop.f32.mrf.mxu0
        %v2040 = vadd.f32 %v1951, %v2039
        %v2041 = vpop.f32.mrf.mxu0
        %v2042 = vadd.f32 %v1953, %v2041
        %2043 = vmatmul.bf16.gmra.mxu0 %v1371
        %v2044 = vpop.f32.mrf.mxu0
        %v2045 = vadd.f32 %v1956, %v2044
        %v2046 = vpop.f32.mrf.mxu0
        %v2047 = vadd.f32 %v1958, %v2046
        %2048 = vmatmul.bf16.gmra.mxu0 %v1373
        %v2049 = vpop.f32.mrf.mxu0
        %v2050 = vadd.f32 %v1961, %v2049
        %v2051 = vpop.f32.mrf.mxu0
        %v2052 = vadd.f32 %v1963, %v2051
        %2053 = vmatmul.bf16.gmra.mxu0 %v1375
        %v2054 = vpop.f32.mrf.mxu0
        %v2055 = vadd.f32 %v1966, %v2054
        %v2056 = vpop.f32.mrf.mxu0
        %v2057 = vadd.f32 %v1968, %v2056
        %2058 = vmatmul.bf16.gmra.mxu0 %v1377
        %v2059 = vpop.f32.mrf.mxu0
        %v2060 = vadd.f32 %v1971, %v2059
        %v2061 = vpop.f32.mrf.mxu0
        %v2062 = vadd.f32 %v1973, %v2061
        %2063 = vdwg.mxu0
        %2064 = vmatpush.bf16.msra.mxu0 %v1610
        %2065 = vmatpush.bf16.msra.mxu0 %v1606
        %2066 = vmatpush.bf16.msra.mxu0 %v1602
        %2067 = vmatpush.bf16.msra.mxu0 %v1598
        %2068 = vmatpush.bf16.msra.mxu0 %v1594
        %2069 = vmatpush.bf16.msra.mxu0 %v1590
        %2070 = vmatpush.bf16.msra.mxu0 %v1586
        %2071 = vmatpush.bf16.msra.mxu0 %v1582
        %2072 = vmatmul.bf16.gmra.mxu0 %v1346
        %v2073 = vpop.f32.mrf.mxu0
        %v2074 = vadd.f32 %v1382, %v2073
        %v2075 = vpop.f32.mrf.mxu0
        %v2076 = vadd.f32 %v1382, %v2075
        %2077 = vmatmul.bf16.gmra.mxu0 %v1348
        %v2078 = vpop.f32.mrf.mxu0
        %v2079 = vadd.f32 %v1382, %v2078
        %v2080 = vpop.f32.mrf.mxu0
        %v2081 = vadd.f32 %v1382, %v2080
        %2082 = vmatmul.bf16.gmra.mxu0 %v1350
        %v2083 = vpop.f32.mrf.mxu0
        %v2084 = vadd.f32 %v1382, %v2083
        %v2085 = vpop.f32.mrf.mxu0
        %v2086 = vadd.f32 %v1382, %v2085
        %2087 = vmatmul.bf16.gmra.mxu0 %v1352
        %v2088 = vpop.f32.mrf.mxu0
        %v2089 = vadd.f32 %v1382, %v2088
        %v2090 = vpop.f32.mrf.mxu0
        %v2091 = vadd.f32 %v1382, %v2090
        %2092 = vmatmul.bf16.gmra.mxu0 %v1354
        %v2093 = vpop.f32.mrf.mxu0
        %v2094 = vadd.f32 %v1382, %v2093
        %v2095 = vpop.f32.mrf.mxu0
        %v2096 = vadd.f32 %v1382, %v2095
        %2097 = vmatmul.bf16.gmra.mxu0 %v1356
        %v2098 = vpop.f32.mrf.mxu0
        %v2099 = vadd.f32 %v1382, %v2098
        %v2100 = vpop.f32.mrf.mxu0
        %v2101 = vadd.f32 %v1382, %v2100
        %2102 = vmatmul.bf16.gmra.mxu0 %v1358
        %v2103 = vpop.f32.mrf.mxu0
        %v2104 = vadd.f32 %v1382, %v2103
        %v2105 = vpop.f32.mrf.mxu0
        %v2106 = vadd.f32 %v1382, %v2105
        %2107 = vmatmul.bf16.gmra.mxu0 %v1360
        %v2108 = vpop.f32.mrf.mxu0
        %v2109 = vadd.f32 %v1382, %v2108
        %v2110 = vpop.f32.mrf.mxu0
        %v2111 = vadd.f32 %v1382, %v2110
        %2112 = vmatmul.bf16.gmra.mxu0 %v1362
        %v2113 = vpop.f32.mrf.mxu0
        %v2114 = vadd.f32 %v1382, %v2113
        %v2115 = vpop.f32.mrf.mxu0
        %v2116 = vadd.f32 %v1382, %v2115
        %2117 = vmatmul.bf16.gmra.mxu0 %v1364
        %v2118 = vpop.f32.mrf.mxu0
        %v2119 = vadd.f32 %v1382, %v2118
        %v2120 = vpop.f32.mrf.mxu0
        %v2121 = vadd.f32 %v1382, %v2120
        %2122 = vmatmul.bf16.gmra.mxu0 %v1366
        %v2123 = vpop.f32.mrf.mxu0
        %v2124 = vadd.f32 %v1382, %v2123
        %v2125 = vpop.f32.mrf.mxu0
        %v2126 = vadd.f32 %v1382, %v2125
        %2127 = vmatmul.bf16.gmra.mxu0 %v1368
        %v2128 = vpop.f32.mrf.mxu0
        %v2129 = vadd.f32 %v1382, %v2128
        %v2130 = vpop.f32.mrf.mxu0
        %v2131 = vadd.f32 %v1382, %v2130
        %2132 = vmatmul.bf16.gmra.mxu0 %v1370
        %v2133 = vpop.f32.mrf.mxu0
        %v2134 = vadd.f32 %v1382, %v2133
        %v2135 = vpop.f32.mrf.mxu0
        %v2136 = vadd.f32 %v1382, %v2135
        %2137 = vmatmul.bf16.gmra.mxu0 %v1372
        %v2138 = vpop.f32.mrf.mxu0
        %v2139 = vadd.f32 %v1382, %v2138
        %v2140 = vpop.f32.mrf.mxu0
        %v2141 = vadd.f32 %v1382, %v2140
        %2142 = vmatmul.bf16.gmra.mxu0 %v1374
        %v2143 = vpop.f32.mrf.mxu0
        %v2144 = vadd.f32 %v1382, %v2143
        %v2145 = vpop.f32.mrf.mxu0
        %v2146 = vadd.f32 %v1382, %v2145
        %2147 = vmatmul.bf16.gmra.mxu0 %v1376
        %v2148 = vpop.f32.mrf.mxu0
        %v2149 = vadd.f32 %v1382, %v2148
        %v2150 = vpop.f32.mrf.mxu0
        %v2151 = vadd.f32 %v1382, %v2150
        %2152 = vdwg.mxu0
        %2153 = vmatpush.bf16.msra.mxu0 %v1642
        %2154 = vmatpush.bf16.msra.mxu0 %v1638
        %2155 = vmatpush.bf16.msra.mxu0 %v1634
        %2156 = vmatpush.bf16.msra.mxu0 %v1630
        %2157 = vmatpush.bf16.msra.mxu0 %v1626
        %2158 = vmatpush.bf16.msra.mxu0 %v1622
        %2159 = vmatpush.bf16.msra.mxu0 %v1618
        %2160 = vmatpush.bf16.msra.mxu0 %v1614
        %2161 = vmatmul.bf16.gmra.mxu0 %v1347
        %v2162 = vpop.f32.mrf.mxu0
        %v2163 = vadd.f32 %v2074, %v2162
        %v2164 = vpop.f32.mrf.mxu0
        %v2165 = vadd.f32 %v2076, %v2164
        %2166 = vmatmul.bf16.gmra.mxu0 %v1349
        %v2167 = vpop.f32.mrf.mxu0
        %v2168 = vadd.f32 %v2079, %v2167
        %v2169 = vpop.f32.mrf.mxu0
        %v2170 = vadd.f32 %v2081, %v2169
        %2171 = vmatmul.bf16.gmra.mxu0 %v1351
        %v2172 = vpop.f32.mrf.mxu0
        %v2173 = vadd.f32 %v2084, %v2172
        %v2174 = vpop.f32.mrf.mxu0
        %v2175 = vadd.f32 %v2086, %v2174
        %2176 = vmatmul.bf16.gmra.mxu0 %v1353
        %v2177 = vpop.f32.mrf.mxu0
        %v2178 = vadd.f32 %v2089, %v2177
        %v2179 = vpop.f32.mrf.mxu0
        %v2180 = vadd.f32 %v2091, %v2179
        %2181 = vmatmul.bf16.gmra.mxu0 %v1355
        %v2182 = vpop.f32.mrf.mxu0
        %v2183 = vadd.f32 %v2094, %v2182
        %v2184 = vpop.f32.mrf.mxu0
        %v2185 = vadd.f32 %v2096, %v2184
        %2186 = vmatmul.bf16.gmra.mxu0 %v1357
        %v2187 = vpop.f32.mrf.mxu0
        %v2188 = vadd.f32 %v2099, %v2187
        %v2189 = vpop.f32.mrf.mxu0
        %v2190 = vadd.f32 %v2101, %v2189
        %2191 = vmatmul.bf16.gmra.mxu0 %v1359
        %v2192 = vpop.f32.mrf.mxu0
        %v2193 = vadd.f32 %v2104, %v2192
        %v2194 = vpop.f32.mrf.mxu0
        %v2195 = vadd.f32 %v2106, %v2194
        %2196 = vmatmul.bf16.gmra.mxu0 %v1361
        %v2197 = vpop.f32.mrf.mxu0
        %v2198 = vadd.f32 %v2109, %v2197
        %v2199 = vpop.f32.mrf.mxu0
        %v2200 = vadd.f32 %v2111, %v2199
        %2201 = vmatmul.bf16.gmra.mxu0 %v1363
        %v2202 = vpop.f32.mrf.mxu0
        %v2203 = vadd.f32 %v2114, %v2202
        %v2204 = vpop.f32.mrf.mxu0
        %v2205 = vadd.f32 %v2116, %v2204
        %2206 = vmatmul.bf16.gmra.mxu0 %v1365
        %v2207 = vpop.f32.mrf.mxu0
        %v2208 = vadd.f32 %v2119, %v2207
        %v2209 = vpop.f32.mrf.mxu0
        %v2210 = vadd.f32 %v2121, %v2209
        %2211 = vmatmul.bf16.gmra.mxu0 %v1367
        %v2212 = vpop.f32.mrf.mxu0
        %v2213 = vadd.f32 %v2124, %v2212
        %v2214 = vpop.f32.mrf.mxu0
        %v2215 = vadd.f32 %v2126, %v2214
        %2216 = vmatmul.bf16.gmra.mxu0 %v1369
        %v2217 = vpop.f32.mrf.mxu0
        %v2218 = vadd.f32 %v2129, %v2217
        %v2219 = vpop.f32.mrf.mxu0
        %v2220 = vadd.f32 %v2131, %v2219
        %2221 = vmatmul.bf16.gmra.mxu0 %v1371
        %v2222 = vpop.f32.mrf.mxu0
        %v2223 = vadd.f32 %v2134, %v2222
        %v2224 = vpop.f32.mrf.mxu0
        %v2225 = vadd.f32 %v2136, %v2224
        %2226 = vmatmul.bf16.gmra.mxu0 %v1373
        %v2227 = vpop.f32.mrf.mxu0
        %v2228 = vadd.f32 %v2139, %v2227
        %v2229 = vpop.f32.mrf.mxu0
        %v2230 = vadd.f32 %v2141, %v2229
        %2231 = vmatmul.bf16.gmra.mxu0 %v1375
        %v2232 = vpop.f32.mrf.mxu0
        %v2233 = vadd.f32 %v2144, %v2232
        %v2234 = vpop.f32.mrf.mxu0
        %v2235 = vadd.f32 %v2146, %v2234
        %2236 = vmatmul.bf16.gmra.mxu0 %v1377
        %v2237 = vpop.f32.mrf.mxu0
        %v2238 = vadd.f32 %v2149, %v2237
        %v2239 = vpop.f32.mrf.mxu0
        %v2240 = vadd.f32 %v2151, %v2239
        %2241 = vdwg.mxu0
        %2242 = vmatpush.bf16.msra.mxu0 %v1611
        %2243 = vmatpush.bf16.msra.mxu0 %v1607
        %2244 = vmatpush.bf16.msra.mxu0 %v1603
        %2245 = vmatpush.bf16.msra.mxu0 %v1599
        %2246 = vmatpush.bf16.msra.mxu0 %v1595
        %2247 = vmatpush.bf16.msra.mxu0 %v1591
        %2248 = vmatpush.bf16.msra.mxu0 %v1587
        %2249 = vmatpush.bf16.msra.mxu0 %v1583
        %2250 = vmatmul.bf16.gmra.mxu0 %v1346
        %v2251 = vpop.f32.mrf.mxu0
        %v2252 = vadd.f32 %v1383, %v2251
        %v2253 = vpop.f32.mrf.mxu0
        %v2254 = vadd.f32 %v1383, %v2253
        %2255 = vmatmul.bf16.gmra.mxu0 %v1348
        %v2256 = vpop.f32.mrf.mxu0
        %v2257 = vadd.f32 %v1383, %v2256
        %v2258 = vpop.f32.mrf.mxu0
        %v2259 = vadd.f32 %v1383, %v2258
        %2260 = vmatmul.bf16.gmra.mxu0 %v1350
        %v2261 = vpop.f32.mrf.mxu0
        %v2262 = vadd.f32 %v1383, %v2261
        %v2263 = vpop.f32.mrf.mxu0
        %v2264 = vadd.f32 %v1383, %v2263
        %2265 = vmatmul.bf16.gmra.mxu0 %v1352
        %v2266 = vpop.f32.mrf.mxu0
        %v2267 = vadd.f32 %v1383, %v2266
        %v2268 = vpop.f32.mrf.mxu0
        %v2269 = vadd.f32 %v1383, %v2268
        %2270 = vmatmul.bf16.gmra.mxu0 %v1354
        %v2271 = vpop.f32.mrf.mxu0
        %v2272 = vadd.f32 %v1383, %v2271
        %v2273 = vpop.f32.mrf.mxu0
        %v2274 = vadd.f32 %v1383, %v2273
        %2275 = vmatmul.bf16.gmra.mxu0 %v1356
        %v2276 = vpop.f32.mrf.mxu0
        %v2277 = vadd.f32 %v1383, %v2276
        %v2278 = vpop.f32.mrf.mxu0
        %v2279 = vadd.f32 %v1383, %v2278
        %2280 = vmatmul.bf16.gmra.mxu0 %v1358
        %v2281 = vpop.f32.mrf.mxu0
        %v2282 = vadd.f32 %v1383, %v2281
        %v2283 = vpop.f32.mrf.mxu0
        %v2284 = vadd.f32 %v1383, %v2283
        %2285 = vmatmul.bf16.gmra.mxu0 %v1360
        %v2286 = vpop.f32.mrf.mxu0
        %v2287 = vadd.f32 %v1383, %v2286
        %v2288 = vpop.f32.mrf.mxu0
        %v2289 = vadd.f32 %v1383, %v2288
        %2290 = vmatmul.bf16.gmra.mxu0 %v1362
        %v2291 = vpop.f32.mrf.mxu0
        %v2292 = vadd.f32 %v1383, %v2291
        %v2293 = vpop.f32.mrf.mxu0
        %v2294 = vadd.f32 %v1383, %v2293
        %2295 = vmatmul.bf16.gmra.mxu0 %v1364
        %v2296 = vpop.f32.mrf.mxu0
        %v2297 = vadd.f32 %v1383, %v2296
        %v2298 = vpop.f32.mrf.mxu0
        %v2299 = vadd.f32 %v1383, %v2298
        %2300 = vmatmul.bf16.gmra.mxu0 %v1366
        %v2301 = vpop.f32.mrf.mxu0
        %v2302 = vadd.f32 %v1383, %v2301
        %v2303 = vpop.f32.mrf.mxu0
        %v2304 = vadd.f32 %v1383, %v2303
        %2305 = vmatmul.bf16.gmra.mxu0 %v1368
        %v2306 = vpop.f32.mrf.mxu0
        %v2307 = vadd.f32 %v1383, %v2306
        %v2308 = vpop.f32.mrf.mxu0
        %v2309 = vadd.f32 %v1383, %v2308
        %2310 = vmatmul.bf16.gmra.mxu0 %v1370
        %v2311 = vpop.f32.mrf.mxu0
        %v2312 = vadd.f32 %v1383, %v2311
        %v2313 = vpop.f32.mrf.mxu0
        %v2314 = vadd.f32 %v1383, %v2313
        %2315 = vmatmul.bf16.gmra.mxu0 %v1372
        %v2316 = vpop.f32.mrf.mxu0
        %v2317 = vadd.f32 %v1383, %v2316
        %v2318 = vpop.f32.mrf.mxu0
        %v2319 = vadd.f32 %v1383, %v2318
        %2320 = vmatmul.bf16.gmra.mxu0 %v1374
        %v2321 = vpop.f32.mrf.mxu0
        %v2322 = vadd.f32 %v1383, %v2321
        %v2323 = vpop.f32.mrf.mxu0
        %v2324 = vadd.f32 %v1383, %v2323
        %2325 = vmatmul.bf16.gmra.mxu0 %v1376
        %v2326 = vpop.f32.mrf.mxu0
        %v2327 = vadd.f32 %v1383, %v2326
        %v2328 = vpop.f32.mrf.mxu0
        %v2329 = vadd.f32 %v1383, %v2328
        %2330 = vdwg.mxu0
        %2331 = vmatpush.bf16.msra.mxu0 %v1643
        %2332 = vmatpush.bf16.msra.mxu0 %v1639
        %2333 = vmatpush.bf16.msra.mxu0 %v1635
        %2334 = vmatpush.bf16.msra.mxu0 %v1631
        %2335 = vmatpush.bf16.msra.mxu0 %v1627
        %2336 = vmatpush.bf16.msra.mxu0 %v1623
        %2337 = vmatpush.bf16.msra.mxu0 %v1619
        %2338 = vmatpush.bf16.msra.mxu0 %v1615
        %2339 = vmatmul.bf16.gmra.mxu0 %v1347
        %v2340 = vpop.f32.mrf.mxu0
        %v2341 = vadd.f32 %v2252, %v2340
        %v2342 = vpop.f32.mrf.mxu0
        %v2343 = vadd.f32 %v2254, %v2342
        %2344 = vmatmul.bf16.gmra.mxu0 %v1349
        %v2345 = vpop.f32.mrf.mxu0
        %v2346 = vadd.f32 %v2257, %v2345
        %v2347 = vpop.f32.mrf.mxu0
        %v2348 = vadd.f32 %v2259, %v2347
        %2349 = vmatmul.bf16.gmra.mxu0 %v1351
        %v2350 = vpop.f32.mrf.mxu0
        %v2351 = vadd.f32 %v2262, %v2350
        %v2352 = vpop.f32.mrf.mxu0
        %v2353 = vadd.f32 %v2264, %v2352
        %2354 = vmatmul.bf16.gmra.mxu0 %v1353
        %v2355 = vpop.f32.mrf.mxu0
        %v2356 = vadd.f32 %v2267, %v2355
        %v2357 = vpop.f32.mrf.mxu0
        %v2358 = vadd.f32 %v2269, %v2357
        %2359 = vmatmul.bf16.gmra.mxu0 %v1355
        %v2360 = vpop.f32.mrf.mxu0
        %v2361 = vadd.f32 %v2272, %v2360
        %v2362 = vpop.f32.mrf.mxu0
        %v2363 = vadd.f32 %v2274, %v2362
        %2364 = vmatmul.bf16.gmra.mxu0 %v1357
        %v2365 = vpop.f32.mrf.mxu0
        %v2366 = vadd.f32 %v2277, %v2365
        %v2367 = vpop.f32.mrf.mxu0
        %v2368 = vadd.f32 %v2279, %v2367
        %2369 = vmatmul.bf16.gmra.mxu0 %v1359
        %v2370 = vpop.f32.mrf.mxu0
        %v2371 = vadd.f32 %v2282, %v2370
        %v2372 = vpop.f32.mrf.mxu0
        %v2373 = vadd.f32 %v2284, %v2372
        %2374 = vmatmul.bf16.gmra.mxu0 %v1361
        %v2375 = vpop.f32.mrf.mxu0
        %v2376 = vadd.f32 %v2287, %v2375
        %v2377 = vpop.f32.mrf.mxu0
        %v2378 = vadd.f32 %v2289, %v2377
        %2379 = vmatmul.bf16.gmra.mxu0 %v1363
        %v2380 = vpop.f32.mrf.mxu0
        %v2381 = vadd.f32 %v2292, %v2380
        %v2382 = vpop.f32.mrf.mxu0
        %v2383 = vadd.f32 %v2294, %v2382
        %2384 = vmatmul.bf16.gmra.mxu0 %v1365
        %v2385 = vpop.f32.mrf.mxu0
        %v2386 = vadd.f32 %v2297, %v2385
        %v2387 = vpop.f32.mrf.mxu0
        %v2388 = vadd.f32 %v2299, %v2387
        %2389 = vmatmul.bf16.gmra.mxu0 %v1367
        %v2390 = vpop.f32.mrf.mxu0
        %v2391 = vadd.f32 %v2302, %v2390
        %v2392 = vpop.f32.mrf.mxu0
        %v2393 = vadd.f32 %v2304, %v2392
        %2394 = vmatmul.bf16.gmra.mxu0 %v1369
        %v2395 = vpop.f32.mrf.mxu0
        %v2396 = vadd.f32 %v2307, %v2395
        %v2397 = vpop.f32.mrf.mxu0
        %v2398 = vadd.f32 %v2309, %v2397
        %2399 = vmatmul.bf16.gmra.mxu0 %v1371
        %v2400 = vpop.f32.mrf.mxu0
        %v2401 = vadd.f32 %v2312, %v2400
        %v2402 = vpop.f32.mrf.mxu0
        %v2403 = vadd.f32 %v2314, %v2402
        %2404 = vmatmul.bf16.gmra.mxu0 %v1373
        %v2405 = vpop.f32.mrf.mxu0
        %v2406 = vadd.f32 %v2317, %v2405
        %v2407 = vpop.f32.mrf.mxu0
        %v2408 = vadd.f32 %v2319, %v2407
        %2409 = vmatmul.bf16.gmra.mxu0 %v1375
        %v2410 = vpop.f32.mrf.mxu0
        %v2411 = vadd.f32 %v2322, %v2410
        %v2412 = vpop.f32.mrf.mxu0
        %v2413 = vadd.f32 %v2324, %v2412
        %2414 = vmatmul.bf16.gmra.mxu0 %v1377
        %v2415 = vpop.f32.mrf.mxu0
        %v2416 = vadd.f32 %v2327, %v2415
        %v2417 = vpop.f32.mrf.mxu0
        %v2418 = vadd.f32 %v2329, %v2417
        %2419 = vdwg.mxu0
        %v2420 = vadd.f32 %v1807, 1.0
        %v2421 = vadd.f32 %v1809, 1.0
        %v2422 = vadd.f32 %v1812, 1.0
        %v2423 = vadd.f32 %v1814, 1.0
        %v2424 = vadd.f32 %v1817, 1.0
        %v2425 = vadd.f32 %v1819, 1.0
        %v2426 = vadd.f32 %v1822, 1.0
        %v2427 = vadd.f32 %v1824, 1.0
        %v2428 = vadd.f32 %v1827, 1.0
        %v2429 = vadd.f32 %v1829, 1.0
        %v2430 = vadd.f32 %v1832, 1.0
        %v2431 = vadd.f32 %v1834, 1.0
        %v2432 = vadd.f32 %v1837, 1.0
        %v2433 = vadd.f32 %v1839, 1.0
        %v2434 = vadd.f32 %v1842, 1.0
        %v2435 = vadd.f32 %v1844, 1.0
        %v2436 = vadd.f32 %v1847, 1.0
        %v2437 = vadd.f32 %v1849, 1.0
        %v2438 = vadd.f32 %v1852, 1.0
        %v2439 = vadd.f32 %v1854, 1.0
        %v2440 = vadd.f32 %v1857, 1.0
        %v2441 = vadd.f32 %v1859, 1.0
        %v2442 = vadd.f32 %v1862, 1.0
        %v2443 = vadd.f32 %v1864, 1.0
        %v2444 = vadd.f32 %v1867, 1.0
        %v2445 = vadd.f32 %v1869, 1.0
        %v2446 = vadd.f32 %v1872, 1.0
        %v2447 = vadd.f32 %v1874, 1.0
        %v2448 = vadd.f32 %v1877, 1.0
        %v2449 = vadd.f32 %v1879, 1.0
        %v2450 = vadd.f32 %v1882, 1.0
        %v2451 = vadd.f32 %v1884, 1.0
        %v2452 = vmul.f32 %v2420, %v1139
        %v2453 = vmul.f32 %v2421, %v1141
        %v2454 = vmul.f32 %v2422, %v1144
        %v2455 = vmul.f32 %v2423, %v1146
        %v2456 = vmul.f32 %v2424, %v1149
        %v2457 = vmul.f32 %v2425, %v1151
        %v2458 = vmul.f32 %v2426, %v1154
        %v2459 = vmul.f32 %v2427, %v1156
        %v2460 = vmul.f32 %v2428, %v1159
        %v2461 = vmul.f32 %v2429, %v1161
        %v2462 = vmul.f32 %v2430, %v1164
        %v2463 = vmul.f32 %v2431, %v1166
        %v2464 = vmul.f32 %v2432, %v1169
        %v2465 = vmul.f32 %v2433, %v1171
        %v2466 = vmul.f32 %v2434, %v1174
        %v2467 = vmul.f32 %v2435, %v1176
        %v2468 = vmul.f32 %v2436, %v1179
        %v2469 = vmul.f32 %v2437, %v1181
        %v2470 = vmul.f32 %v2438, %v1184
        %v2471 = vmul.f32 %v2439, %v1186
        %v2472 = vmul.f32 %v2440, %v1189
        %v2473 = vmul.f32 %v2441, %v1191
        %v2474 = vmul.f32 %v2442, %v1194
        %v2475 = vmul.f32 %v2443, %v1196
        %v2476 = vmul.f32 %v2444, %v1199
        %v2477 = vmul.f32 %v2445, %v1201
        %v2478 = vmul.f32 %v2446, %v1204
        %v2479 = vmul.f32 %v2447, %v1206
        %v2480 = vmul.f32 %v2448, %v1209
        %v2481 = vmul.f32 %v2449, %v1211
        %v2482 = vmul.f32 %v2450, %v1214
        %v2483 = vmul.f32 %v2451, %v1216
        %v2484 = vadd.f32 %v2452, %v1985
        %v2485 = vadd.f32 %v2453, %v1987
        %v2486 = vadd.f32 %v2454, %v1990
        %v2487 = vadd.f32 %v2455, %v1992
        %v2488 = vadd.f32 %v2456, %v1995
        %v2489 = vadd.f32 %v2457, %v1997
        %v2490 = vadd.f32 %v2458, %v2000
        %v2491 = vadd.f32 %v2459, %v2002
        %v2492 = vadd.f32 %v2460, %v2005
        %v2493 = vadd.f32 %v2461, %v2007
        %v2494 = vadd.f32 %v2462, %v2010
        %v2495 = vadd.f32 %v2463, %v2012
        %v2496 = vadd.f32 %v2464, %v2015
        %v2497 = vadd.f32 %v2465, %v2017
        %v2498 = vadd.f32 %v2466, %v2020
        %v2499 = vadd.f32 %v2467, %v2022
        %v2500 = vadd.f32 %v2468, %v2025
        %v2501 = vadd.f32 %v2469, %v2027
        %v2502 = vadd.f32 %v2470, %v2030
        %v2503 = vadd.f32 %v2471, %v2032
        %v2504 = vadd.f32 %v2472, %v2035
        %v2505 = vadd.f32 %v2473, %v2037
        %v2506 = vadd.f32 %v2474, %v2040
        %v2507 = vadd.f32 %v2475, %v2042
        %v2508 = vadd.f32 %v2476, %v2045
        %v2509 = vadd.f32 %v2477, %v2047
        %v2510 = vadd.f32 %v2478, %v2050
        %v2511 = vadd.f32 %v2479, %v2052
        %v2512 = vadd.f32 %v2480, %v2055
        %v2513 = vadd.f32 %v2481, %v2057
        %v2514 = vadd.f32 %v2482, %v2060
        %v2515 = vadd.f32 %v2483, %v2062
        %v2516 = vmax.f32 %v2484, 0.0
        %v2517 = vmax.f32 %v2485, 0.0
        %v2518 = vmax.f32 %v2486, 0.0
        %v2519 = vmax.f32 %v2487, 0.0
        %v2520 = vmax.f32 %v2488, 0.0
        %v2521 = vmax.f32 %v2489, 0.0
        %v2522 = vmax.f32 %v2490, 0.0
        %v2523 = vmax.f32 %v2491, 0.0
        %v2524 = vmax.f32 %v2492, 0.0
        %v2525 = vmax.f32 %v2493, 0.0
        %v2526 = vmax.f32 %v2494, 0.0
        %v2527 = vmax.f32 %v2495, 0.0
        %v2528 = vmax.f32 %v2496, 0.0
        %v2529 = vmax.f32 %v2497, 0.0
        %v2530 = vmax.f32 %v2498, 0.0
        %v2531 = vmax.f32 %v2499, 0.0
        %v2532 = vmax.f32 %v2500, 0.0
        %v2533 = vmax.f32 %v2501, 0.0
        %v2534 = vmax.f32 %v2502, 0.0
        %v2535 = vmax.f32 %v2503, 0.0
        %v2536 = vmax.f32 %v2504, 0.0
        %v2537 = vmax.f32 %v2505, 0.0
        %v2538 = vmax.f32 %v2506, 0.0
        %v2539 = vmax.f32 %v2507, 0.0
        %v2540 = vmax.f32 %v2508, 0.0
        %v2541 = vmax.f32 %v2509, 0.0
        %v2542 = vmax.f32 %v2510, 0.0
        %v2543 = vmax.f32 %v2511, 0.0
        %v2544 = vmax.f32 %v2512, 0.0
        %v2545 = vmax.f32 %v2513, 0.0
        %v2546 = vmax.f32 %v2514, 0.0
        %v2547 = vmax.f32 %v2515, 0.0
        %v2548 = vld [vmem:[#allocation11] sm:$0xf]
        %v2549 = vld [vmem:[#allocation11 + $0x4] sm:$0xf]
        %v2550 = vld [vmem:[#allocation11 + $0x8] sm:$0xf]
        %v2551 = vld [vmem:[#allocation11 + $0xc] sm:$0xf]
        %v2552 = vld [vmem:[#allocation11 + $0x10] sm:$0xf]
        %v2553 = vld [vmem:[#allocation11 + $0x14] sm:$0xf]
        %v2554 = vld [vmem:[#allocation11 + $0x18] sm:$0xf]
        %v2555 = vld [vmem:[#allocation11 + $0x1c] sm:$0xf]
        %v2556 = vld [vmem:[#allocation11 + $0x20] sm:$0xf]
        %v2557 = vld [vmem:[#allocation11 + $0x24] sm:$0xf]
        %v2558 = vld [vmem:[#allocation11 + $0x28] sm:$0xf]
        %v2559 = vld [vmem:[#allocation11 + $0x2c] sm:$0xf]
        %v2560 = vld [vmem:[#allocation11 + $0x30] sm:$0xf]
        %v2561 = vld [vmem:[#allocation11 + $0x34] sm:$0xf]
        %v2562 = vld [vmem:[#allocation11 + $0x38] sm:$0xf]
        %v2563 = vld [vmem:[#allocation11 + $0x3c] sm:$0xf]
        %v2564 = vpack.c.bf16 %v2517, %v2516
        %v2565 = vpack.c.bf16 %v2519, %v2518
        %v2566 = vpack.c.bf16 %v2521, %v2520
        %v2567 = vpack.c.bf16 %v2523, %v2522
        %v2568 = vpack.c.bf16 %v2525, %v2524
        %v2569 = vpack.c.bf16 %v2527, %v2526
        %v2570 = vpack.c.bf16 %v2529, %v2528
        %v2571 = vpack.c.bf16 %v2531, %v2530
        %v2572 = vpack.c.bf16 %v2533, %v2532
        %v2573 = vpack.c.bf16 %v2535, %v2534
        %v2574 = vpack.c.bf16 %v2537, %v2536
        %v2575 = vpack.c.bf16 %v2539, %v2538
        %v2576 = vpack.c.bf16 %v2541, %v2540
        %v2577 = vpack.c.bf16 %v2543, %v2542
        %v2578 = vpack.c.bf16 %v2545, %v2544
        %v2579 = vpack.c.bf16 %v2547, %v2546
        %v2580 = vld [vmem:[%s7] sm:$0x1]
        %v2581 = vperm.slane %v2580, 0
        %v2598 = vunpack.c.l.b16 %v2548
        %v2599 = vunpack.c.l.b16 %v2549
        %v2600 = vunpack.c.l.b16 %v2550
        %v2601 = vunpack.c.l.b16 %v2551
        %v2602 = vunpack.c.l.b16 %v2552
        %v2603 = vunpack.c.l.b16 %v2553
        %v2604 = vunpack.c.l.b16 %v2554
        %v2605 = vunpack.c.l.b16 %v2555
        %v2606 = vunpack.c.l.b16 %v2556
        %v2607 = vunpack.c.l.b16 %v2557
        %v2608 = vunpack.c.l.b16 %v2558
        %v2609 = vunpack.c.l.b16 %v2559
        %v2610 = vunpack.c.l.b16 %v2560
        %v2611 = vunpack.c.l.b16 %v2561
        %v2612 = vunpack.c.l.b16 %v2562
        %v2613 = vunpack.c.l.b16 %v2563
        %v2614 = vpack.c.b16 %v2599, %v2598
        %v2615 = vpack.c.b16 %v2601, %v2600
        %v2616 = vpack.c.b16 %v2603, %v2602
        %v2617 = vpack.c.b16 %v2605, %v2604
        %v2618 = vpack.c.b16 %v2607, %v2606
        %v2619 = vpack.c.b16 %v2609, %v2608
        %v2620 = vpack.c.b16 %v2611, %v2610
        %v2621 = vpack.c.b16 %v2613, %v2612
        %2630 = vmatpush.bf16.msra.mxu0 %v2621
        %2631 = vmatpush.bf16.msra.mxu0 %v2620
        %2632 = vmatpush.bf16.msra.mxu0 %v2619
        %2633 = vmatpush.bf16.msra.mxu0 %v2618
        %2634 = vmatpush.bf16.msra.mxu0 %v2617
        %2635 = vmatpush.bf16.msra.mxu0 %v2616
        %2636 = vmatpush.bf16.msra.mxu0 %v2615
        %2637 = vmatpush.bf16.msra.mxu0 %v2614
        %2638 = vmatmul.bf16.gmra.mxu0 %v2564
        %v2639 = vpop.f32.mrf.mxu0
        %v2640 = vadd.f32 %v2581, %v2639
        %v2641 = vpop.f32.mrf.mxu0
        %v2642 = vadd.f32 %v2581, %v2641
        %2643 = vmatmul.bf16.gmra.mxu0 %v2565
        %v2644 = vpop.f32.mrf.mxu0
        %v2645 = vadd.f32 %v2581, %v2644
        %v2646 = vpop.f32.mrf.mxu0
        %v2647 = vadd.f32 %v2581, %v2646
        %2648 = vmatmul.bf16.gmra.mxu0 %v2566
        %v2649 = vpop.f32.mrf.mxu0
        %v2650 = vadd.f32 %v2581, %v2649
        %v2651 = vpop.f32.mrf.mxu0
        %v2652 = vadd.f32 %v2581, %v2651
        %2653 = vmatmul.bf16.gmra.mxu0 %v2567
        %v2654 = vpop.f32.mrf.mxu0
        %v2655 = vadd.f32 %v2581, %v2654
        %v2656 = vpop.f32.mrf.mxu0
        %v2657 = vadd.f32 %v2581, %v2656
        %2658 = vmatmul.bf16.gmra.mxu0 %v2568
        %v2659 = vpop.f32.mrf.mxu0
        %v2660 = vadd.f32 %v2581, %v2659
        %v2661 = vpop.f32.mrf.mxu0
        %v2662 = vadd.f32 %v2581, %v2661
        %2663 = vmatmul.bf16.gmra.mxu0 %v2569
        %v2664 = vpop.f32.mrf.mxu0
        %v2665 = vadd.f32 %v2581, %v2664
        %v2666 = vpop.f32.mrf.mxu0
        %v2667 = vadd.f32 %v2581, %v2666
        %2668 = vmatmul.bf16.gmra.mxu0 %v2570
        %v2669 = vpop.f32.mrf.mxu0
        %v2670 = vadd.f32 %v2581, %v2669
        %v2671 = vpop.f32.mrf.mxu0
        %v2672 = vadd.f32 %v2581, %v2671
        %2673 = vmatmul.bf16.gmra.mxu0 %v2571
        %v2674 = vpop.f32.mrf.mxu0
        %v2675 = vadd.f32 %v2581, %v2674
        %v2676 = vpop.f32.mrf.mxu0
        %v2677 = vadd.f32 %v2581, %v2676
        %2678 = vmatmul.bf16.gmra.mxu0 %v2572
        %v2679 = vpop.f32.mrf.mxu0
        %v2680 = vadd.f32 %v2581, %v2679
        %v2681 = vpop.f32.mrf.mxu0
        %v2682 = vadd.f32 %v2581, %v2681
        %2683 = vmatmul.bf16.gmra.mxu0 %v2573
        %v2684 = vpop.f32.mrf.mxu0
        %v2685 = vadd.f32 %v2581, %v2684
        %v2686 = vpop.f32.mrf.mxu0
        %v2687 = vadd.f32 %v2581, %v2686
        %2688 = vmatmul.bf16.gmra.mxu0 %v2574
        %v2689 = vpop.f32.mrf.mxu0
        %v2690 = vadd.f32 %v2581, %v2689
        %v2691 = vpop.f32.mrf.mxu0
        %v2692 = vadd.f32 %v2581, %v2691
        %2693 = vmatmul.bf16.gmra.mxu0 %v2575
        %v2694 = vpop.f32.mrf.mxu0
        %v2695 = vadd.f32 %v2581, %v2694
        %v2696 = vpop.f32.mrf.mxu0
        %v2697 = vadd.f32 %v2581, %v2696
        %2698 = vmatmul.bf16.gmra.mxu0 %v2576
        %v2699 = vpop.f32.mrf.mxu0
        %v2700 = vadd.f32 %v2581, %v2699
        %v2701 = vpop.f32.mrf.mxu0
        %v2702 = vadd.f32 %v2581, %v2701
        %2703 = vmatmul.bf16.gmra.mxu0 %v2577
        %v2704 = vpop.f32.mrf.mxu0
        %v2705 = vadd.f32 %v2581, %v2704
        %v2706 = vpop.f32.mrf.mxu0
        %v2707 = vadd.f32 %v2581, %v2706
        %2708 = vmatmul.bf16.gmra.mxu0 %v2578
        %v2709 = vpop.f32.mrf.mxu0
        %v2710 = vadd.f32 %v2581, %v2709
        %v2711 = vpop.f32.mrf.mxu0
        %v2712 = vadd.f32 %v2581, %v2711
        %2713 = vmatmul.bf16.gmra.mxu0 %v2579
        %v2714 = vpop.f32.mrf.mxu0
        %v2715 = vadd.f32 %v2581, %v2714
        %v2716 = vpop.f32.mrf.mxu0
        %v2717 = vadd.f32 %v2581, %v2716
        %2718 = vdwg.mxu0
        %v2719 = vpack.c.bf16 %v2640, %v2640
        %v2720 = vpack.c.bf16 %v2642, %v2642
        %v2721 = vpack.c.bf16 %v2645, %v2645
        %v2722 = vpack.c.bf16 %v2647, %v2647
        %v2723 = vpack.c.bf16 %v2650, %v2650
        %v2724 = vpack.c.bf16 %v2652, %v2652
        %v2725 = vpack.c.bf16 %v2655, %v2655
        %v2726 = vpack.c.bf16 %v2657, %v2657
        %v2727 = vpack.c.bf16 %v2660, %v2660
        %v2728 = vpack.c.bf16 %v2662, %v2662
        %v2729 = vpack.c.bf16 %v2665, %v2665
        %v2730 = vpack.c.bf16 %v2667, %v2667
        %v2731 = vpack.c.bf16 %v2670, %v2670
        %v2732 = vpack.c.bf16 %v2672, %v2672
        %v2733 = vpack.c.bf16 %v2675, %v2675
        %v2734 = vpack.c.bf16 %v2677, %v2677
        %v2735 = vpack.c.bf16 %v2680, %v2680
        %v2736 = vpack.c.bf16 %v2682, %v2682
        %v2737 = vpack.c.bf16 %v2685, %v2685
        %v2738 = vpack.c.bf16 %v2687, %v2687
        %v2739 = vpack.c.bf16 %v2690, %v2690
        %v2740 = vpack.c.bf16 %v2692, %v2692
        %v2741 = vpack.c.bf16 %v2695, %v2695
        %v2742 = vpack.c.bf16 %v2697, %v2697
        %v2743 = vpack.c.bf16 %v2700, %v2700
        %v2744 = vpack.c.bf16 %v2702, %v2702
        %v2745 = vpack.c.bf16 %v2705, %v2705
        %v2746 = vpack.c.bf16 %v2707, %v2707
        %v2747 = vpack.c.bf16 %v2710, %v2710
        %v2748 = vpack.c.bf16 %v2712, %v2712
        %v2749 = vpack.c.bf16 %v2715, %v2715
        %v2750 = vpack.c.bf16 %v2717, %v2717
        %2751 = vst [vmem:[%s532] sm:$0xf] %v2719
        %2752 = vst [vmem:[%s532 + $0x4] sm:$0xf] %v2720
        %2753 = vst [vmem:[%s532 + $0x8] sm:$0xf] %v2721
        %2754 = vst [vmem:[%s532 + $0xc] sm:$0xf] %v2722
        %2755 = vst [vmem:[%s532 + $0x10] sm:$0xf] %v2723
        %2756 = vst [vmem:[%s532 + $0x14] sm:$0xf] %v2724
        %2757 = vst [vmem:[%s532 + $0x18] sm:$0xf] %v2725
        %2758 = vst [vmem:[%s532 + $0x1c] sm:$0xf] %v2726
        %2759 = vst [vmem:[%s532 + $0x20] sm:$0xf] %v2727
        %2760 = vst [vmem:[%s532 + $0x24] sm:$0xf] %v2728
        %2761 = vst [vmem:[%s532 + $0x28] sm:$0xf] %v2729
        %2762 = vst [vmem:[%s532 + $0x2c] sm:$0xf] %v2730
        %2763 = vst [vmem:[%s532 + $0x30] sm:$0xf] %v2731
        %2764 = vst [vmem:[%s532 + $0x34] sm:$0xf] %v2732
        %2765 = vst [vmem:[%s532 + $0x38] sm:$0xf] %v2733
        %2766 = vst [vmem:[%s532 + $0x3c] sm:$0xf] %v2734
        %2767 = vst [vmem:[%s532 + $0x40] sm:$0xf] %v2735
        %2768 = vst [vmem:[%s532 + $0x44] sm:$0xf] %v2736
        %2769 = vst [vmem:[%s532 + $0x48] sm:$0xf] %v2737
        %2770 = vst [vmem:[%s532 + $0x4c] sm:$0xf] %v2738
        %2771 = vst [vmem:[%s532 + $0x50] sm:$0xf] %v2739
        %2772 = vst [vmem:[%s532 + $0x54] sm:$0xf] %v2740
        %2773 = vst [vmem:[%s532 + $0x58] sm:$0xf] %v2741
        %2774 = vst [vmem:[%s532 + $0x5c] sm:$0xf] %v2742
        %2775 = vst [vmem:[%s532 + $0x60] sm:$0xf] %v2743
        %2776 = vst [vmem:[%s532 + $0x64] sm:$0xf] %v2744
        %2777 = vst [vmem:[%s532 + $0x68] sm:$0xf] %v2745
        %2778 = vst [vmem:[%s532 + $0x6c] sm:$0xf] %v2746
        %2779 = vst [vmem:[%s532 + $0x70] sm:$0xf] %v2747
        %2780 = vst [vmem:[%s532 + $0x74] sm:$0xf] %v2748
        %2781 = vst [vmem:[%s532 + $0x78] sm:$0xf] %v2749
        %2782 = vst [vmem:[%s532 + $0x7c] sm:$0xf] %v2750
        %v2783 = vld [vmem:[%s545] sm:$0x1]
        %v2784 = vadd.f32 %v2640, %v2642
        %v2785 = vadd.f32 %v2784, %v2645
        %v2786 = vadd.f32 %v2785, %v2647
        %v2787 = vadd.f32 %v2786, %v2650
        %v2788 = vadd.f32 %v2787, %v2652
        %v2789 = vadd.f32 %v2788, %v2655
        %v2790 = vadd.f32 %v2789, %v2657
        %v2791 = vadd.f32 %v2790, %v2660
        %v2792 = vadd.f32 %v2791, %v2662
        %v2793 = vadd.f32 %v2792, %v2665
        %v2794 = vadd.f32 %v2793, %v2667
        %v2795 = vadd.f32 %v2794, %v2670
        %v2796 = vadd.f32 %v2795, %v2672
        %v2797 = vadd.f32 %v2796, %v2675
        %v2798 = vadd.f32 %v2797, %v2677
        %v2799 = vadd.f32 %v2798, %v2680
        %v2800 = vadd.f32 %v2799, %v2682
        %v2801 = vadd.f32 %v2800, %v2685
        %v2802 = vadd.f32 %v2801, %v2687
        %v2803 = vadd.f32 %v2802, %v2690
        %v2804 = vadd.f32 %v2803, %v2692
        %v2805 = vadd.f32 %v2804, %v2695
        %v2806 = vadd.f32 %v2805, %v2697
        %v2807 = vadd.f32 %v2806, %v2700
        %v2808 = vadd.f32 %v2807, %v2702
        %v2809 = vadd.f32 %v2808, %v2705
        %v2810 = vadd.f32 %v2809, %v2707
        %v2811 = vadd.f32 %v2810, %v2710
        %v2812 = vadd.f32 %v2811, %v2712
        %v2813 = vadd.f32 %v2812, %v2715
        %v2814 = vadd.f32 %v2813, %v2717
        %v2815 = vrot.slane %v2814, 4
        %v2816 = vadd.f32 %v2814, %v2815
        %v2817 = vrot.slane %v2816, 2
        %v2818 = vadd.f32 %v2816, %v2817
        %v2819 = vrot.slane %v2818, 1
        %v2820 = vadd.f32 %v2818, %v2819
        %v2821 = vadd.f32 %v2783, %v2820
        %2822 = vst [vmem:[%s545] sm:$0x1] %v2821
        %v2823 = vadd.f32 %v2163, 1.0
        %v2824 = vadd.f32 %v2165, 1.0
        %v2825 = vadd.f32 %v2168, 1.0
        %v2826 = vadd.f32 %v2170, 1.0
        %v2827 = vadd.f32 %v2173, 1.0
        %v2828 = vadd.f32 %v2175, 1.0
        %v2829 = vadd.f32 %v2178, 1.0
        %v2830 = vadd.f32 %v2180, 1.0
        %v2831 = vadd.f32 %v2183, 1.0
        %v2832 = vadd.f32 %v2185, 1.0
        %v2833 = vadd.f32 %v2188, 1.0
        %v2834 = vadd.f32 %v2190, 1.0
        %v2835 = vadd.f32 %v2193, 1.0
        %v2836 = vadd.f32 %v2195, 1.0
        %v2837 = vadd.f32 %v2198, 1.0
        %v2838 = vadd.f32 %v2200, 1.0
        %v2839 = vadd.f32 %v2203, 1.0
        %v2840 = vadd.f32 %v2205, 1.0
        %v2841 = vadd.f32 %v2208, 1.0
        %v2842 = vadd.f32 %v2210, 1.0
        %v2843 = vadd.f32 %v2213, 1.0
        %v2844 = vadd.f32 %v2215, 1.0
        %v2845 = vadd.f32 %v2218, 1.0
        %v2846 = vadd.f32 %v2220, 1.0
        %v2847 = vadd.f32 %v2223, 1.0
        %v2848 = vadd.f32 %v2225, 1.0
        %v2849 = vadd.f32 %v2228, 1.0
        %v2850 = vadd.f32 %v2230, 1.0
        %v2851 = vadd.f32 %v2233, 1.0
        %v2852 = vadd.f32 %v2235, 1.0
        %v2853 = vadd.f32 %v2238, 1.0
        %v2854 = vadd.f32 %v2240, 1.0
        %v2855 = vmul.f32 %v2823, %v841
        %v2856 = vmul.f32 %v2824, %v843
        %v2857 = vmul.f32 %v2825, %v846
        %v2858 = vmul.f32 %v2826, %v848
        %v2859 = vmul.f32 %v2827, %v851
        %v2860 = vmul.f32 %v2828, %v853
        %v2861 = vmul.f32 %v2829, %v856
        %v2862 = vmul.f32 %v2830, %v858
        %v2863 = vmul.f32 %v2831, %v861
        %v2864 = vmul.f32 %v2832, %v863
        %v2865 = vmul.f32 %v2833, %v866
        %v2866 = vmul.f32 %v2834, %v868
        %v2867 = vmul.f32 %v2835, %v871
        %v2868 = vmul.f32 %v2836, %v873
        %v2869 = vmul.f32 %v2837, %v876
        %v2870 = vmul.f32 %v2838, %v878
        %v2871 = vmul.f32 %v2839, %v881
        %v2872 = vmul.f32 %v2840, %v883
        %v2873 = vmul.f32 %v2841, %v886
        %v2874 = vmul.f32 %v2842, %v888
        %v2875 = vmul.f32 %v2843, %v891
        %v2876 = vmul.f32 %v2844, %v893
        %v2877 = vmul.f32 %v2845, %v896
        %v2878 = vmul.f32 %v2846, %v898
        %v2879 = vmul.f32 %v2847, %v901
        %v2880 = vmul.f32 %v2848, %v903
        %v2881 = vmul.f32 %v2849, %v906
        %v2882 = vmul.f32 %v2850, %v908
        %v2883 = vmul.f32 %v2851, %v911
        %v2884 = vmul.f32 %v2852, %v913
        %v2885 = vmul.f32 %v2853, %v916
        %v2886 = vmul.f32 %v2854, %v918
        %v2887 = vadd.f32 %v2855, %v2341
        %v2888 = vadd.f32 %v2856, %v2343
        %v2889 = vadd.f32 %v2857, %v2346
        %v2890 = vadd.f32 %v2858, %v2348
        %v2891 = vadd.f32 %v2859, %v2351
        %v2892 = vadd.f32 %v2860, %v2353
        %v2893 = vadd.f32 %v2861, %v2356
        %v2894 = vadd.f32 %v2862, %v2358
        %v2895 = vadd.f32 %v2863, %v2361
        %v2896 = vadd.f32 %v2864, %v2363
        %v2897 = vadd.f32 %v2865, %v2366
        %v2898 = vadd.f32 %v2866, %v2368
        %v2899 = vadd.f32 %v2867, %v2371
        %v2900 = vadd.f32 %v2868, %v2373
        %v2901 = vadd.f32 %v2869, %v2376
        %v2902 = vadd.f32 %v2870, %v2378
        %v2903 = vadd.f32 %v2871, %v2381
        %v2904 = vadd.f32 %v2872, %v2383
        %v2905 = vadd.f32 %v2873, %v2386
        %v2906 = vadd.f32 %v2874, %v2388
        %v2907 = vadd.f32 %v2875, %v2391
        %v2908 = vadd.f32 %v2876, %v2393
        %v2909 = vadd.f32 %v2877, %v2396
        %v2910 = vadd.f32 %v2878, %v2398
        %v2911 = vadd.f32 %v2879, %v2401
        %v2912 = vadd.f32 %v2880, %v2403
        %v2913 = vadd.f32 %v2881, %v2406
        %v2914 = vadd.f32 %v2882, %v2408
        %v2915 = vadd.f32 %v2883, %v2411
        %v2916 = vadd.f32 %v2884, %v2413
        %v2917 = vadd.f32 %v2885, %v2416
        %v2918 = vadd.f32 %v2886, %v2418
        %v2919 = vmax.f32 %v2887, 0.0
        %v2920 = vmax.f32 %v2888, 0.0
        %v2921 = vmax.f32 %v2889, 0.0
        %v2922 = vmax.f32 %v2890, 0.0
        %v2923 = vmax.f32 %v2891, 0.0
        %v2924 = vmax.f32 %v2892, 0.0
        %v2925 = vmax.f32 %v2893, 0.0
        %v2926 = vmax.f32 %v2894, 0.0
        %v2927 = vmax.f32 %v2895, 0.0
        %v2928 = vmax.f32 %v2896, 0.0
        %v2929 = vmax.f32 %v2897, 0.0
        %v2930 = vmax.f32 %v2898, 0.0
        %v2931 = vmax.f32 %v2899, 0.0
        %v2932 = vmax.f32 %v2900, 0.0
        %v2933 = vmax.f32 %v2901, 0.0
        %v2934 = vmax.f32 %v2902, 0.0
        %v2935 = vmax.f32 %v2903, 0.0
        %v2936 = vmax.f32 %v2904, 0.0
        %v2937 = vmax.f32 %v2905, 0.0
        %v2938 = vmax.f32 %v2906, 0.0
        %v2939 = vmax.f32 %v2907, 0.0
        %v2940 = vmax.f32 %v2908, 0.0
        %v2941 = vmax.f32 %v2909, 0.0
        %v2942 = vmax.f32 %v2910, 0.0
        %v2943 = vmax.f32 %v2911, 0.0
        %v2944 = vmax.f32 %v2912, 0.0
        %v2945 = vmax.f32 %v2913, 0.0
        %v2946 = vmax.f32 %v2914, 0.0
        %v2947 = vmax.f32 %v2915, 0.0
        %v2948 = vmax.f32 %v2916, 0.0
        %v2949 = vmax.f32 %v2917, 0.0
        %v2950 = vmax.f32 %v2918, 0.0
        %s2951 = scalar_lea.vmem [#allocation11], 64
        %v2952 = vld [vmem:[%s2951] sm:$0xf]
        %v2953 = vld [vmem:[%s2951 + $0x4] sm:$0xf]
        %v2954 = vld [vmem:[%s2951 + $0x8] sm:$0xf]
        %v2955 = vld [vmem:[%s2951 + $0xc] sm:$0xf]
        %v2956 = vld [vmem:[%s2951 + $0x10] sm:$0xf]
        %v2957 = vld [vmem:[%s2951 + $0x14] sm:$0xf]
        %v2958 = vld [vmem:[%s2951 + $0x18] sm:$0xf]
        %v2959 = vld [vmem:[%s2951 + $0x1c] sm:$0xf]
        %v2960 = vld [vmem:[%s2951 + $0x20] sm:$0xf]
        %v2961 = vld [vmem:[%s2951 + $0x24] sm:$0xf]
        %v2962 = vld [vmem:[%s2951 + $0x28] sm:$0xf]
        %v2963 = vld [vmem:[%s2951 + $0x2c] sm:$0xf]
        %v2964 = vld [vmem:[%s2951 + $0x30] sm:$0xf]
        %v2965 = vld [vmem:[%s2951 + $0x34] sm:$0xf]
        %v2966 = vld [vmem:[%s2951 + $0x38] sm:$0xf]
        %v2967 = vld [vmem:[%s2951 + $0x3c] sm:$0xf]
        %v2968 = vpack.c.bf16 %v2920, %v2919
        %v2969 = vpack.c.bf16 %v2922, %v2921
        %v2970 = vpack.c.bf16 %v2924, %v2923
        %v2971 = vpack.c.bf16 %v2926, %v2925
        %v2972 = vpack.c.bf16 %v2928, %v2927
        %v2973 = vpack.c.bf16 %v2930, %v2929
        %v2974 = vpack.c.bf16 %v2932, %v2931
        %v2975 = vpack.c.bf16 %v2934, %v2933
        %v2976 = vpack.c.bf16 %v2936, %v2935
        %v2977 = vpack.c.bf16 %v2938, %v2937
        %v2978 = vpack.c.bf16 %v2940, %v2939
        %v2979 = vpack.c.bf16 %v2942, %v2941
        %v2980 = vpack.c.bf16 %v2944, %v2943
        %v2981 = vpack.c.bf16 %v2946, %v2945
        %v2982 = vpack.c.bf16 %v2948, %v2947
        %v2983 = vpack.c.bf16 %v2950, %v2949
        %v2984 = vld [vmem:[%s7 + $0x1] sm:$0x1]
        %v2985 = vperm.slane %v2984, 0
        %v3002 = vunpack.c.l.b16 %v2952
        %v3003 = vunpack.c.l.b16 %v2953
        %v3004 = vunpack.c.l.b16 %v2954
        %v3005 = vunpack.c.l.b16 %v2955
        %v3006 = vunpack.c.l.b16 %v2956
        %v3007 = vunpack.c.l.b16 %v2957
        %v3008 = vunpack.c.l.b16 %v2958
        %v3009 = vunpack.c.l.b16 %v2959
        %v3010 = vunpack.c.l.b16 %v2960
        %v3011 = vunpack.c.l.b16 %v2961
        %v3012 = vunpack.c.l.b16 %v2962
        %v3013 = vunpack.c.l.b16 %v2963
        %v3014 = vunpack.c.l.b16 %v2964
        %v3015 = vunpack.c.l.b16 %v2965
        %v3016 = vunpack.c.l.b16 %v2966
        %v3017 = vunpack.c.l.b16 %v2967
        %v3018 = vpack.c.b16 %v3003, %v3002
        %v3019 = vpack.c.b16 %v3005, %v3004
        %v3020 = vpack.c.b16 %v3007, %v3006
        %v3021 = vpack.c.b16 %v3009, %v3008
        %v3022 = vpack.c.b16 %v3011, %v3010
        %v3023 = vpack.c.b16 %v3013, %v3012
        %v3024 = vpack.c.b16 %v3015, %v3014
        %v3025 = vpack.c.b16 %v3017, %v3016
        %3034 = vmatpush.bf16.msra.mxu0 %v3025
        %3035 = vmatpush.bf16.msra.mxu0 %v3024
        %3036 = vmatpush.bf16.msra.mxu0 %v3023
        %3037 = vmatpush.bf16.msra.mxu0 %v3022
        %3038 = vmatpush.bf16.msra.mxu0 %v3021
        %3039 = vmatpush.bf16.msra.mxu0 %v3020
        %3040 = vmatpush.bf16.msra.mxu0 %v3019
        %3041 = vmatpush.bf16.msra.mxu0 %v3018
        %3042 = vmatmul.bf16.gmra.mxu0 %v2968
        %v3043 = vpop.f32.mrf.mxu0
        %v3044 = vadd.f32 %v2985, %v3043
        %v3045 = vpop.f32.mrf.mxu0
        %v3046 = vadd.f32 %v2985, %v3045
        %3047 = vmatmul.bf16.gmra.mxu0 %v2969
        %v3048 = vpop.f32.mrf.mxu0
        %v3049 = vadd.f32 %v2985, %v3048
        %v3050 = vpop.f32.mrf.mxu0
        %v3051 = vadd.f32 %v2985, %v3050
        %3052 = vmatmul.bf16.gmra.mxu0 %v2970
        %v3053 = vpop.f32.mrf.mxu0
        %v3054 = vadd.f32 %v2985, %v3053
        %v3055 = vpop.f32.mrf.mxu0
        %v3056 = vadd.f32 %v2985, %v3055
        %3057 = vmatmul.bf16.gmra.mxu0 %v2971
        %v3058 = vpop.f32.mrf.mxu0
        %v3059 = vadd.f32 %v2985, %v3058
        %v3060 = vpop.f32.mrf.mxu0
        %v3061 = vadd.f32 %v2985, %v3060
        %3062 = vmatmul.bf16.gmra.mxu0 %v2972
        %v3063 = vpop.f32.mrf.mxu0
        %v3064 = vadd.f32 %v2985, %v3063
        %v3065 = vpop.f32.mrf.mxu0
        %v3066 = vadd.f32 %v2985, %v3065
        %3067 = vmatmul.bf16.gmra.mxu0 %v2973
        %v3068 = vpop.f32.mrf.mxu0
        %v3069 = vadd.f32 %v2985, %v3068
        %v3070 = vpop.f32.mrf.mxu0
        %v3071 = vadd.f32 %v2985, %v3070
        %3072 = vmatmul.bf16.gmra.mxu0 %v2974
        %v3073 = vpop.f32.mrf.mxu0
        %v3074 = vadd.f32 %v2985, %v3073
        %v3075 = vpop.f32.mrf.mxu0
        %v3076 = vadd.f32 %v2985, %v3075
        %3077 = vmatmul.bf16.gmra.mxu0 %v2975
        %v3078 = vpop.f32.mrf.mxu0
        %v3079 = vadd.f32 %v2985, %v3078
        %v3080 = vpop.f32.mrf.mxu0
        %v3081 = vadd.f32 %v2985, %v3080
        %3082 = vmatmul.bf16.gmra.mxu0 %v2976
        %v3083 = vpop.f32.mrf.mxu0
        %v3084 = vadd.f32 %v2985, %v3083
        %v3085 = vpop.f32.mrf.mxu0
        %v3086 = vadd.f32 %v2985, %v3085
        %3087 = vmatmul.bf16.gmra.mxu0 %v2977
        %v3088 = vpop.f32.mrf.mxu0
        %v3089 = vadd.f32 %v2985, %v3088
        %v3090 = vpop.f32.mrf.mxu0
        %v3091 = vadd.f32 %v2985, %v3090
        %3092 = vmatmul.bf16.gmra.mxu0 %v2978
        %v3093 = vpop.f32.mrf.mxu0
        %v3094 = vadd.f32 %v2985, %v3093
        %v3095 = vpop.f32.mrf.mxu0
        %v3096 = vadd.f32 %v2985, %v3095
        %3097 = vmatmul.bf16.gmra.mxu0 %v2979
        %v3098 = vpop.f32.mrf.mxu0
        %v3099 = vadd.f32 %v2985, %v3098
        %v3100 = vpop.f32.mrf.mxu0
        %v3101 = vadd.f32 %v2985, %v3100
        %3102 = vmatmul.bf16.gmra.mxu0 %v2980
        %v3103 = vpop.f32.mrf.mxu0
        %v3104 = vadd.f32 %v2985, %v3103
        %v3105 = vpop.f32.mrf.mxu0
        %v3106 = vadd.f32 %v2985, %v3105
        %3107 = vmatmul.bf16.gmra.mxu0 %v2981
        %v3108 = vpop.f32.mrf.mxu0
        %v3109 = vadd.f32 %v2985, %v3108
        %v3110 = vpop.f32.mrf.mxu0
        %v3111 = vadd.f32 %v2985, %v3110
        %3112 = vmatmul.bf16.gmra.mxu0 %v2982
        %v3113 = vpop.f32.mrf.mxu0
        %v3114 = vadd.f32 %v2985, %v3113
        %v3115 = vpop.f32.mrf.mxu0
        %v3116 = vadd.f32 %v2985, %v3115
        %3117 = vmatmul.bf16.gmra.mxu0 %v2983
        %v3118 = vpop.f32.mrf.mxu0
        %v3119 = vadd.f32 %v2985, %v3118
        %v3120 = vpop.f32.mrf.mxu0
        %v3121 = vadd.f32 %v2985, %v3120
        %3122 = vdwg.mxu0
        %v3123 = vpack.c.bf16 %v3044, %v3044
        %v3124 = vpack.c.bf16 %v3046, %v3046
        %v3125 = vpack.c.bf16 %v3049, %v3049
        %v3126 = vpack.c.bf16 %v3051, %v3051
        %v3127 = vpack.c.bf16 %v3054, %v3054
        %v3128 = vpack.c.bf16 %v3056, %v3056
        %v3129 = vpack.c.bf16 %v3059, %v3059
        %v3130 = vpack.c.bf16 %v3061, %v3061
        %v3131 = vpack.c.bf16 %v3064, %v3064
        %v3132 = vpack.c.bf16 %v3066, %v3066
        %v3133 = vpack.c.bf16 %v3069, %v3069
        %v3134 = vpack.c.bf16 %v3071, %v3071
        %v3135 = vpack.c.bf16 %v3074, %v3074
        %v3136 = vpack.c.bf16 %v3076, %v3076
        %v3137 = vpack.c.bf16 %v3079, %v3079
        %v3138 = vpack.c.bf16 %v3081, %v3081
        %v3139 = vpack.c.bf16 %v3084, %v3084
        %v3140 = vpack.c.bf16 %v3086, %v3086
        %v3141 = vpack.c.bf16 %v3089, %v3089
        %v3142 = vpack.c.bf16 %v3091, %v3091
        %v3143 = vpack.c.bf16 %v3094, %v3094
        %v3144 = vpack.c.bf16 %v3096, %v3096
        %v3145 = vpack.c.bf16 %v3099, %v3099
        %v3146 = vpack.c.bf16 %v3101, %v3101
        %v3147 = vpack.c.bf16 %v3104, %v3104
        %v3148 = vpack.c.bf16 %v3106, %v3106
        %v3149 = vpack.c.bf16 %v3109, %v3109
        %v3150 = vpack.c.bf16 %v3111, %v3111
        %v3151 = vpack.c.bf16 %v3114, %v3114
        %v3152 = vpack.c.bf16 %v3116, %v3116
        %v3153 = vpack.c.bf16 %v3119, %v3119
        %v3154 = vpack.c.bf16 %v3121, %v3121
        %3155 = vst [vmem:[%s539] sm:$0xf] %v3123
        %3156 = vst [vmem:[%s539 + $0x4] sm:$0xf] %v3124
        %3157 = vst [vmem:[%s539 + $0x8] sm:$0xf] %v3125
        %3158 = vst [vmem:[%s539 + $0xc] sm:$0xf] %v3126
        %3159 = vst [vmem:[%s539 + $0x10] sm:$0xf] %v3127
        %3160 = vst [vmem:[%s539 + $0x14] sm:$0xf] %v3128
        %3161 = vst [vmem:[%s539 + $0x18] sm:$0xf] %v3129
        %3162 = vst [vmem:[%s539 + $0x1c] sm:$0xf] %v3130
        %3163 = vst [vmem:[%s539 + $0x20] sm:$0xf] %v3131
        %3164 = vst [vmem:[%s539 + $0x24] sm:$0xf] %v3132
        %3165 = vst [vmem:[%s539 + $0x28] sm:$0xf] %v3133
        %3166 = vst [vmem:[%s539 + $0x2c] sm:$0xf] %v3134
        %3167 = vst [vmem:[%s539 + $0x30] sm:$0xf] %v3135
        %3168 = vst [vmem:[%s539 + $0x34] sm:$0xf] %v3136
        %3169 = vst [vmem:[%s539 + $0x38] sm:$0xf] %v3137
        %3170 = vst [vmem:[%s539 + $0x3c] sm:$0xf] %v3138
        %3171 = vst [vmem:[%s539 + $0x40] sm:$0xf] %v3139
        %3172 = vst [vmem:[%s539 + $0x44] sm:$0xf] %v3140
        %3173 = vst [vmem:[%s539 + $0x48] sm:$0xf] %v3141
        %3174 = vst [vmem:[%s539 + $0x4c] sm:$0xf] %v3142
        %3175 = vst [vmem:[%s539 + $0x50] sm:$0xf] %v3143
        %3176 = vst [vmem:[%s539 + $0x54] sm:$0xf] %v3144
        %3177 = vst [vmem:[%s539 + $0x58] sm:$0xf] %v3145
        %3178 = vst [vmem:[%s539 + $0x5c] sm:$0xf] %v3146
        %3179 = vst [vmem:[%s539 + $0x60] sm:$0xf] %v3147
        %3180 = vst [vmem:[%s539 + $0x64] sm:$0xf] %v3148
        %3181 = vst [vmem:[%s539 + $0x68] sm:$0xf] %v3149
        %3182 = vst [vmem:[%s539 + $0x6c] sm:$0xf] %v3150
        %3183 = vst [vmem:[%s539 + $0x70] sm:$0xf] %v3151
        %3184 = vst [vmem:[%s539 + $0x74] sm:$0xf] %v3152
        %3185 = vst [vmem:[%s539 + $0x78] sm:$0xf] %v3153
        %3186 = vst [vmem:[%s539 + $0x7c] sm:$0xf] %v3154
        %v3187 = vld [vmem:[%s545] sm:$0x1]
        %v3188 = vadd.f32 %v3044, %v3046
        %v3189 = vadd.f32 %v3188, %v3049
        %v3190 = vadd.f32 %v3189, %v3051
        %v3191 = vadd.f32 %v3190, %v3054
        %v3192 = vadd.f32 %v3191, %v3056
        %v3193 = vadd.f32 %v3192, %v3059
        %v3194 = vadd.f32 %v3193, %v3061
        %v3195 = vadd.f32 %v3194, %v3064
        %v3196 = vadd.f32 %v3195, %v3066
        %v3197 = vadd.f32 %v3196, %v3069
        %v3198 = vadd.f32 %v3197, %v3071
        %v3199 = vadd.f32 %v3198, %v3074
        %v3200 = vadd.f32 %v3199, %v3076
        %v3201 = vadd.f32 %v3200, %v3079
        %v3202 = vadd.f32 %v3201, %v3081
        %v3203 = vadd.f32 %v3202, %v3084
        %v3204 = vadd.f32 %v3203, %v3086
        %v3205 = vadd.f32 %v3204, %v3089
        %v3206 = vadd.f32 %v3205, %v3091
        %v3207 = vadd.f32 %v3206, %v3094
        %v3208 = vadd.f32 %v3207, %v3096
        %v3209 = vadd.f32 %v3208, %v3099
        %v3210 = vadd.f32 %v3209, %v3101
        %v3211 = vadd.f32 %v3210, %v3104
        %v3212 = vadd.f32 %v3211, %v3106
        %v3213 = vadd.f32 %v3212, %v3109
        %v3214 = vadd.f32 %v3213, %v3111
        %v3215 = vadd.f32 %v3214, %v3114
        %v3216 = vadd.f32 %v3215, %v3116
        %v3217 = vadd.f32 %v3216, %v3119
        %v3218 = vadd.f32 %v3217, %v3121
        %v3219 = vrot.slane %v3218, 4
        %v3220 = vadd.f32 %v3218, %v3219
        %v3221 = vrot.slane %v3220, 2
        %v3222 = vadd.f32 %v3220, %v3221
        %v3223 = vrot.slane %v3222, 1
        %v3224 = vadd.f32 %v3222, %v3223
        %v3225 = vsub.f32 %v3187, %v3224
        %3226 = vst [vmem:[%s545] sm:$0x1] %v3225
        %s3227 = sand.u32 %s253, 1
        %s3228 = scalar_lea.sflag [#allocation4], %s3227
        %s3229 = sand.u32 %s253, 1
        %s3230 = smul.addr %s3229, 128
        %s3231 = scalar_lea.vmem [#allocation13], %s3230
        %s3232 = sand.u32 %s36, 1
        %s3233 = scalar_lea.sflag [#allocation15], %s3232
        %s3234 = sand.u32 %s283, 1
        %s3235 = smul.addr %s3234, 128
        %s3236 = scalar_lea.vmem [#allocation14], %s3235
        %s3237 = sand.u32 %s36, 1
        %s3238 = scalar_lea.sflag [#allocation15], %s3237
        %s3239 = sand.u32 %s311, 1
        %s3240 = scalar_lea.vmem [#allocation16], %s3239
        // Predicated region
        $region81: #{tpu_custom_call.1} parent=51 // pred_check
          %p3241 = pneg %p263
        $region82: #{tpu_custom_call.1} parent=51 // pred_check_branch
          %3243 = sbr.rel (%p3241) target = $region84
        $region83: #{tpu_custom_call.1} parent=51 // pred_region
          %s3244 = sadd.s32 %s42, %s43
          %s3245 = smul.u32 32, %s3244
          %3247 = vsyncadd %s3228, 0
          %s3248 = smul.addr %s41, 32
          %s3249 = sadd.s32 %s3245, %s3248
          %s3250 = smul.addr %s3249, 4
          %s3251 = scalar_lea.hbm %s8, %s3250
          %s3252 = sshll.u32 %s3231, 4
          %s3253 = int_to_ptr.vmem [resolvable:$true] %s3252
          %s3254 = sshll.u32 %s3251, 4
          %s3255 = int_to_ptr.hbm [resolvable:$true] %s3254
          %3260 = dma.vmem_to_hbm [thread:$0]  %s3253, 2048, %s3255, %s3228, 64, 64, 4
        $region84: #{tpu_custom_call.1} parent=51 // pred_fallthru
          _
        // Predicated region
        $region85: #{tpu_custom_call.1} parent=51 // pred_check
          %p3261 = pneg %p293
        $region86: #{tpu_custom_call.1} parent=51 // pred_check_branch
          %3263 = sbr.rel (%p3261) target = $region88
        $region87: #{tpu_custom_call.1} parent=51 // pred_region
          %s3264 = sadd.s32 %s42, %s43
          %s3265 = smul.u32 32, %s3264
          %3267 = vsyncadd %s3233, 0
          %s3268 = smul.addr %s41, 32
          %s3269 = sadd.s32 %s3265, %s3268
          %s3270 = smul.addr %s3269, 4
          %s3271 = scalar_lea.hbm %s9, %s3270
          %s3272 = sshll.u32 %s3236, 4
          %s3273 = int_to_ptr.vmem [resolvable:$true] %s3272
          %s3274 = sshll.u32 %s3271, 4
          %s3275 = int_to_ptr.hbm [resolvable:$true] %s3274
          %3280 = dma.vmem_to_hbm [thread:$0]  %s3273, 2048, %s3275, %s3233, 64, 64, 4
        $region88: #{tpu_custom_call.1} parent=51 // pred_fallthru
          _
        // Predicated region
        $region89: #{tpu_custom_call.1} parent=51 // pred_check
          %p3281 = pneg %p321
        $region90: #{tpu_custom_call.1} parent=51 // pred_check_branch
          %3283 = sbr.rel (%p3281) target = $region92
        $region91: #{tpu_custom_call.1} parent=51 // pred_region
          %s3284 = sadd.s32 %s41, %s42
          %3286 = vsyncadd %s3238, 0
          %s3287 = scalar_lea.hbm %s10, %s3284
          %s3289 = sshll.u32 %s3240, 4
          %s3290 = int_to_ptr.vmem [resolvable:$true] %s3289
          %s3291 = sshll.u32 %s3287, 4
          %s3292 = int_to_ptr.hbm [resolvable:$true] %s3291
          %3294 = dma.vmem_to_hbm [thread:$0]  %s3290, 16, %s3292, %s3238
        $region92: #{tpu_custom_call.1} parent=51 // pred_fallthru
          _
      $region52: #{tpu_custom_call.1} parent=5 // pred_fallthru
        _
      %p3295 = scmp.le.s32.totalorder 2, %s31
      // Predicated region
      $region93: #{tpu_custom_call.1} parent=5 // pred_check
        %p3296 = pneg %p3295
      $region94: #{tpu_custom_call.1} parent=5 // pred_check_branch
        %3298 = sbr.rel (%p3296) target = $region96
      $region95: #{tpu_custom_call.1} parent=5 // pred_region
        %s3299 = ssub.s32 %s31, 2
        // Predicated region
        $region97: #{tpu_custom_call.1} parent=95 // pred_check
          %p3300 = pneg %p269
        $region98: #{tpu_custom_call.1} parent=95 // pred_check_branch
          %3302 = sbr.rel (%p3300) target = $region100
        $region99: #{tpu_custom_call.1} parent=95 // pred_region
          %s3303 = sand.u32 %s254, 1
          %s3304 = scalar_lea.sflag [#allocation4], %s3303
          %s3305 = sand.u32 %s254, 1
          %s3306 = smul.addr %s3305, 128
          %s3307 = scalar_lea.vmem [#allocation13], %s3306
          %3309 = dma.done %s3304, 2048
        $region100: #{tpu_custom_call.1} parent=95 // pred_fallthru
          _
        // Predicated region
        $region101: #{tpu_custom_call.1} parent=95 // pred_check
          %p3310 = pneg %p299
        $region102: #{tpu_custom_call.1} parent=95 // pred_check_branch
          %3312 = sbr.rel (%p3310) target = $region104
        $region103: #{tpu_custom_call.1} parent=95 // pred_region
          %s3313 = sand.u32 %s37, 1
          %s3314 = scalar_lea.sflag [#allocation15], %s3313
          %s3315 = sand.u32 %s284, 1
          %s3316 = smul.addr %s3315, 128
          %s3317 = scalar_lea.vmem [#allocation14], %s3316
          %3319 = dma.done %s3314, 2048
        $region104: #{tpu_custom_call.1} parent=95 // pred_fallthru
          _
        // Predicated region
        $region105: #{tpu_custom_call.1} parent=95 // pred_check
          %p3320 = pneg %p327
        $region106: #{tpu_custom_call.1} parent=95 // pred_check_branch
          %3322 = sbr.rel (%p3320) target = $region108
        $region107: #{tpu_custom_call.1} parent=95 // pred_region
          %s3323 = sand.u32 %s37, 1
          %s3324 = scalar_lea.sflag [#allocation15], %s3323
          %s3325 = sand.u32 %s312, 1
          %s3326 = scalar_lea.vmem [#allocation16], %s3325
          %3328 = dma.done %s3324, 16
        $region108: #{tpu_custom_call.1} parent=95 // pred_fallthru
          _
      $region96: #{tpu_custom_call.1} parent=5 // pred_fallthru
        _
    $region6: #{tpu_custom_call.1} parent=1 // loop_footer
      %s35 = sadd.s32 1, %s31
    $region7: #{tpu_custom_call.1} parent=1 // loop_footer_branch
      %30 = sbr.rel target = $region3
    $region8: #{tpu_custom_call.1} parent=1 // loop_exit
      _
    %3329 = vsyncpa [#allocation3], 1
    %s3330 = scalar_lea.sflag [#allocation3], 1
    %3331 = vsyncpa %s3330, 1
    %3332 = vsyncpa [#allocation6], 1
    %s3333 = scalar_lea.sflag [#allocation6], 1
    %3334 = vsyncpa %s3333, 1
    %3335 = vsyncpa [#allocation9], 1
    %3336 = vsyncpa [#allocation12], 1
    %3337 = vsyncpa [#allocation4], 1
    %s3338 = scalar_lea.sflag [#allocation4], 1
    %3339 = vsyncpa %s3338, 1
    %3340 = vsyncpa [#allocation15], 1
    %s3341 = scalar_lea.sflag [#allocation15], 1
    %3342 = vsyncpa %s3341, 1

</llo_original>
